<compile_context>
chip_gen: v5e
topology: v5e:2x2
jax: 0.10.0
libtpu: 0.0.40
codegen_flags: <defaults>
</compile_context>

<pallas_src>
import math
import jax
import jax.numpy as jnp
from jax.experimental import pallas as pl
from jax.experimental.pallas import tpu as pltpu

INPUT = 1     # action dim
HIDDEN = 32
OUTPUT = 4
STATE = 32
LOG2PI = math.log(2.0 * math.pi)

# MXU operand dtype (accumulation stays f32 via preferred_element_type).
MXU_DTYPE = jnp.bfloat16


def rssm_forward_kernel(
    x_ref, a_ref, eps_ref,
    w_i1_ref, b_i1_ref, w_i2_ref, b_i2_ref,      # init_h
    w_h4_ref, b_h4_ref,                          # fused h-heads: prior_m | prior_logsig | hidden_obs(h) | state_hidden(h)
    w_st_ref,                                    # fused state-heads: state_action(state) | state_hidden(state)
    w_sa_a_ref, b_sa_ref,                        # action column + bias of state_action layer
    w_g_ref, b_g_ref,                            # fused LSTM gate weights [2H,4H], pre-summed bias
    w_ho_x_ref,                                  # obs-column block of hidden_obs
    w_po_ref, b_po_ref,                          # poster
    w_q_ref, b_q_ref,                            # fused post_mean | post_logsigma
    w_o_ref, b_o_ref,                            # fused obs_mean | obs_logsigma
    out_ref,                                     # [2, B]: row0 = sum_t KL per batch, row1 = sum_t log-lik per batch
):
    T = x_ref.shape[0]
    B = x_ref.shape[1]

    # Hoist parameters out of the unrolled time loop; MXU operands cast to bf16 once.
    w_i1 = w_i1_ref[...].astype(MXU_DTYPE); b_i1 = b_i1_ref[...]
    w_i2 = w_i2_ref[...].astype(MXU_DTYPE); b_i2 = b_i2_ref[...]
    w_h4 = w_h4_ref[...].astype(MXU_DTYPE); b_h4 = b_h4_ref[...]
    w_st = w_st_ref[...].astype(MXU_DTYPE)
    w_sa_a = w_sa_a_ref[...]; b_sa = b_sa_ref[...]
    w_g = w_g_ref[...].astype(MXU_DTYPE); b_g = b_g_ref[...]
    w_ho_x = w_ho_x_ref[...].astype(MXU_DTYPE)
    w_po = w_po_ref[...].astype(MXU_DTYPE); b_po = b_po_ref[...]
    w_q = w_q_ref[...].astype(MXU_DTYPE); b_q = b_q_ref[...]
    w_o = w_o_ref[...].astype(MXU_DTYPE); b_o = b_o_ref[...]

    # Load sequence data once (all a handful of vregs at these shapes).
    x_all = x_ref[...]        # [T, B, OUTPUT]
    a_all = a_ref[...]        # [T-1, B, 1]
    eps_all = eps_ref[...]    # [T, B, STATE]

    def mm(a, w):
        return jnp.dot(a.astype(MXU_DTYPE), w, preferred_element_type=jnp.float32)

    # ---- rnn_hidden = init_h(X[0]); c = 0 ----
    x0 = x_all[0]
    h = jnp.tanh(mm(jnp.maximum(mm(x0, w_i1) + b_i1, 0.0), w_i2) + b_i2)
    c = jnp.zeros_like(h)

    # Initial prior + reparametrised state (fused h-heads; only first two slices used).
    hz = mm(h, w_h4) + b_h4
    prior_m = hz[:, 0 * HIDDEN:1 * HIDDEN]
    lp = hz[:, 1 * HIDDEN:2 * HIDDEN]                      # log prior sigma
    state = prior_m + jnp.exp(lp) * eps_all[0]

    # Fused state-heads for the current state: [state_action | state_hidden].
    stz = mm(state, w_st)

    kl_acc = jnp.zeros((B,), jnp.float32)
    ll_acc = jnp.zeros((B,), jnp.float32)

    for t in range(1, T):
        # ---- prior(state, A[t-1], h, c): state_action MLP + LSTM cell ----
        a_t = a_all[t - 1]                                  # [B, 1]
        sa = jnp.maximum(stz[:, :HIDDEN] + a_t * w_sa_a + b_sa, 0.0)
        gates = mm(jnp.concatenate([sa, h], axis=1), w_g) + b_g    # [B, 4H]
        i_g = jax.nn.sigmoid(gates[:, 0 * HIDDEN:1 * HIDDEN])
        f_g = jax.nn.sigmoid(gates[:, 1 * HIDDEN:2 * HIDDEN])
        g_g = jnp.tanh(gates[:, 2 * HIDDEN:3 * HIDDEN])
        o_g = jax.nn.sigmoid(gates[:, 3 * HIDDEN:4 * HIDDEN])
        c = f_g * c + i_g * g_g
        h = o_g * jnp.tanh(c)

        # One 128-lane matmul for everything that depends only on the new h.
        hz = mm(h, w_h4) + b_h4
        prior_m = hz[:, 0 * HIDDEN:1 * HIDDEN]
        lp      = hz[:, 1 * HIDDEN:2 * HIDDEN]              # log prior sigma
        ho_h    = hz[:, 2 * HIDDEN:3 * HIDDEN]              # hidden_obs partial (bias folded)
        sh_h    = hz[:, 3 * HIDDEN:4 * HIDDEN]              # state_hidden partial (bias folded)

        # ---- posterior(h, X[t]) ----
        x_t = x_all[t]                                      # [B, OUTPUT]
        ho = jnp.maximum(ho_h + mm(x_t, w_ho_x), 0.0)
        po = jnp.maximum(mm(ho, w_po) + b_po, 0.0)
        qz = mm(po, w_q) + b_q
        post_m = qz[:, :STATE]
        lq     = qz[:, STATE:]                              # log posterior sigma

        # Reparametrise with externally supplied standard-normal eps.
        state = post_m + jnp.exp(lq) * eps_all[t]

        # Fused state-heads for the new state (feeds obs model now, prior next step).
        stz = mm(state, w_st)

        # ---- KL( Normal(post) || Normal(prior) ) in log-sigma space, summed over state dim ----
        dl = lq - lp
        t1 = (post_m - prior_m) ** 2 * jnp.exp(-2.0 * lp)
        kl = 0.5 * (jnp.exp(2.0 * dl) + t1 - 1.0) - dl
        kl_acc = kl_acc + jnp.sum(kl, axis=-1)

        # ---- obs_model(state, h) + diagonal Gaussian log-likelihood of X[t] ----
        sh = jnp.maximum(stz[:, HIDDEN:] + sh_h, 0.0)
        oz = mm(sh, w_o) + b_o
        obs_m = oz[:, :OUTPUT]
        lo    = oz[:, OUTPUT:]                              # log obs sigma
        diff = x_t - obs_m
        ll = (-(OUTPUT / 2.0) * LOG2PI
              - jnp.sum(lo, axis=-1)                                  # -0.5 * logdet
              - 0.5 * jnp.sum(diff * diff * jnp.exp(-2.0 * lo), axis=-1))
        ll_acc = ll_acc + ll

    out_ref[0, :] = kl_acc
    out_ref[1, :] = ll_acc


def rssm_forward(X, A, eps, params):
    """X: [T, B, OUTPUT], A: [T-1, B], eps: [T, B, STATE] std-normal noise."""
    T, B, _ = X.shape
    A3 = A[..., None].astype(jnp.float32)                   # [T-1, B, 1]

    (w_i1, b_i1, w_i2, b_i2,
     w_pm, b_pm, w_ps, b_ps,
     w_sa_s, w_sa_a, b_sa,
     w_ih, w_hh, b_ih, b_hh,
     w_ho_h, w_ho_x, b_ho,
     w_po, b_po,
     w_qm, b_qm, w_qs, b_qs,
     w_sh_s, w_sh_h, b_sh,
     w_om, b_om, w_os, b_os) = params

    # Fuse same-LHS heads once, outside the kernel (tiny, done by XLA glue).
    w_h4 = jnp.concatenate([w_pm, w_ps, w_ho_h, w_sh_h], axis=1)     # [H, 4H]
    b_h4 = jnp.concatenate([b_pm, b_ps, b_ho, b_sh], axis=1)         # [1, 4H]
    w_st = jnp.concatenate([w_sa_s, w_sh_s], axis=1)                 # [S, 2H]
    w_g = jnp.concatenate([w_ih, w_hh], axis=0)                      # [2H, 4H]
    b_g = b_ih + b_hh                                                # pre-summed LSTM bias
    w_q = jnp.concatenate([w_qm, w_qs], axis=1)                      # [H, 2S]
    b_q = jnp.concatenate([b_qm, b_qs], axis=1)
    w_o = jnp.concatenate([w_om, w_os], axis=1)                      # [H, 2*OUTPUT]
    b_o = jnp.concatenate([b_om, b_os], axis=1)

    inputs = (X.astype(jnp.float32), A3, eps.astype(jnp.float32),
              w_i1, b_i1, w_i2, b_i2,
              w_h4, b_h4, w_st, w_sa_a, b_sa,
              w_g, b_g, w_ho_x, w_po, b_po,
              w_q, b_q, w_o, b_o)

    sums = pl.pallas_call(
        rssm_forward_kernel,
        out_shape=jax.ShapeDtypeStruct((2, B), jnp.float32),
        in_specs=[pl.BlockSpec(memory_space=pltpu.MemorySpace.VMEM)] * len(inputs),
        out_specs=pl.BlockSpec(memory_space=pltpu.MemorySpace.VMEM),
    )(*inputs)

    # Final scalar glue. Matches torch: kl_loss = mean_t(mean_b(kl)),
    # nll = mean over all (step, batch) rows of the log-likelihood (torch's
    # naming; it is the mean LL, not negated), FE = nll - kl_loss.
    denom = float((T - 1) * B)
    kl_loss = jnp.sum(sums[0]) / denom
    nll = jnp.sum(sums[1]) / denom
    fe = nll - kl_loss
    return fe, nll, kl_loss


def init_params(key):
    """Deterministic torch-style uniform init; weights stored as [in, out]."""
    def linear(k, fan_in, fan_out):
        k1, k2 = jax.random.split(k)
        bound = 1.0 / math.sqrt(fan_in)
        w = jax.random.uniform(k1, (fan_in, fan_out), jnp.float32, -bound, bound)
        b = jax.random.uniform(k2, (1, fan_out), jnp.float32, -bound, bound)
        return w, b

    ks = jax.random.split(key, 14)
    w_i1, b_i1 = linear(ks[0], OUTPUT, HIDDEN)               # init_h layer 1
    w_i2, b_i2 = linear(ks[1], HIDDEN, HIDDEN)               # init_h layer 2
    w_pm, b_pm = linear(ks[2], HIDDEN, STATE)                # prior_mean
    w_ps, b_ps = linear(ks[3], HIDDEN, STATE)                # prior_sigma
    w_sa, b_sa = linear(ks[4], STATE + INPUT, HIDDEN)        # state_action_layer
    w_sa_s, w_sa_a = w_sa[:STATE], w_sa[STATE:]              # split state / action
    # LSTMCell: weight_ih [4H, H], weight_hh [4H, H] in torch -> [H, 4H] here
    kih, khh, kbi, kbh = jax.random.split(ks[5], 4)
    bnd = 1.0 / math.sqrt(HIDDEN)
    w_ih = jax.random.uniform(kih, (HIDDEN, 4 * HIDDEN), jnp.float32, -bnd, bnd)
    w_hh = jax.random.uniform(khh, (HIDDEN, 4 * HIDDEN), jnp.float32, -bnd, bnd)
    b_ih = jax.random.uniform(kbi, (1, 4 * HIDDEN), jnp.float32, -bnd, bnd)
    b_hh = jax.random.uniform(kbh, (1, 4 * HIDDEN), jnp.float32, -bnd, bnd)
    w_ho, b_ho = linear(ks[6], HIDDEN + OUTPUT, HIDDEN)      # hidden_obs
    w_ho_h, w_ho_x = w_ho[:HIDDEN], w_ho[HIDDEN:]
    w_po, b_po = linear(ks[7], HIDDEN, HIDDEN)               # poster
    w_qm, b_qm = linear(ks[8], HIDDEN, STATE)                # post_mean
    w_qs, b_qs = linear(ks[9], HIDDEN, STATE)                # post_sigma
    w_sh, b_sh = linear(ks[10], STATE + HIDDEN, HIDDEN)      # state_hidden
    w_sh_s, w_sh_h = w_sh[:STATE], w_sh[STATE:]
    w_om, b_om = linear(ks[11], HIDDEN, OUTPUT)              # obs_mean
    w_os, b_os = linear(ks[12], HIDDEN, OUTPUT)              # obs_sigma

    return (
        w_i1, b_i1, w_i2, b_i2,
        w_pm, b_pm, w_ps, b_ps,
        w_sa_s, w_sa_a, b_sa,
        w_ih, w_hh, b_ih, b_hh,
        w_ho_h, w_ho_x, b_ho,
        w_po, b_po,
        w_qm, b_qm, w_qs, b_qs,
        w_sh_s, w_sh_h, b_sh,
        w_om, b_om, w_os, b_os,
    )


if __name__ == "__main__":
    key = jax.random.PRNGKey(0)
    kp, kx, ka, ke = jax.random.split(key, 4)

    T, B = 8, 2                                             # seq=8, batch=2
    params = init_params(kp)
    X = jax.random.normal(kx, (T, B, OUTPUT), jnp.float32)  # observations
    A = jax.random.normal(ka, (T - 1, B), jnp.float32)      # scalar actions
    # TODO(synk): torch used torch.rand_like(...).normal_() inside reparametrise;
    # here the standard-normal noise is precomputed deterministically and passed in.
    eps = jax.random.normal(ke, (T, B, STATE), jnp.float32)

    fe, nll, kl = jax.jit(rssm_forward)(X, A, eps, params)
    jax.block_until_ready((fe, nll, kl))
    assert jnp.isfinite(fe) and jnp.isfinite(nll) and jnp.isfinite(kl)
    print("KERNEL_OK")
</pallas_src>

<mosaic_0001>
module attributes {stable_mosaic.version = 11 : i64} {
  func.func @rssm_forward_kernel(%arg0: memref<8x2x4xf32, #tpu.memory_space<vmem>>, %arg1: memref<7x2x1xf32, #tpu.memory_space<vmem>>, %arg2: memref<8x2x32xf32, #tpu.memory_space<vmem>>, %arg3: memref<4x32xf32, #tpu.memory_space<vmem>>, %arg4: memref<1x32xf32, #tpu.memory_space<vmem>>, %arg5: memref<32x32xf32, #tpu.memory_space<vmem>>, %arg6: memref<1x32xf32, #tpu.memory_space<vmem>>, %arg7: memref<32x128xf32, #tpu.memory_space<vmem>>, %arg8: memref<1x128xf32, #tpu.memory_space<vmem>>, %arg9: memref<32x64xf32, #tpu.memory_space<vmem>>, %arg10: memref<1x32xf32, #tpu.memory_space<vmem>>, %arg11: memref<1x32xf32, #tpu.memory_space<vmem>>, %arg12: memref<64x128xf32, #tpu.memory_space<vmem>>, %arg13: memref<1x128xf32, #tpu.memory_space<vmem>>, %arg14: memref<4x32xf32, #tpu.memory_space<vmem>>, %arg15: memref<32x32xf32, #tpu.memory_space<vmem>>, %arg16: memref<1x32xf32, #tpu.memory_space<vmem>>, %arg17: memref<32x64xf32, #tpu.memory_space<vmem>>, %arg18: memref<1x64xf32, #tpu.memory_space<vmem>>, %arg19: memref<32x8xf32, #tpu.memory_space<vmem>>, %arg20: memref<1x8xf32, #tpu.memory_space<vmem>>, %arg21: memref<2x2xf32, #tpu.memory_space<vmem>>) attributes {dimension_semantics = [], scalar_prefetch = 0 : i64, scratch_operands = 0 : i64, tpu.core_type = #tpu.core_type<tc>} {
    %c0 = arith.constant 0 : index
    %c0_0 = arith.constant 0 : index
    %0 = vector.load %arg3[%c0, %c0_0] : memref<4x32xf32, #tpu.memory_space<vmem>>, vector<4x32xf32>
    %1 = arith.truncf %0 : vector<4x32xf32> to vector<4x32xbf16>
    %c0_1 = arith.constant 0 : index
    %c0_2 = arith.constant 0 : index
    %2 = vector.load %arg4[%c0_1, %c0_2] : memref<1x32xf32, #tpu.memory_space<vmem>>, vector<1x32xf32>
    %c0_3 = arith.constant 0 : index
    %c0_4 = arith.constant 0 : index
    %3 = vector.load %arg5[%c0_3, %c0_4] : memref<32x32xf32, #tpu.memory_space<vmem>>, vector<32x32xf32>
    %4 = arith.truncf %3 : vector<32x32xf32> to vector<32x32xbf16>
    %c0_5 = arith.constant 0 : index
    %c0_6 = arith.constant 0 : index
    %5 = vector.load %arg6[%c0_5, %c0_6] : memref<1x32xf32, #tpu.memory_space<vmem>>, vector<1x32xf32>
    %c0_7 = arith.constant 0 : index
    %c0_8 = arith.constant 0 : index
    %6 = vector.load %arg7[%c0_7, %c0_8] : memref<32x128xf32, #tpu.memory_space<vmem>>, vector<32x128xf32>
    %7 = arith.truncf %6 : vector<32x128xf32> to vector<32x128xbf16>
    %c0_9 = arith.constant 0 : index
    %c0_10 = arith.constant 0 : index
    %8 = vector.load %arg8[%c0_9, %c0_10] : memref<1x128xf32, #tpu.memory_space<vmem>>, vector<1x128xf32>
    %c0_11 = arith.constant 0 : index
    %c0_12 = arith.constant 0 : index
    %9 = vector.load %arg9[%c0_11, %c0_12] : memref<32x64xf32, #tpu.memory_space<vmem>>, vector<32x64xf32>
    %10 = arith.truncf %9 : vector<32x64xf32> to vector<32x64xbf16>
    %c0_13 = arith.constant 0 : index
    %c0_14 = arith.constant 0 : index
    %11 = vector.load %arg10[%c0_13, %c0_14] : memref<1x32xf32, #tpu.memory_space<vmem>>, vector<1x32xf32>
    %c0_15 = arith.constant 0 : index
    %c0_16 = arith.constant 0 : index
    %12 = vector.load %arg11[%c0_15, %c0_16] : memref<1x32xf32, #tpu.memory_space<vmem>>, vector<1x32xf32>
    %c0_17 = arith.constant 0 : index
    %c0_18 = arith.constant 0 : index
    %13 = vector.load %arg12[%c0_17, %c0_18] : memref<64x128xf32, #tpu.memory_space<vmem>>, vector<64x128xf32>
    %14 = arith.truncf %13 : vector<64x128xf32> to vector<64x128xbf16>
    %c0_19 = arith.constant 0 : index
    %c0_20 = arith.constant 0 : index
    %15 = vector.load %arg13[%c0_19, %c0_20] : memref<1x128xf32, #tpu.memory_space<vmem>>, vector<1x128xf32>
    %c0_21 = arith.constant 0 : index
    %c0_22 = arith.constant 0 : index
    %16 = vector.load %arg14[%c0_21, %c0_22] : memref<4x32xf32, #tpu.memory_space<vmem>>, vector<4x32xf32>
    %17 = arith.truncf %16 : vector<4x32xf32> to vector<4x32xbf16>
    %c0_23 = arith.constant 0 : index
    %c0_24 = arith.constant 0 : index
    %18 = vector.load %arg15[%c0_23, %c0_24] : memref<32x32xf32, #tpu.memory_space<vmem>>, vector<32x32xf32>
    %19 = arith.truncf %18 : vector<32x32xf32> to vector<32x32xbf16>
    %c0_25 = arith.constant 0 : index
    %c0_26 = arith.constant 0 : index
    %20 = vector.load %arg16[%c0_25, %c0_26] : memref<1x32xf32, #tpu.memory_space<vmem>>, vector<1x32xf32>
    %c0_27 = arith.constant 0 : index
    %c0_28 = arith.constant 0 : index
    %21 = vector.load %arg17[%c0_27, %c0_28] : memref<32x64xf32, #tpu.memory_space<vmem>>, vector<32x64xf32>
    %22 = arith.truncf %21 : vector<32x64xf32> to vector<32x64xbf16>
    %c0_29 = arith.constant 0 : index
    %c0_30 = arith.constant 0 : index
    %23 = vector.load %arg18[%c0_29, %c0_30] : memref<1x64xf32, #tpu.memory_space<vmem>>, vector<1x64xf32>
    %c0_31 = arith.constant 0 : index
    %c0_32 = arith.constant 0 : index
    %24 = vector.load %arg19[%c0_31, %c0_32] : memref<32x8xf32, #tpu.memory_space<vmem>>, vector<32x8xf32>
    %25 = arith.truncf %24 : vector<32x8xf32> to vector<32x8xbf16>
    %c0_33 = arith.constant 0 : index
    %c0_34 = arith.constant 0 : index
    %26 = vector.load %arg20[%c0_33, %c0_34] : memref<1x8xf32, #tpu.memory_space<vmem>>, vector<1x8xf32>
    %c0_35 = arith.constant 0 : index
    %c0_36 = arith.constant 0 : index
    %c0_37 = arith.constant 0 : index
    %27 = vector.load %arg0[%c0_35, %c0_36, %c0_37] : memref<8x2x4xf32, #tpu.memory_space<vmem>>, vector<8x2x4xf32>
    %c0_38 = arith.constant 0 : index
    %c0_39 = arith.constant 0 : index
    %c0_40 = arith.constant 0 : index
    %28 = vector.load %arg1[%c0_38, %c0_39, %c0_40] : memref<7x2x1xf32, #tpu.memory_space<vmem>>, vector<7x2x1xf32>
    %c0_41 = arith.constant 0 : index
    %c0_42 = arith.constant 0 : index
    %c0_43 = arith.constant 0 : index
    %29 = vector.load %arg2[%c0_41, %c0_42, %c0_43] : memref<8x2x32xf32, #tpu.memory_space<vmem>>, vector<8x2x32xf32>
    %30 = vector.extract_strided_slice %27 {offsets = [0, 0, 0], sizes = [1, 2, 4], strides = [1, 1, 1]} : vector<8x2x4xf32> to vector<1x2x4xf32>
    %31 = vector.shape_cast %30 : vector<1x2x4xf32> to vector<2x4xf32>
    %32 = arith.truncf %31 : vector<2x4xf32> to vector<2x4xbf16>
    %cst = arith.constant dense<0.000000e+00> : vector<2x32xf32>
    %33 = tpu.matmul %32, %1, %cst {dimension_numbers = #tpu.dot_dimension_numbers<[1], [0], [0], [1], [0, 0, 1, 1], [], []>} : vector<2x4xbf16>, vector<4x32xbf16>, vector<2x32xf32> -> vector<2x32xf32>
    %34 = vector.broadcast %2 : vector<1x32xf32> to vector<2x32xf32>
    %35 = arith.addf %33, %34 : vector<2x32xf32>
    %cst_44 = arith.constant 0.000000e+00 : f32
    %36 = vector.broadcast %cst_44 : f32 to vector<2x32xf32>
    %37 = arith.maximumf %35, %36 : vector<2x32xf32>
    %38 = arith.truncf %37 : vector<2x32xf32> to vector<2x32xbf16>
    %cst_45 = arith.constant dense<0.000000e+00> : vector<2x32xf32>
    %39 = tpu.matmul %38, %4, %cst_45 {dimension_numbers = #tpu.dot_dimension_numbers<[1], [0], [0], [1], [0, 0, 1, 1], [], []>} : vector<2x32xbf16>, vector<32x32xbf16>, vector<2x32xf32> -> vector<2x32xf32>
    %40 = vector.broadcast %5 : vector<1x32xf32> to vector<2x32xf32>
    %41 = arith.addf %39, %40 : vector<2x32xf32>
    %42 = math.tanh %41 : vector<2x32xf32>
    %cst_46 = arith.constant 0.000000e+00 : f32
    %43 = vector.broadcast %cst_46 : f32 to vector<2x32xf32>
    %44 = arith.truncf %42 : vector<2x32xf32> to vector<2x32xbf16>
    %cst_47 = arith.constant dense<0.000000e+00> : vector<2x128xf32>
    %45 = tpu.matmul %44, %7, %cst_47 {dimension_numbers = #tpu.dot_dimension_numbers<[1], [0], [0], [1], [0, 0, 1, 1], [], []>} : vector<2x32xbf16>, vector<32x128xbf16>, vector<2x128xf32> -> vector<2x128xf32>
    %46 = vector.broadcast %8 : vector<1x128xf32> to vector<2x128xf32>
    %47 = arith.addf %45, %46 : vector<2x128xf32>
    %48 = vector.extract_strided_slice %47 {offsets = [0, 0], sizes = [2, 32], strides = [1, 1]} : vector<2x128xf32> to vector<2x32xf32>
    %49 = vector.extract_strided_slice %47 {offsets = [0, 32], sizes = [2, 32], strides = [1, 1]} : vector<2x128xf32> to vector<2x32xf32>
    %50 = math.exp %49 : vector<2x32xf32>
    %51 = vector.extract_strided_slice %29 {offsets = [0, 0, 0], sizes = [1, 2, 32], strides = [1, 1, 1]} : vector<8x2x32xf32> to vector<1x2x32xf32>
    %52 = vector.shape_cast %51 : vector<1x2x32xf32> to vector<2x32xf32>
    %53 = arith.mulf %50, %52 : vector<2x32xf32>
    %54 = arith.addf %48, %53 : vector<2x32xf32>
    %55 = arith.truncf %54 : vector<2x32xf32> to vector<2x32xbf16>
    %cst_48 = arith.constant dense<0.000000e+00> : vector<2x64xf32>
    %56 = tpu.matmul %55, %10, %cst_48 {dimension_numbers = #tpu.dot_dimension_numbers<[1], [0], [0], [1], [0, 0, 1, 1], [], []>} : vector<2x32xbf16>, vector<32x64xbf16>, vector<2x64xf32> -> vector<2x64xf32>
    %cst_49 = arith.constant 0.000000e+00 : f32
    %57 = vector.broadcast %cst_49 : f32 to vector<2xf32>
    %cst_50 = arith.constant 0.000000e+00 : f32
    %58 = vector.broadcast %cst_50 : f32 to vector<2xf32>
    %59 = vector.extract_strided_slice %28 {offsets = [0, 0, 0], sizes = [1, 2, 1], strides = [1, 1, 1]} : vector<7x2x1xf32> to vector<1x2x1xf32>
    %60 = vector.shape_cast %59 : vector<1x2x1xf32> to vector<2x1xf32>
    %61 = vector.extract_strided_slice %56 {offsets = [0, 0], sizes = [2, 32], strides = [1, 1]} : vector<2x64xf32> to vector<2x32xf32>
    %62 = vector.broadcast %60 : vector<2x1xf32> to vector<2x32xf32>
    %63 = vector.broadcast %11 : vector<1x32xf32> to vector<2x32xf32>
    %64 = arith.mulf %62, %63 : vector<2x32xf32>
    %65 = arith.addf %61, %64 : vector<2x32xf32>
    %66 = vector.broadcast %12 : vector<1x32xf32> to vector<2x32xf32>
    %67 = arith.addf %65, %66 : vector<2x32xf32>
    %cst_51 = arith.constant 0.000000e+00 : f32
    %68 = vector.broadcast %cst_51 : f32 to vector<2x32xf32>
    %69 = arith.maximumf %67, %68 : vector<2x32xf32>
    %70 = tpu.concatenate %69, %42 in 1 : vector<2x32xf32>, vector<2x32xf32> -> vector<2x64xf32>
    %71 = arith.truncf %70 : vector<2x64xf32> to vector<2x64xbf16>
    %cst_52 = arith.constant dense<0.000000e+00> : vector<2x128xf32>
    %72 = tpu.matmul %71, %14, %cst_52 {dimension_numbers = #tpu.dot_dimension_numbers<[1], [0], [0], [1], [0, 0, 1, 1], [], []>} : vector<2x64xbf16>, vector<64x128xbf16>, vector<2x128xf32> -> vector<2x128xf32>
    %73 = vector.broadcast %15 : vector<1x128xf32> to vector<2x128xf32>
    %74 = arith.addf %72, %73 : vector<2x128xf32>
    %75 = vector.extract_strided_slice %74 {offsets = [0, 0], sizes = [2, 32], strides = [1, 1]} : vector<2x128xf32> to vector<2x32xf32>
    %76 = arith.negf %75 : vector<2x32xf32>
    %77 = math.exp %76 : vector<2x32xf32>
    %cst_53 = arith.constant 1.000000e+00 : f32
    %78 = vector.broadcast %cst_53 : f32 to vector<2x32xf32>
    %79 = arith.addf %78, %77 : vector<2x32xf32>
    %80 = arith.divf %78, %79 : vector<2x32xf32>
    %81 = vector.extract_strided_slice %74 {offsets = [0, 32], sizes = [2, 32], strides = [1, 1]} : vector<2x128xf32> to vector<2x32xf32>
    %82 = arith.negf %81 : vector<2x32xf32>
    %83 = math.exp %82 : vector<2x32xf32>
    %cst_54 = arith.constant 1.000000e+00 : f32
    %84 = vector.broadcast %cst_54 : f32 to vector<2x32xf32>
    %85 = arith.addf %84, %83 : vector<2x32xf32>
    %86 = arith.divf %84, %85 : vector<2x32xf32>
    %87 = vector.extract_strided_slice %74 {offsets = [0, 64], sizes = [2, 32], strides = [1, 1]} : vector<2x128xf32> to vector<2x32xf32>
    %88 = math.tanh %87 : vector<2x32xf32>
    %89 = vector.extract_strided_slice %74 {offsets = [0, 96], sizes = [2, 32], strides = [1, 1]} : vector<2x128xf32> to vector<2x32xf32>
    %90 = arith.negf %89 : vector<2x32xf32>
    %91 = math.exp %90 : vector<2x32xf32>
    %cst_55 = arith.constant 1.000000e+00 : f32
    %92 = vector.broadcast %cst_55 : f32 to vector<2x32xf32>
    %93 = arith.addf %92, %91 : vector<2x32xf32>
    %94 = arith.divf %92, %93 : vector<2x32xf32>
    %95 = arith.mulf %86, %43 : vector<2x32xf32>
    %96 = arith.mulf %80, %88 : vector<2x32xf32>
    %97 = arith.addf %95, %96 : vector<2x32xf32>
    %98 = math.tanh %97 : vector<2x32xf32>
    %99 = arith.mulf %94, %98 : vector<2x32xf32>
    %100 = arith.truncf %99 : vector<2x32xf32> to vector<2x32xbf16>
    %cst_56 = arith.constant dense<0.000000e+00> : vector<2x128xf32>
    %101 = tpu.matmul %100, %7, %cst_56 {dimension_numbers = #tpu.dot_dimension_numbers<[1], [0], [0], [1], [0, 0, 1, 1], [], []>} : vector<2x32xbf16>, vector<32x128xbf16>, vector<2x128xf32> -> vector<2x128xf32>
    %102 = vector.broadcast %8 : vector<1x128xf32> to vector<2x128xf32>
    %103 = arith.addf %101, %102 : vector<2x128xf32>
    %104 = vector.extract_strided_slice %103 {offsets = [0, 0], sizes = [2, 32], strides = [1, 1]} : vector<2x128xf32> to vector<2x32xf32>
    %105 = vector.extract_strided_slice %103 {offsets = [0, 32], sizes = [2, 32], strides = [1, 1]} : vector<2x128xf32> to vector<2x32xf32>
    %106 = vector.extract_strided_slice %103 {offsets = [0, 64], sizes = [2, 32], strides = [1, 1]} : vector<2x128xf32> to vector<2x32xf32>
    %107 = vector.extract_strided_slice %103 {offsets = [0, 96], sizes = [2, 32], strides = [1, 1]} : vector<2x128xf32> to vector<2x32xf32>
    %108 = vector.extract_strided_slice %27 {offsets = [1, 0, 0], sizes = [1, 2, 4], strides = [1, 1, 1]} : vector<8x2x4xf32> to vector<1x2x4xf32>
    %109 = vector.shape_cast %108 : vector<1x2x4xf32> to vector<2x4xf32>
    %110 = arith.truncf %109 : vector<2x4xf32> to vector<2x4xbf16>
    %cst_57 = arith.constant dense<0.000000e+00> : vector<2x32xf32>
    %111 = tpu.matmul %110, %17, %cst_57 {dimension_numbers = #tpu.dot_dimension_numbers<[1], [0], [0], [1], [0, 0, 1, 1], [], []>} : vector<2x4xbf16>, vector<4x32xbf16>, vector<2x32xf32> -> vector<2x32xf32>
    %112 = arith.addf %106, %111 : vector<2x32xf32>
    %cst_58 = arith.constant 0.000000e+00 : f32
    %113 = vector.broadcast %cst_58 : f32 to vector<2x32xf32>
    %114 = arith.maximumf %112, %113 : vector<2x32xf32>
    %115 = arith.truncf %114 : vector<2x32xf32> to vector<2x32xbf16>
    %cst_59 = arith.constant dense<0.000000e+00> : vector<2x32xf32>
    %116 = tpu.matmul %115, %19, %cst_59 {dimension_numbers = #tpu.dot_dimension_numbers<[1], [0], [0], [1], [0, 0, 1, 1], [], []>} : vector<2x32xbf16>, vector<32x32xbf16>, vector<2x32xf32> -> vector<2x32xf32>
    %117 = vector.broadcast %20 : vector<1x32xf32> to vector<2x32xf32>
    %118 = arith.addf %116, %117 : vector<2x32xf32>
    %cst_60 = arith.constant 0.000000e+00 : f32
    %119 = vector.broadcast %cst_60 : f32 to vector<2x32xf32>
    %120 = arith.maximumf %118, %119 : vector<2x32xf32>
    %121 = arith.truncf %120 : vector<2x32xf32> to vector<2x32xbf16>
    %cst_61 = arith.constant dense<0.000000e+00> : vector<2x64xf32>
    %122 = tpu.matmul %121, %22, %cst_61 {dimension_numbers = #tpu.dot_dimension_numbers<[1], [0], [0], [1], [0, 0, 1, 1], [], []>} : vector<2x32xbf16>, vector<32x64xbf16>, vector<2x64xf32> -> vector<2x64xf32>
    %123 = vector.broadcast %23 : vector<1x64xf32> to vector<2x64xf32>
    %124 = arith.addf %122, %123 : vector<2x64xf32>
    %125 = vector.extract_strided_slice %124 {offsets = [0, 0], sizes = [2, 32], strides = [1, 1]} : vector<2x64xf32> to vector<2x32xf32>
    %126 = vector.extract_strided_slice %124 {offsets = [0, 32], sizes = [2, 32], strides = [1, 1]} : vector<2x64xf32> to vector<2x32xf32>
    %127 = math.exp %126 : vector<2x32xf32>
    %128 = vector.extract_strided_slice %29 {offsets = [1, 0, 0], sizes = [1, 2, 32], strides = [1, 1, 1]} : vector<8x2x32xf32> to vector<1x2x32xf32>
    %129 = vector.shape_cast %128 : vector<1x2x32xf32> to vector<2x32xf32>
    %130 = arith.mulf %127, %129 : vector<2x32xf32>
    %131 = arith.addf %125, %130 : vector<2x32xf32>
    %132 = arith.truncf %131 : vector<2x32xf32> to vector<2x32xbf16>
    %cst_62 = arith.constant dense<0.000000e+00> : vector<2x64xf32>
    %133 = tpu.matmul %132, %10, %cst_62 {dimension_numbers = #tpu.dot_dimension_numbers<[1], [0], [0], [1], [0, 0, 1, 1], [], []>} : vector<2x32xbf16>, vector<32x64xbf16>, vector<2x64xf32> -> vector<2x64xf32>
    %134 = arith.subf %126, %105 : vector<2x32xf32>
    %135 = arith.subf %125, %104 : vector<2x32xf32>
    %136 = arith.mulf %135, %135 : vector<2x32xf32>
    %cst_63 = arith.constant -2.000000e+00 : f32
    %137 = vector.broadcast %cst_63 : f32 to vector<2x32xf32>
    %138 = arith.mulf %137, %105 : vector<2x32xf32>
    %139 = math.exp %138 : vector<2x32xf32>
    %140 = arith.mulf %136, %139 : vector<2x32xf32>
    %cst_64 = arith.constant 2.000000e+00 : f32
    %141 = vector.broadcast %cst_64 : f32 to vector<2x32xf32>
    %142 = arith.mulf %141, %134 : vector<2x32xf32>
    %143 = math.exp %142 : vector<2x32xf32>
    %144 = arith.addf %143, %140 : vector<2x32xf32>
    %cst_65 = arith.constant 1.000000e+00 : f32
    %145 = vector.broadcast %cst_65 : f32 to vector<2x32xf32>
    %146 = arith.subf %144, %145 : vector<2x32xf32>
    %cst_66 = arith.constant 5.000000e-01 : f32
    %147 = vector.broadcast %cst_66 : f32 to vector<2x32xf32>
    %148 = arith.mulf %147, %146 : vector<2x32xf32>
    %149 = arith.subf %148, %134 : vector<2x32xf32>
    %cst_67 = arith.constant dense<0.000000e+00> : vector<2xf32>
    %150 = vector.multi_reduction <add>, %149, %cst_67 [1] : vector<2x32xf32> to vector<2xf32>
    %151 = arith.addf %57, %150 : vector<2xf32>
    %152 = vector.extract_strided_slice %133 {offsets = [0, 32], sizes = [2, 32], strides = [1, 1]} : vector<2x64xf32> to vector<2x32xf32>
    %153 = arith.addf %152, %107 : vector<2x32xf32>
    %cst_68 = arith.constant 0.000000e+00 : f32
    %154 = vector.broadcast %cst_68 : f32 to vector<2x32xf32>
    %155 = arith.maximumf %153, %154 : vector<2x32xf32>
    %156 = arith.truncf %155 : vector<2x32xf32> to vector<2x32xbf16>
    %cst_69 = arith.constant dense<0.000000e+00> : vector<2x8xf32>
    %157 = tpu.matmul %156, %25, %cst_69 {dimension_numbers = #tpu.dot_dimension_numbers<[1], [0], [0], [1], [0, 0, 1, 1], [], []>} : vector<2x32xbf16>, vector<32x8xbf16>, vector<2x8xf32> -> vector<2x8xf32>
    %158 = vector.broadcast %26 : vector<1x8xf32> to vector<2x8xf32>
    %159 = arith.addf %157, %158 : vector<2x8xf32>
    %160 = vector.extract_strided_slice %159 {offsets = [0, 0], sizes = [2, 4], strides = [1, 1]} : vector<2x8xf32> to vector<2x4xf32>
    %161 = vector.extract_strided_slice %159 {offsets = [0, 4], sizes = [2, 4], strides = [1, 1]} : vector<2x8xf32> to vector<2x4xf32>
    %162 = arith.subf %109, %160 : vector<2x4xf32>
    %cst_70 = arith.constant dense<0.000000e+00> : vector<2xf32>
    %163 = vector.multi_reduction <add>, %161, %cst_70 [1] : vector<2x4xf32> to vector<2xf32>
    %cst_71 = arith.constant -3.67575407 : f32
    %164 = vector.broadcast %cst_71 : f32 to vector<2xf32>
    %165 = arith.subf %164, %163 : vector<2xf32>
    %166 = arith.mulf %162, %162 : vector<2x4xf32>
    %cst_72 = arith.constant -2.000000e+00 : f32
    %167 = vector.broadcast %cst_72 : f32 to vector<2x4xf32>
    %168 = arith.mulf %167, %161 : vector<2x4xf32>
    %169 = math.exp %168 : vector<2x4xf32>
    %170 = arith.mulf %166, %169 : vector<2x4xf32>
    %cst_73 = arith.constant dense<0.000000e+00> : vector<2xf32>
    %171 = vector.multi_reduction <add>, %170, %cst_73 [1] : vector<2x4xf32> to vector<2xf32>
    %cst_74 = arith.constant 5.000000e-01 : f32
    %172 = vector.broadcast %cst_74 : f32 to vector<2xf32>
    %173 = arith.mulf %172, %171 : vector<2xf32>
    %174 = arith.subf %165, %173 : vector<2xf32>
    %175 = arith.addf %58, %174 : vector<2xf32>
    %176 = vector.extract_strided_slice %28 {offsets = [1, 0, 0], sizes = [1, 2, 1], strides = [1, 1, 1]} : vector<7x2x1xf32> to vector<1x2x1xf32>
    %177 = vector.shape_cast %176 : vector<1x2x1xf32> to vector<2x1xf32>
    %178 = vector.extract_strided_slice %133 {offsets = [0, 0], sizes = [2, 32], strides = [1, 1]} : vector<2x64xf32> to vector<2x32xf32>
    %179 = vector.broadcast %177 : vector<2x1xf32> to vector<2x32xf32>
    %180 = vector.broadcast %11 : vector<1x32xf32> to vector<2x32xf32>
    %181 = arith.mulf %179, %180 : vector<2x32xf32>
    %182 = arith.addf %178, %181 : vector<2x32xf32>
    %183 = vector.broadcast %12 : vector<1x32xf32> to vector<2x32xf32>
    %184 = arith.addf %182, %183 : vector<2x32xf32>
    %cst_75 = arith.constant 0.000000e+00 : f32
    %185 = vector.broadcast %cst_75 : f32 to vector<2x32xf32>
    %186 = arith.maximumf %184, %185 : vector<2x32xf32>
    %187 = tpu.concatenate %186, %99 in 1 : vector<2x32xf32>, vector<2x32xf32> -> vector<2x64xf32>
    %188 = arith.truncf %187 : vector<2x64xf32> to vector<2x64xbf16>
    %cst_76 = arith.constant dense<0.000000e+00> : vector<2x128xf32>
    %189 = tpu.matmul %188, %14, %cst_76 {dimension_numbers = #tpu.dot_dimension_numbers<[1], [0], [0], [1], [0, 0, 1, 1], [], []>} : vector<2x64xbf16>, vector<64x128xbf16>, vector<2x128xf32> -> vector<2x128xf32>
    %190 = vector.broadcast %15 : vector<1x128xf32> to vector<2x128xf32>
    %191 = arith.addf %189, %190 : vector<2x128xf32>
    %192 = vector.extract_strided_slice %191 {offsets = [0, 0], sizes = [2, 32], strides = [1, 1]} : vector<2x128xf32> to vector<2x32xf32>
    %193 = arith.negf %192 : vector<2x32xf32>
    %194 = math.exp %193 : vector<2x32xf32>
    %cst_77 = arith.constant 1.000000e+00 : f32
    %195 = vector.broadcast %cst_77 : f32 to vector<2x32xf32>
    %196 = arith.addf %195, %194 : vector<2x32xf32>
    %197 = arith.divf %195, %196 : vector<2x32xf32>
    %198 = vector.extract_strided_slice %191 {offsets = [0, 32], sizes = [2, 32], strides = [1, 1]} : vector<2x128xf32> to vector<2x32xf32>
    %199 = arith.negf %198 : vector<2x32xf32>
    %200 = math.exp %199 : vector<2x32xf32>
    %cst_78 = arith.constant 1.000000e+00 : f32
    %201 = vector.broadcast %cst_78 : f32 to vector<2x32xf32>
    %202 = arith.addf %201, %200 : vector<2x32xf32>
    %203 = arith.divf %201, %202 : vector<2x32xf32>
    %204 = vector.extract_strided_slice %191 {offsets = [0, 64], sizes = [2, 32], strides = [1, 1]} : vector<2x128xf32> to vector<2x32xf32>
    %205 = math.tanh %204 : vector<2x32xf32>
    %206 = vector.extract_strided_slice %191 {offsets = [0, 96], sizes = [2, 32], strides = [1, 1]} : vector<2x128xf32> to vector<2x32xf32>
    %207 = arith.negf %206 : vector<2x32xf32>
    %208 = math.exp %207 : vector<2x32xf32>
    %cst_79 = arith.constant 1.000000e+00 : f32
    %209 = vector.broadcast %cst_79 : f32 to vector<2x32xf32>
    %210 = arith.addf %209, %208 : vector<2x32xf32>
    %211 = arith.divf %209, %210 : vector<2x32xf32>
    %212 = arith.mulf %203, %97 : vector<2x32xf32>
    %213 = arith.mulf %197, %205 : vector<2x32xf32>
    %214 = arith.addf %212, %213 : vector<2x32xf32>
    %215 = math.tanh %214 : vector<2x32xf32>
    %216 = arith.mulf %211, %215 : vector<2x32xf32>
    %217 = arith.truncf %216 : vector<2x32xf32> to vector<2x32xbf16>
    %cst_80 = arith.constant dense<0.000000e+00> : vector<2x128xf32>
    %218 = tpu.matmul %217, %7, %cst_80 {dimension_numbers = #tpu.dot_dimension_numbers<[1], [0], [0], [1], [0, 0, 1, 1], [], []>} : vector<2x32xbf16>, vector<32x128xbf16>, vector<2x128xf32> -> vector<2x128xf32>
    %219 = vector.broadcast %8 : vector<1x128xf32> to vector<2x128xf32>
    %220 = arith.addf %218, %219 : vector<2x128xf32>
    %221 = vector.extract_strided_slice %220 {offsets = [0, 0], sizes = [2, 32], strides = [1, 1]} : vector<2x128xf32> to vector<2x32xf32>
    %222 = vector.extract_strided_slice %220 {offsets = [0, 32], sizes = [2, 32], strides = [1, 1]} : vector<2x128xf32> to vector<2x32xf32>
    %223 = vector.extract_strided_slice %220 {offsets = [0, 64], sizes = [2, 32], strides = [1, 1]} : vector<2x128xf32> to vector<2x32xf32>
    %224 = vector.extract_strided_slice %220 {offsets = [0, 96], sizes = [2, 32], strides = [1, 1]} : vector<2x128xf32> to vector<2x32xf32>
    %225 = vector.extract_strided_slice %27 {offsets = [2, 0, 0], sizes = [1, 2, 4], strides = [1, 1, 1]} : vector<8x2x4xf32> to vector<1x2x4xf32>
    %226 = vector.shape_cast %225 : vector<1x2x4xf32> to vector<2x4xf32>
    %227 = arith.truncf %226 : vector<2x4xf32> to vector<2x4xbf16>
    %cst_81 = arith.constant dense<0.000000e+00> : vector<2x32xf32>
    %228 = tpu.matmul %227, %17, %cst_81 {dimension_numbers = #tpu.dot_dimension_numbers<[1], [0], [0], [1], [0, 0, 1, 1], [], []>} : vector<2x4xbf16>, vector<4x32xbf16>, vector<2x32xf32> -> vector<2x32xf32>
    %229 = arith.addf %223, %228 : vector<2x32xf32>
    %cst_82 = arith.constant 0.000000e+00 : f32
    %230 = vector.broadcast %cst_82 : f32 to vector<2x32xf32>
    %231 = arith.maximumf %229, %230 : vector<2x32xf32>
    %232 = arith.truncf %231 : vector<2x32xf32> to vector<2x32xbf16>
    %cst_83 = arith.constant dense<0.000000e+00> : vector<2x32xf32>
    %233 = tpu.matmul %232, %19, %cst_83 {dimension_numbers = #tpu.dot_dimension_numbers<[1], [0], [0], [1], [0, 0, 1, 1], [], []>} : vector<2x32xbf16>, vector<32x32xbf16>, vector<2x32xf32> -> vector<2x32xf32>
    %234 = vector.broadcast %20 : vector<1x32xf32> to vector<2x32xf32>
    %235 = arith.addf %233, %234 : vector<2x32xf32>
    %cst_84 = arith.constant 0.000000e+00 : f32
    %236 = vector.broadcast %cst_84 : f32 to vector<2x32xf32>
    %237 = arith.maximumf %235, %236 : vector<2x32xf32>
    %238 = arith.truncf %237 : vector<2x32xf32> to vector<2x32xbf16>
    %cst_85 = arith.constant dense<0.000000e+00> : vector<2x64xf32>
    %239 = tpu.matmul %238, %22, %cst_85 {dimension_numbers = #tpu.dot_dimension_numbers<[1], [0], [0], [1], [0, 0, 1, 1], [], []>} : vector<2x32xbf16>, vector<32x64xbf16>, vector<2x64xf32> -> vector<2x64xf32>
    %240 = vector.broadcast %23 : vector<1x64xf32> to vector<2x64xf32>
    %241 = arith.addf %239, %240 : vector<2x64xf32>
    %242 = vector.extract_strided_slice %241 {offsets = [0, 0], sizes = [2, 32], strides = [1, 1]} : vector<2x64xf32> to vector<2x32xf32>
    %243 = vector.extract_strided_slice %241 {offsets = [0, 32], sizes = [2, 32], strides = [1, 1]} : vector<2x64xf32> to vector<2x32xf32>
    %244 = math.exp %243 : vector<2x32xf32>
    %245 = vector.extract_strided_slice %29 {offsets = [2, 0, 0], sizes = [1, 2, 32], strides = [1, 1, 1]} : vector<8x2x32xf32> to vector<1x2x32xf32>
    %246 = vector.shape_cast %245 : vector<1x2x32xf32> to vector<2x32xf32>
    %247 = arith.mulf %244, %246 : vector<2x32xf32>
    %248 = arith.addf %242, %247 : vector<2x32xf32>
    %249 = arith.truncf %248 : vector<2x32xf32> to vector<2x32xbf16>
    %cst_86 = arith.constant dense<0.000000e+00> : vector<2x64xf32>
    %250 = tpu.matmul %249, %10, %cst_86 {dimension_numbers = #tpu.dot_dimension_numbers<[1], [0], [0], [1], [0, 0, 1, 1], [], []>} : vector<2x32xbf16>, vector<32x64xbf16>, vector<2x64xf32> -> vector<2x64xf32>
    %251 = arith.subf %243, %222 : vector<2x32xf32>
    %252 = arith.subf %242, %221 : vector<2x32xf32>
    %253 = arith.mulf %252, %252 : vector<2x32xf32>
    %cst_87 = arith.constant -2.000000e+00 : f32
    %254 = vector.broadcast %cst_87 : f32 to vector<2x32xf32>
    %255 = arith.mulf %254, %222 : vector<2x32xf32>
    %256 = math.exp %255 : vector<2x32xf32>
    %257 = arith.mulf %253, %256 : vector<2x32xf32>
    %cst_88 = arith.constant 2.000000e+00 : f32
    %258 = vector.broadcast %cst_88 : f32 to vector<2x32xf32>
    %259 = arith.mulf %258, %251 : vector<2x32xf32>
    %260 = math.exp %259 : vector<2x32xf32>
    %261 = arith.addf %260, %257 : vector<2x32xf32>
    %cst_89 = arith.constant 1.000000e+00 : f32
    %262 = vector.broadcast %cst_89 : f32 to vector<2x32xf32>
    %263 = arith.subf %261, %262 : vector<2x32xf32>
    %cst_90 = arith.constant 5.000000e-01 : f32
    %264 = vector.broadcast %cst_90 : f32 to vector<2x32xf32>
    %265 = arith.mulf %264, %263 : vector<2x32xf32>
    %266 = arith.subf %265, %251 : vector<2x32xf32>
    %cst_91 = arith.constant dense<0.000000e+00> : vector<2xf32>
    %267 = vector.multi_reduction <add>, %266, %cst_91 [1] : vector<2x32xf32> to vector<2xf32>
    %268 = arith.addf %151, %267 : vector<2xf32>
    %269 = vector.extract_strided_slice %250 {offsets = [0, 32], sizes = [2, 32], strides = [1, 1]} : vector<2x64xf32> to vector<2x32xf32>
    %270 = arith.addf %269, %224 : vector<2x32xf32>
    %cst_92 = arith.constant 0.000000e+00 : f32
    %271 = vector.broadcast %cst_92 : f32 to vector<2x32xf32>
    %272 = arith.maximumf %270, %271 : vector<2x32xf32>
    %273 = arith.truncf %272 : vector<2x32xf32> to vector<2x32xbf16>
    %cst_93 = arith.constant dense<0.000000e+00> : vector<2x8xf32>
    %274 = tpu.matmul %273, %25, %cst_93 {dimension_numbers = #tpu.dot_dimension_numbers<[1], [0], [0], [1], [0, 0, 1, 1], [], []>} : vector<2x32xbf16>, vector<32x8xbf16>, vector<2x8xf32> -> vector<2x8xf32>
    %275 = vector.broadcast %26 : vector<1x8xf32> to vector<2x8xf32>
    %276 = arith.addf %274, %275 : vector<2x8xf32>
    %277 = vector.extract_strided_slice %276 {offsets = [0, 0], sizes = [2, 4], strides = [1, 1]} : vector<2x8xf32> to vector<2x4xf32>
    %278 = vector.extract_strided_slice %276 {offsets = [0, 4], sizes = [2, 4], strides = [1, 1]} : vector<2x8xf32> to vector<2x4xf32>
    %279 = arith.subf %226, %277 : vector<2x4xf32>
    %cst_94 = arith.constant dense<0.000000e+00> : vector<2xf32>
    %280 = vector.multi_reduction <add>, %278, %cst_94 [1] : vector<2x4xf32> to vector<2xf32>
    %cst_95 = arith.constant -3.67575407 : f32
    %281 = vector.broadcast %cst_95 : f32 to vector<2xf32>
    %282 = arith.subf %281, %280 : vector<2xf32>
    %283 = arith.mulf %279, %279 : vector<2x4xf32>
    %cst_96 = arith.constant -2.000000e+00 : f32
    %284 = vector.broadcast %cst_96 : f32 to vector<2x4xf32>
    %285 = arith.mulf %284, %278 : vector<2x4xf32>
    %286 = math.exp %285 : vector<2x4xf32>
    %287 = arith.mulf %283, %286 : vector<2x4xf32>
    %cst_97 = arith.constant dense<0.000000e+00> : vector<2xf32>
    %288 = vector.multi_reduction <add>, %287, %cst_97 [1] : vector<2x4xf32> to vector<2xf32>
    %cst_98 = arith.constant 5.000000e-01 : f32
    %289 = vector.broadcast %cst_98 : f32 to vector<2xf32>
    %290 = arith.mulf %289, %288 : vector<2xf32>
    %291 = arith.subf %282, %290 : vector<2xf32>
    %292 = arith.addf %175, %291 : vector<2xf32>
    %293 = vector.extract_strided_slice %28 {offsets = [2, 0, 0], sizes = [1, 2, 1], strides = [1, 1, 1]} : vector<7x2x1xf32> to vector<1x2x1xf32>
    %294 = vector.shape_cast %293 : vector<1x2x1xf32> to vector<2x1xf32>
    %295 = vector.extract_strided_slice %250 {offsets = [0, 0], sizes = [2, 32], strides = [1, 1]} : vector<2x64xf32> to vector<2x32xf32>
    %296 = vector.broadcast %294 : vector<2x1xf32> to vector<2x32xf32>
    %297 = vector.broadcast %11 : vector<1x32xf32> to vector<2x32xf32>
    %298 = arith.mulf %296, %297 : vector<2x32xf32>
    %299 = arith.addf %295, %298 : vector<2x32xf32>
    %300 = vector.broadcast %12 : vector<1x32xf32> to vector<2x32xf32>
    %301 = arith.addf %299, %300 : vector<2x32xf32>
    %cst_99 = arith.constant 0.000000e+00 : f32
    %302 = vector.broadcast %cst_99 : f32 to vector<2x32xf32>
    %303 = arith.maximumf %301, %302 : vector<2x32xf32>
    %304 = tpu.concatenate %303, %216 in 1 : vector<2x32xf32>, vector<2x32xf32> -> vector<2x64xf32>
    %305 = arith.truncf %304 : vector<2x64xf32> to vector<2x64xbf16>
    %cst_100 = arith.constant dense<0.000000e+00> : vector<2x128xf32>
    %306 = tpu.matmul %305, %14, %cst_100 {dimension_numbers = #tpu.dot_dimension_numbers<[1], [0], [0], [1], [0, 0, 1, 1], [], []>} : vector<2x64xbf16>, vector<64x128xbf16>, vector<2x128xf32> -> vector<2x128xf32>
    %307 = vector.broadcast %15 : vector<1x128xf32> to vector<2x128xf32>
    %308 = arith.addf %306, %307 : vector<2x128xf32>
    %309 = vector.extract_strided_slice %308 {offsets = [0, 0], sizes = [2, 32], strides = [1, 1]} : vector<2x128xf32> to vector<2x32xf32>
    %310 = arith.negf %309 : vector<2x32xf32>
    %311 = math.exp %310 : vector<2x32xf32>
    %cst_101 = arith.constant 1.000000e+00 : f32
    %312 = vector.broadcast %cst_101 : f32 to vector<2x32xf32>
    %313 = arith.addf %312, %311 : vector<2x32xf32>
    %314 = arith.divf %312, %313 : vector<2x32xf32>
    %315 = vector.extract_strided_slice %308 {offsets = [0, 32], sizes = [2, 32], strides = [1, 1]} : vector<2x128xf32> to vector<2x32xf32>
    %316 = arith.negf %315 : vector<2x32xf32>
    %317 = math.exp %316 : vector<2x32xf32>
    %cst_102 = arith.constant 1.000000e+00 : f32
    %318 = vector.broadcast %cst_102 : f32 to vector<2x32xf32>
    %319 = arith.addf %318, %317 : vector<2x32xf32>
    %320 = arith.divf %318, %319 : vector<2x32xf32>
    %321 = vector.extract_strided_slice %308 {offsets = [0, 64], sizes = [2, 32], strides = [1, 1]} : vector<2x128xf32> to vector<2x32xf32>
    %322 = math.tanh %321 : vector<2x32xf32>
    %323 = vector.extract_strided_slice %308 {offsets = [0, 96], sizes = [2, 32], strides = [1, 1]} : vector<2x128xf32> to vector<2x32xf32>
    %324 = arith.negf %323 : vector<2x32xf32>
    %325 = math.exp %324 : vector<2x32xf32>
    %cst_103 = arith.constant 1.000000e+00 : f32
    %326 = vector.broadcast %cst_103 : f32 to vector<2x32xf32>
    %327 = arith.addf %326, %325 : vector<2x32xf32>
    %328 = arith.divf %326, %327 : vector<2x32xf32>
    %329 = arith.mulf %320, %214 : vector<2x32xf32>
    %330 = arith.mulf %314, %322 : vector<2x32xf32>
    %331 = arith.addf %329, %330 : vector<2x32xf32>
    %332 = math.tanh %331 : vector<2x32xf32>
    %333 = arith.mulf %328, %332 : vector<2x32xf32>
    %334 = arith.truncf %333 : vector<2x32xf32> to vector<2x32xbf16>
    %cst_104 = arith.constant dense<0.000000e+00> : vector<2x128xf32>
    %335 = tpu.matmul %334, %7, %cst_104 {dimension_numbers = #tpu.dot_dimension_numbers<[1], [0], [0], [1], [0, 0, 1, 1], [], []>} : vector<2x32xbf16>, vector<32x128xbf16>, vector<2x128xf32> -> vector<2x128xf32>
    %336 = vector.broadcast %8 : vector<1x128xf32> to vector<2x128xf32>
    %337 = arith.addf %335, %336 : vector<2x128xf32>
    %338 = vector.extract_strided_slice %337 {offsets = [0, 0], sizes = [2, 32], strides = [1, 1]} : vector<2x128xf32> to vector<2x32xf32>
    %339 = vector.extract_strided_slice %337 {offsets = [0, 32], sizes = [2, 32], strides = [1, 1]} : vector<2x128xf32> to vector<2x32xf32>
    %340 = vector.extract_strided_slice %337 {offsets = [0, 64], sizes = [2, 32], strides = [1, 1]} : vector<2x128xf32> to vector<2x32xf32>
    %341 = vector.extract_strided_slice %337 {offsets = [0, 96], sizes = [2, 32], strides = [1, 1]} : vector<2x128xf32> to vector<2x32xf32>
    %342 = vector.extract_strided_slice %27 {offsets = [3, 0, 0], sizes = [1, 2, 4], strides = [1, 1, 1]} : vector<8x2x4xf32> to vector<1x2x4xf32>
    %343 = vector.shape_cast %342 : vector<1x2x4xf32> to vector<2x4xf32>
    %344 = arith.truncf %343 : vector<2x4xf32> to vector<2x4xbf16>
    %cst_105 = arith.constant dense<0.000000e+00> : vector<2x32xf32>
    %345 = tpu.matmul %344, %17, %cst_105 {dimension_numbers = #tpu.dot_dimension_numbers<[1], [0], [0], [1], [0, 0, 1, 1], [], []>} : vector<2x4xbf16>, vector<4x32xbf16>, vector<2x32xf32> -> vector<2x32xf32>
    %346 = arith.addf %340, %345 : vector<2x32xf32>
    %cst_106 = arith.constant 0.000000e+00 : f32
    %347 = vector.broadcast %cst_106 : f32 to vector<2x32xf32>
    %348 = arith.maximumf %346, %347 : vector<2x32xf32>
    %349 = arith.truncf %348 : vector<2x32xf32> to vector<2x32xbf16>
    %cst_107 = arith.constant dense<0.000000e+00> : vector<2x32xf32>
    %350 = tpu.matmul %349, %19, %cst_107 {dimension_numbers = #tpu.dot_dimension_numbers<[1], [0], [0], [1], [0, 0, 1, 1], [], []>} : vector<2x32xbf16>, vector<32x32xbf16>, vector<2x32xf32> -> vector<2x32xf32>
    %351 = vector.broadcast %20 : vector<1x32xf32> to vector<2x32xf32>
    %352 = arith.addf %350, %351 : vector<2x32xf32>
    %cst_108 = arith.constant 0.000000e+00 : f32
    %353 = vector.broadcast %cst_108 : f32 to vector<2x32xf32>
    %354 = arith.maximumf %352, %353 : vector<2x32xf32>
    %355 = arith.truncf %354 : vector<2x32xf32> to vector<2x32xbf16>
    %cst_109 = arith.constant dense<0.000000e+00> : vector<2x64xf32>
    %356 = tpu.matmul %355, %22, %cst_109 {dimension_numbers = #tpu.dot_dimension_numbers<[1], [0], [0], [1], [0, 0, 1, 1], [], []>} : vector<2x32xbf16>, vector<32x64xbf16>, vector<2x64xf32> -> vector<2x64xf32>
    %357 = vector.broadcast %23 : vector<1x64xf32> to vector<2x64xf32>
    %358 = arith.addf %356, %357 : vector<2x64xf32>
    %359 = vector.extract_strided_slice %358 {offsets = [0, 0], sizes = [2, 32], strides = [1, 1]} : vector<2x64xf32> to vector<2x32xf32>
    %360 = vector.extract_strided_slice %358 {offsets = [0, 32], sizes = [2, 32], strides = [1, 1]} : vector<2x64xf32> to vector<2x32xf32>
    %361 = math.exp %360 : vector<2x32xf32>
    %362 = vector.extract_strided_slice %29 {offsets = [3, 0, 0], sizes = [1, 2, 32], strides = [1, 1, 1]} : vector<8x2x32xf32> to vector<1x2x32xf32>
    %363 = vector.shape_cast %362 : vector<1x2x32xf32> to vector<2x32xf32>
    %364 = arith.mulf %361, %363 : vector<2x32xf32>
    %365 = arith.addf %359, %364 : vector<2x32xf32>
    %366 = arith.truncf %365 : vector<2x32xf32> to vector<2x32xbf16>
    %cst_110 = arith.constant dense<0.000000e+00> : vector<2x64xf32>
    %367 = tpu.matmul %366, %10, %cst_110 {dimension_numbers = #tpu.dot_dimension_numbers<[1], [0], [0], [1], [0, 0, 1, 1], [], []>} : vector<2x32xbf16>, vector<32x64xbf16>, vector<2x64xf32> -> vector<2x64xf32>
    %368 = arith.subf %360, %339 : vector<2x32xf32>
    %369 = arith.subf %359, %338 : vector<2x32xf32>
    %370 = arith.mulf %369, %369 : vector<2x32xf32>
    %cst_111 = arith.constant -2.000000e+00 : f32
    %371 = vector.broadcast %cst_111 : f32 to vector<2x32xf32>
    %372 = arith.mulf %371, %339 : vector<2x32xf32>
    %373 = math.exp %372 : vector<2x32xf32>
    %374 = arith.mulf %370, %373 : vector<2x32xf32>
    %cst_112 = arith.constant 2.000000e+00 : f32
    %375 = vector.broadcast %cst_112 : f32 to vector<2x32xf32>
    %376 = arith.mulf %375, %368 : vector<2x32xf32>
    %377 = math.exp %376 : vector<2x32xf32>
    %378 = arith.addf %377, %374 : vector<2x32xf32>
    %cst_113 = arith.constant 1.000000e+00 : f32
    %379 = vector.broadcast %cst_113 : f32 to vector<2x32xf32>
    %380 = arith.subf %378, %379 : vector<2x32xf32>
    %cst_114 = arith.constant 5.000000e-01 : f32
    %381 = vector.broadcast %cst_114 : f32 to vector<2x32xf32>
    %382 = arith.mulf %381, %380 : vector<2x32xf32>
    %383 = arith.subf %382, %368 : vector<2x32xf32>
    %cst_115 = arith.constant dense<0.000000e+00> : vector<2xf32>
    %384 = vector.multi_reduction <add>, %383, %cst_115 [1] : vector<2x32xf32> to vector<2xf32>
    %385 = arith.addf %268, %384 : vector<2xf32>
    %386 = vector.extract_strided_slice %367 {offsets = [0, 32], sizes = [2, 32], strides = [1, 1]} : vector<2x64xf32> to vector<2x32xf32>
    %387 = arith.addf %386, %341 : vector<2x32xf32>
    %cst_116 = arith.constant 0.000000e+00 : f32
    %388 = vector.broadcast %cst_116 : f32 to vector<2x32xf32>
    %389 = arith.maximumf %387, %388 : vector<2x32xf32>
    %390 = arith.truncf %389 : vector<2x32xf32> to vector<2x32xbf16>
    %cst_117 = arith.constant dense<0.000000e+00> : vector<2x8xf32>
    %391 = tpu.matmul %390, %25, %cst_117 {dimension_numbers = #tpu.dot_dimension_numbers<[1], [0], [0], [1], [0, 0, 1, 1], [], []>} : vector<2x32xbf16>, vector<32x8xbf16>, vector<2x8xf32> -> vector<2x8xf32>
    %392 = vector.broadcast %26 : vector<1x8xf32> to vector<2x8xf32>
    %393 = arith.addf %391, %392 : vector<2x8xf32>
    %394 = vector.extract_strided_slice %393 {offsets = [0, 0], sizes = [2, 4], strides = [1, 1]} : vector<2x8xf32> to vector<2x4xf32>
    %395 = vector.extract_strided_slice %393 {offsets = [0, 4], sizes = [2, 4], strides = [1, 1]} : vector<2x8xf32> to vector<2x4xf32>
    %396 = arith.subf %343, %394 : vector<2x4xf32>
    %cst_118 = arith.constant dense<0.000000e+00> : vector<2xf32>
    %397 = vector.multi_reduction <add>, %395, %cst_118 [1] : vector<2x4xf32> to vector<2xf32>
    %cst_119 = arith.constant -3.67575407 : f32
    %398 = vector.broadcast %cst_119 : f32 to vector<2xf32>
    %399 = arith.subf %398, %397 : vector<2xf32>
    %400 = arith.mulf %396, %396 : vector<2x4xf32>
    %cst_120 = arith.constant -2.000000e+00 : f32
    %401 = vector.broadcast %cst_120 : f32 to vector<2x4xf32>
    %402 = arith.mulf %401, %395 : vector<2x4xf32>
    %403 = math.exp %402 : vector<2x4xf32>
    %404 = arith.mulf %400, %403 : vector<2x4xf32>
    %cst_121 = arith.constant dense<0.000000e+00> : vector<2xf32>
    %405 = vector.multi_reduction <add>, %404, %cst_121 [1] : vector<2x4xf32> to vector<2xf32>
    %cst_122 = arith.constant 5.000000e-01 : f32
    %406 = vector.broadcast %cst_122 : f32 to vector<2xf32>
    %407 = arith.mulf %406, %405 : vector<2xf32>
    %408 = arith.subf %399, %407 : vector<2xf32>
    %409 = arith.addf %292, %408 : vector<2xf32>
    %410 = vector.extract_strided_slice %28 {offsets = [3, 0, 0], sizes = [1, 2, 1], strides = [1, 1, 1]} : vector<7x2x1xf32> to vector<1x2x1xf32>
    %411 = vector.shape_cast %410 : vector<1x2x1xf32> to vector<2x1xf32>
    %412 = vector.extract_strided_slice %367 {offsets = [0, 0], sizes = [2, 32], strides = [1, 1]} : vector<2x64xf32> to vector<2x32xf32>
    %413 = vector.broadcast %411 : vector<2x1xf32> to vector<2x32xf32>
    %414 = vector.broadcast %11 : vector<1x32xf32> to vector<2x32xf32>
    %415 = arith.mulf %413, %414 : vector<2x32xf32>
    %416 = arith.addf %412, %415 : vector<2x32xf32>
    %417 = vector.broadcast %12 : vector<1x32xf32> to vector<2x32xf32>
    %418 = arith.addf %416, %417 : vector<2x32xf32>
    %cst_123 = arith.constant 0.000000e+00 : f32
    %419 = vector.broadcast %cst_123 : f32 to vector<2x32xf32>
    %420 = arith.maximumf %418, %419 : vector<2x32xf32>
    %421 = tpu.concatenate %420, %333 in 1 : vector<2x32xf32>, vector<2x32xf32> -> vector<2x64xf32>
    %422 = arith.truncf %421 : vector<2x64xf32> to vector<2x64xbf16>
    %cst_124 = arith.constant dense<0.000000e+00> : vector<2x128xf32>
    %423 = tpu.matmul %422, %14, %cst_124 {dimension_numbers = #tpu.dot_dimension_numbers<[1], [0], [0], [1], [0, 0, 1, 1], [], []>} : vector<2x64xbf16>, vector<64x128xbf16>, vector<2x128xf32> -> vector<2x128xf32>
    %424 = vector.broadcast %15 : vector<1x128xf32> to vector<2x128xf32>
    %425 = arith.addf %423, %424 : vector<2x128xf32>
    %426 = vector.extract_strided_slice %425 {offsets = [0, 0], sizes = [2, 32], strides = [1, 1]} : vector<2x128xf32> to vector<2x32xf32>
    %427 = arith.negf %426 : vector<2x32xf32>
    %428 = math.exp %427 : vector<2x32xf32>
    %cst_125 = arith.constant 1.000000e+00 : f32
    %429 = vector.broadcast %cst_125 : f32 to vector<2x32xf32>
    %430 = arith.addf %429, %428 : vector<2x32xf32>
    %431 = arith.divf %429, %430 : vector<2x32xf32>
    %432 = vector.extract_strided_slice %425 {offsets = [0, 32], sizes = [2, 32], strides = [1, 1]} : vector<2x128xf32> to vector<2x32xf32>
    %433 = arith.negf %432 : vector<2x32xf32>
    %434 = math.exp %433 : vector<2x32xf32>
    %cst_126 = arith.constant 1.000000e+00 : f32
    %435 = vector.broadcast %cst_126 : f32 to vector<2x32xf32>
    %436 = arith.addf %435, %434 : vector<2x32xf32>
    %437 = arith.divf %435, %436 : vector<2x32xf32>
    %438 = vector.extract_strided_slice %425 {offsets = [0, 64], sizes = [2, 32], strides = [1, 1]} : vector<2x128xf32> to vector<2x32xf32>
    %439 = math.tanh %438 : vector<2x32xf32>
    %440 = vector.extract_strided_slice %425 {offsets = [0, 96], sizes = [2, 32], strides = [1, 1]} : vector<2x128xf32> to vector<2x32xf32>
    %441 = arith.negf %440 : vector<2x32xf32>
    %442 = math.exp %441 : vector<2x32xf32>
    %cst_127 = arith.constant 1.000000e+00 : f32
    %443 = vector.broadcast %cst_127 : f32 to vector<2x32xf32>
    %444 = arith.addf %443, %442 : vector<2x32xf32>
    %445 = arith.divf %443, %444 : vector<2x32xf32>
    %446 = arith.mulf %437, %331 : vector<2x32xf32>
    %447 = arith.mulf %431, %439 : vector<2x32xf32>
    %448 = arith.addf %446, %447 : vector<2x32xf32>
    %449 = math.tanh %448 : vector<2x32xf32>
    %450 = arith.mulf %445, %449 : vector<2x32xf32>
    %451 = arith.truncf %450 : vector<2x32xf32> to vector<2x32xbf16>
    %cst_128 = arith.constant dense<0.000000e+00> : vector<2x128xf32>
    %452 = tpu.matmul %451, %7, %cst_128 {dimension_numbers = #tpu.dot_dimension_numbers<[1], [0], [0], [1], [0, 0, 1, 1], [], []>} : vector<2x32xbf16>, vector<32x128xbf16>, vector<2x128xf32> -> vector<2x128xf32>
    %453 = vector.broadcast %8 : vector<1x128xf32> to vector<2x128xf32>
    %454 = arith.addf %452, %453 : vector<2x128xf32>
    %455 = vector.extract_strided_slice %454 {offsets = [0, 0], sizes = [2, 32], strides = [1, 1]} : vector<2x128xf32> to vector<2x32xf32>
    %456 = vector.extract_strided_slice %454 {offsets = [0, 32], sizes = [2, 32], strides = [1, 1]} : vector<2x128xf32> to vector<2x32xf32>
    %457 = vector.extract_strided_slice %454 {offsets = [0, 64], sizes = [2, 32], strides = [1, 1]} : vector<2x128xf32> to vector<2x32xf32>
    %458 = vector.extract_strided_slice %454 {offsets = [0, 96], sizes = [2, 32], strides = [1, 1]} : vector<2x128xf32> to vector<2x32xf32>
    %459 = vector.extract_strided_slice %27 {offsets = [4, 0, 0], sizes = [1, 2, 4], strides = [1, 1, 1]} : vector<8x2x4xf32> to vector<1x2x4xf32>
    %460 = vector.shape_cast %459 : vector<1x2x4xf32> to vector<2x4xf32>
    %461 = arith.truncf %460 : vector<2x4xf32> to vector<2x4xbf16>
    %cst_129 = arith.constant dense<0.000000e+00> : vector<2x32xf32>
    %462 = tpu.matmul %461, %17, %cst_129 {dimension_numbers = #tpu.dot_dimension_numbers<[1], [0], [0], [1], [0, 0, 1, 1], [], []>} : vector<2x4xbf16>, vector<4x32xbf16>, vector<2x32xf32> -> vector<2x32xf32>
    %463 = arith.addf %457, %462 : vector<2x32xf32>
    %cst_130 = arith.constant 0.000000e+00 : f32
    %464 = vector.broadcast %cst_130 : f32 to vector<2x32xf32>
    %465 = arith.maximumf %463, %464 : vector<2x32xf32>
    %466 = arith.truncf %465 : vector<2x32xf32> to vector<2x32xbf16>
    %cst_131 = arith.constant dense<0.000000e+00> : vector<2x32xf32>
    %467 = tpu.matmul %466, %19, %cst_131 {dimension_numbers = #tpu.dot_dimension_numbers<[1], [0], [0], [1], [0, 0, 1, 1], [], []>} : vector<2x32xbf16>, vector<32x32xbf16>, vector<2x32xf32> -> vector<2x32xf32>
    %468 = vector.broadcast %20 : vector<1x32xf32> to vector<2x32xf32>
    %469 = arith.addf %467, %468 : vector<2x32xf32>
    %cst_132 = arith.constant 0.000000e+00 : f32
    %470 = vector.broadcast %cst_132 : f32 to vector<2x32xf32>
    %471 = arith.maximumf %469, %470 : vector<2x32xf32>
    %472 = arith.truncf %471 : vector<2x32xf32> to vector<2x32xbf16>
    %cst_133 = arith.constant dense<0.000000e+00> : vector<2x64xf32>
    %473 = tpu.matmul %472, %22, %cst_133 {dimension_numbers = #tpu.dot_dimension_numbers<[1], [0], [0], [1], [0, 0, 1, 1], [], []>} : vector<2x32xbf16>, vector<32x64xbf16>, vector<2x64xf32> -> vector<2x64xf32>
    %474 = vector.broadcast %23 : vector<1x64xf32> to vector<2x64xf32>
    %475 = arith.addf %473, %474 : vector<2x64xf32>
    %476 = vector.extract_strided_slice %475 {offsets = [0, 0], sizes = [2, 32], strides = [1, 1]} : vector<2x64xf32> to vector<2x32xf32>
    %477 = vector.extract_strided_slice %475 {offsets = [0, 32], sizes = [2, 32], strides = [1, 1]} : vector<2x64xf32> to vector<2x32xf32>
    %478 = math.exp %477 : vector<2x32xf32>
    %479 = vector.extract_strided_slice %29 {offsets = [4, 0, 0], sizes = [1, 2, 32], strides = [1, 1, 1]} : vector<8x2x32xf32> to vector<1x2x32xf32>
    %480 = vector.shape_cast %479 : vector<1x2x32xf32> to vector<2x32xf32>
    %481 = arith.mulf %478, %480 : vector<2x32xf32>
    %482 = arith.addf %476, %481 : vector<2x32xf32>
    %483 = arith.truncf %482 : vector<2x32xf32> to vector<2x32xbf16>
    %cst_134 = arith.constant dense<0.000000e+00> : vector<2x64xf32>
    %484 = tpu.matmul %483, %10, %cst_134 {dimension_numbers = #tpu.dot_dimension_numbers<[1], [0], [0], [1], [0, 0, 1, 1], [], []>} : vector<2x32xbf16>, vector<32x64xbf16>, vector<2x64xf32> -> vector<2x64xf32>
    %485 = arith.subf %477, %456 : vector<2x32xf32>
    %486 = arith.subf %476, %455 : vector<2x32xf32>
    %487 = arith.mulf %486, %486 : vector<2x32xf32>
    %cst_135 = arith.constant -2.000000e+00 : f32
    %488 = vector.broadcast %cst_135 : f32 to vector<2x32xf32>
    %489 = arith.mulf %488, %456 : vector<2x32xf32>
    %490 = math.exp %489 : vector<2x32xf32>
    %491 = arith.mulf %487, %490 : vector<2x32xf32>
    %cst_136 = arith.constant 2.000000e+00 : f32
    %492 = vector.broadcast %cst_136 : f32 to vector<2x32xf32>
    %493 = arith.mulf %492, %485 : vector<2x32xf32>
    %494 = math.exp %493 : vector<2x32xf32>
    %495 = arith.addf %494, %491 : vector<2x32xf32>
    %cst_137 = arith.constant 1.000000e+00 : f32
    %496 = vector.broadcast %cst_137 : f32 to vector<2x32xf32>
    %497 = arith.subf %495, %496 : vector<2x32xf32>
    %cst_138 = arith.constant 5.000000e-01 : f32
    %498 = vector.broadcast %cst_138 : f32 to vector<2x32xf32>
    %499 = arith.mulf %498, %497 : vector<2x32xf32>
    %500 = arith.subf %499, %485 : vector<2x32xf32>
    %cst_139 = arith.constant dense<0.000000e+00> : vector<2xf32>
    %501 = vector.multi_reduction <add>, %500, %cst_139 [1] : vector<2x32xf32> to vector<2xf32>
    %502 = arith.addf %385, %501 : vector<2xf32>
    %503 = vector.extract_strided_slice %484 {offsets = [0, 32], sizes = [2, 32], strides = [1, 1]} : vector<2x64xf32> to vector<2x32xf32>
    %504 = arith.addf %503, %458 : vector<2x32xf32>
    %cst_140 = arith.constant 0.000000e+00 : f32
    %505 = vector.broadcast %cst_140 : f32 to vector<2x32xf32>
    %506 = arith.maximumf %504, %505 : vector<2x32xf32>
    %507 = arith.truncf %506 : vector<2x32xf32> to vector<2x32xbf16>
    %cst_141 = arith.constant dense<0.000000e+00> : vector<2x8xf32>
    %508 = tpu.matmul %507, %25, %cst_141 {dimension_numbers = #tpu.dot_dimension_numbers<[1], [0], [0], [1], [0, 0, 1, 1], [], []>} : vector<2x32xbf16>, vector<32x8xbf16>, vector<2x8xf32> -> vector<2x8xf32>
    %509 = vector.broadcast %26 : vector<1x8xf32> to vector<2x8xf32>
    %510 = arith.addf %508, %509 : vector<2x8xf32>
    %511 = vector.extract_strided_slice %510 {offsets = [0, 0], sizes = [2, 4], strides = [1, 1]} : vector<2x8xf32> to vector<2x4xf32>
    %512 = vector.extract_strided_slice %510 {offsets = [0, 4], sizes = [2, 4], strides = [1, 1]} : vector<2x8xf32> to vector<2x4xf32>
    %513 = arith.subf %460, %511 : vector<2x4xf32>
    %cst_142 = arith.constant dense<0.000000e+00> : vector<2xf32>
    %514 = vector.multi_reduction <add>, %512, %cst_142 [1] : vector<2x4xf32> to vector<2xf32>
    %cst_143 = arith.constant -3.67575407 : f32
    %515 = vector.broadcast %cst_143 : f32 to vector<2xf32>
    %516 = arith.subf %515, %514 : vector<2xf32>
    %517 = arith.mulf %513, %513 : vector<2x4xf32>
    %cst_144 = arith.constant -2.000000e+00 : f32
    %518 = vector.broadcast %cst_144 : f32 to vector<2x4xf32>
    %519 = arith.mulf %518, %512 : vector<2x4xf32>
    %520 = math.exp %519 : vector<2x4xf32>
    %521 = arith.mulf %517, %520 : vector<2x4xf32>
    %cst_145 = arith.constant dense<0.000000e+00> : vector<2xf32>
    %522 = vector.multi_reduction <add>, %521, %cst_145 [1] : vector<2x4xf32> to vector<2xf32>
    %cst_146 = arith.constant 5.000000e-01 : f32
    %523 = vector.broadcast %cst_146 : f32 to vector<2xf32>
    %524 = arith.mulf %523, %522 : vector<2xf32>
    %525 = arith.subf %516, %524 : vector<2xf32>
    %526 = arith.addf %409, %525 : vector<2xf32>
    %527 = vector.extract_strided_slice %28 {offsets = [4, 0, 0], sizes = [1, 2, 1], strides = [1, 1, 1]} : vector<7x2x1xf32> to vector<1x2x1xf32>
    %528 = vector.shape_cast %527 : vector<1x2x1xf32> to vector<2x1xf32>
    %529 = vector.extract_strided_slice %484 {offsets = [0, 0], sizes = [2, 32], strides = [1, 1]} : vector<2x64xf32> to vector<2x32xf32>
    %530 = vector.broadcast %528 : vector<2x1xf32> to vector<2x32xf32>
    %531 = vector.broadcast %11 : vector<1x32xf32> to vector<2x32xf32>
    %532 = arith.mulf %530, %531 : vector<2x32xf32>
    %533 = arith.addf %529, %532 : vector<2x32xf32>
    %534 = vector.broadcast %12 : vector<1x32xf32> to vector<2x32xf32>
    %535 = arith.addf %533, %534 : vector<2x32xf32>
    %cst_147 = arith.constant 0.000000e+00 : f32
    %536 = vector.broadcast %cst_147 : f32 to vector<2x32xf32>
    %537 = arith.maximumf %535, %536 : vector<2x32xf32>
    %538 = tpu.concatenate %537, %450 in 1 : vector<2x32xf32>, vector<2x32xf32> -> vector<2x64xf32>
    %539 = arith.truncf %538 : vector<2x64xf32> to vector<2x64xbf16>
    %cst_148 = arith.constant dense<0.000000e+00> : vector<2x128xf32>
    %540 = tpu.matmul %539, %14, %cst_148 {dimension_numbers = #tpu.dot_dimension_numbers<[1], [0], [0], [1], [0, 0, 1, 1], [], []>} : vector<2x64xbf16>, vector<64x128xbf16>, vector<2x128xf32> -> vector<2x128xf32>
    %541 = vector.broadcast %15 : vector<1x128xf32> to vector<2x128xf32>
    %542 = arith.addf %540, %541 : vector<2x128xf32>
    %543 = vector.extract_strided_slice %542 {offsets = [0, 0], sizes = [2, 32], strides = [1, 1]} : vector<2x128xf32> to vector<2x32xf32>
    %544 = arith.negf %543 : vector<2x32xf32>
    %545 = math.exp %544 : vector<2x32xf32>
    %cst_149 = arith.constant 1.000000e+00 : f32
    %546 = vector.broadcast %cst_149 : f32 to vector<2x32xf32>
    %547 = arith.addf %546, %545 : vector<2x32xf32>
    %548 = arith.divf %546, %547 : vector<2x32xf32>
    %549 = vector.extract_strided_slice %542 {offsets = [0, 32], sizes = [2, 32], strides = [1, 1]} : vector<2x128xf32> to vector<2x32xf32>
    %550 = arith.negf %549 : vector<2x32xf32>
    %551 = math.exp %550 : vector<2x32xf32>
    %cst_150 = arith.constant 1.000000e+00 : f32
    %552 = vector.broadcast %cst_150 : f32 to vector<2x32xf32>
    %553 = arith.addf %552, %551 : vector<2x32xf32>
    %554 = arith.divf %552, %553 : vector<2x32xf32>
    %555 = vector.extract_strided_slice %542 {offsets = [0, 64], sizes = [2, 32], strides = [1, 1]} : vector<2x128xf32> to vector<2x32xf32>
    %556 = math.tanh %555 : vector<2x32xf32>
    %557 = vector.extract_strided_slice %542 {offsets = [0, 96], sizes = [2, 32], strides = [1, 1]} : vector<2x128xf32> to vector<2x32xf32>
    %558 = arith.negf %557 : vector<2x32xf32>
    %559 = math.exp %558 : vector<2x32xf32>
    %cst_151 = arith.constant 1.000000e+00 : f32
    %560 = vector.broadcast %cst_151 : f32 to vector<2x32xf32>
    %561 = arith.addf %560, %559 : vector<2x32xf32>
    %562 = arith.divf %560, %561 : vector<2x32xf32>
    %563 = arith.mulf %554, %448 : vector<2x32xf32>
    %564 = arith.mulf %548, %556 : vector<2x32xf32>
    %565 = arith.addf %563, %564 : vector<2x32xf32>
    %566 = math.tanh %565 : vector<2x32xf32>
    %567 = arith.mulf %562, %566 : vector<2x32xf32>
    %568 = arith.truncf %567 : vector<2x32xf32> to vector<2x32xbf16>
    %cst_152 = arith.constant dense<0.000000e+00> : vector<2x128xf32>
    %569 = tpu.matmul %568, %7, %cst_152 {dimension_numbers = #tpu.dot_dimension_numbers<[1], [0], [0], [1], [0, 0, 1, 1], [], []>} : vector<2x32xbf16>, vector<32x128xbf16>, vector<2x128xf32> -> vector<2x128xf32>
    %570 = vector.broadcast %8 : vector<1x128xf32> to vector<2x128xf32>
    %571 = arith.addf %569, %570 : vector<2x128xf32>
    %572 = vector.extract_strided_slice %571 {offsets = [0, 0], sizes = [2, 32], strides = [1, 1]} : vector<2x128xf32> to vector<2x32xf32>
    %573 = vector.extract_strided_slice %571 {offsets = [0, 32], sizes = [2, 32], strides = [1, 1]} : vector<2x128xf32> to vector<2x32xf32>
    %574 = vector.extract_strided_slice %571 {offsets = [0, 64], sizes = [2, 32], strides = [1, 1]} : vector<2x128xf32> to vector<2x32xf32>
    %575 = vector.extract_strided_slice %571 {offsets = [0, 96], sizes = [2, 32], strides = [1, 1]} : vector<2x128xf32> to vector<2x32xf32>
    %576 = vector.extract_strided_slice %27 {offsets = [5, 0, 0], sizes = [1, 2, 4], strides = [1, 1, 1]} : vector<8x2x4xf32> to vector<1x2x4xf32>
    %577 = vector.shape_cast %576 : vector<1x2x4xf32> to vector<2x4xf32>
    %578 = arith.truncf %577 : vector<2x4xf32> to vector<2x4xbf16>
    %cst_153 = arith.constant dense<0.000000e+00> : vector<2x32xf32>
    %579 = tpu.matmul %578, %17, %cst_153 {dimension_numbers = #tpu.dot_dimension_numbers<[1], [0], [0], [1], [0, 0, 1, 1], [], []>} : vector<2x4xbf16>, vector<4x32xbf16>, vector<2x32xf32> -> vector<2x32xf32>
    %580 = arith.addf %574, %579 : vector<2x32xf32>
    %cst_154 = arith.constant 0.000000e+00 : f32
    %581 = vector.broadcast %cst_154 : f32 to vector<2x32xf32>
    %582 = arith.maximumf %580, %581 : vector<2x32xf32>
    %583 = arith.truncf %582 : vector<2x32xf32> to vector<2x32xbf16>
    %cst_155 = arith.constant dense<0.000000e+00> : vector<2x32xf32>
    %584 = tpu.matmul %583, %19, %cst_155 {dimension_numbers = #tpu.dot_dimension_numbers<[1], [0], [0], [1], [0, 0, 1, 1], [], []>} : vector<2x32xbf16>, vector<32x32xbf16>, vector<2x32xf32> -> vector<2x32xf32>
    %585 = vector.broadcast %20 : vector<1x32xf32> to vector<2x32xf32>
    %586 = arith.addf %584, %585 : vector<2x32xf32>
    %cst_156 = arith.constant 0.000000e+00 : f32
    %587 = vector.broadcast %cst_156 : f32 to vector<2x32xf32>
    %588 = arith.maximumf %586, %587 : vector<2x32xf32>
    %589 = arith.truncf %588 : vector<2x32xf32> to vector<2x32xbf16>
    %cst_157 = arith.constant dense<0.000000e+00> : vector<2x64xf32>
    %590 = tpu.matmul %589, %22, %cst_157 {dimension_numbers = #tpu.dot_dimension_numbers<[1], [0], [0], [1], [0, 0, 1, 1], [], []>} : vector<2x32xbf16>, vector<32x64xbf16>, vector<2x64xf32> -> vector<2x64xf32>
    %591 = vector.broadcast %23 : vector<1x64xf32> to vector<2x64xf32>
    %592 = arith.addf %590, %591 : vector<2x64xf32>
    %593 = vector.extract_strided_slice %592 {offsets = [0, 0], sizes = [2, 32], strides = [1, 1]} : vector<2x64xf32> to vector<2x32xf32>
    %594 = vector.extract_strided_slice %592 {offsets = [0, 32], sizes = [2, 32], strides = [1, 1]} : vector<2x64xf32> to vector<2x32xf32>
    %595 = math.exp %594 : vector<2x32xf32>
    %596 = vector.extract_strided_slice %29 {offsets = [5, 0, 0], sizes = [1, 2, 32], strides = [1, 1, 1]} : vector<8x2x32xf32> to vector<1x2x32xf32>
    %597 = vector.shape_cast %596 : vector<1x2x32xf32> to vector<2x32xf32>
    %598 = arith.mulf %595, %597 : vector<2x32xf32>
    %599 = arith.addf %593, %598 : vector<2x32xf32>
    %600 = arith.truncf %599 : vector<2x32xf32> to vector<2x32xbf16>
    %cst_158 = arith.constant dense<0.000000e+00> : vector<2x64xf32>
    %601 = tpu.matmul %600, %10, %cst_158 {dimension_numbers = #tpu.dot_dimension_numbers<[1], [0], [0], [1], [0, 0, 1, 1], [], []>} : vector<2x32xbf16>, vector<32x64xbf16>, vector<2x64xf32> -> vector<2x64xf32>
    %602 = arith.subf %594, %573 : vector<2x32xf32>
    %603 = arith.subf %593, %572 : vector<2x32xf32>
    %604 = arith.mulf %603, %603 : vector<2x32xf32>
    %cst_159 = arith.constant -2.000000e+00 : f32
    %605 = vector.broadcast %cst_159 : f32 to vector<2x32xf32>
    %606 = arith.mulf %605, %573 : vector<2x32xf32>
    %607 = math.exp %606 : vector<2x32xf32>
    %608 = arith.mulf %604, %607 : vector<2x32xf32>
    %cst_160 = arith.constant 2.000000e+00 : f32
    %609 = vector.broadcast %cst_160 : f32 to vector<2x32xf32>
    %610 = arith.mulf %609, %602 : vector<2x32xf32>
    %611 = math.exp %610 : vector<2x32xf32>
    %612 = arith.addf %611, %608 : vector<2x32xf32>
    %cst_161 = arith.constant 1.000000e+00 : f32
    %613 = vector.broadcast %cst_161 : f32 to vector<2x32xf32>
    %614 = arith.subf %612, %613 : vector<2x32xf32>
    %cst_162 = arith.constant 5.000000e-01 : f32
    %615 = vector.broadcast %cst_162 : f32 to vector<2x32xf32>
    %616 = arith.mulf %615, %614 : vector<2x32xf32>
    %617 = arith.subf %616, %602 : vector<2x32xf32>
    %cst_163 = arith.constant dense<0.000000e+00> : vector<2xf32>
    %618 = vector.multi_reduction <add>, %617, %cst_163 [1] : vector<2x32xf32> to vector<2xf32>
    %619 = arith.addf %502, %618 : vector<2xf32>
    %620 = vector.extract_strided_slice %601 {offsets = [0, 32], sizes = [2, 32], strides = [1, 1]} : vector<2x64xf32> to vector<2x32xf32>
    %621 = arith.addf %620, %575 : vector<2x32xf32>
    %cst_164 = arith.constant 0.000000e+00 : f32
    %622 = vector.broadcast %cst_164 : f32 to vector<2x32xf32>
    %623 = arith.maximumf %621, %622 : vector<2x32xf32>
    %624 = arith.truncf %623 : vector<2x32xf32> to vector<2x32xbf16>
    %cst_165 = arith.constant dense<0.000000e+00> : vector<2x8xf32>
    %625 = tpu.matmul %624, %25, %cst_165 {dimension_numbers = #tpu.dot_dimension_numbers<[1], [0], [0], [1], [0, 0, 1, 1], [], []>} : vector<2x32xbf16>, vector<32x8xbf16>, vector<2x8xf32> -> vector<2x8xf32>
    %626 = vector.broadcast %26 : vector<1x8xf32> to vector<2x8xf32>
    %627 = arith.addf %625, %626 : vector<2x8xf32>
    %628 = vector.extract_strided_slice %627 {offsets = [0, 0], sizes = [2, 4], strides = [1, 1]} : vector<2x8xf32> to vector<2x4xf32>
    %629 = vector.extract_strided_slice %627 {offsets = [0, 4], sizes = [2, 4], strides = [1, 1]} : vector<2x8xf32> to vector<2x4xf32>
    %630 = arith.subf %577, %628 : vector<2x4xf32>
    %cst_166 = arith.constant dense<0.000000e+00> : vector<2xf32>
    %631 = vector.multi_reduction <add>, %629, %cst_166 [1] : vector<2x4xf32> to vector<2xf32>
    %cst_167 = arith.constant -3.67575407 : f32
    %632 = vector.broadcast %cst_167 : f32 to vector<2xf32>
    %633 = arith.subf %632, %631 : vector<2xf32>
    %634 = arith.mulf %630, %630 : vector<2x4xf32>
    %cst_168 = arith.constant -2.000000e+00 : f32
    %635 = vector.broadcast %cst_168 : f32 to vector<2x4xf32>
    %636 = arith.mulf %635, %629 : vector<2x4xf32>
    %637 = math.exp %636 : vector<2x4xf32>
    %638 = arith.mulf %634, %637 : vector<2x4xf32>
    %cst_169 = arith.constant dense<0.000000e+00> : vector<2xf32>
    %639 = vector.multi_reduction <add>, %638, %cst_169 [1] : vector<2x4xf32> to vector<2xf32>
    %cst_170 = arith.constant 5.000000e-01 : f32
    %640 = vector.broadcast %cst_170 : f32 to vector<2xf32>
    %641 = arith.mulf %640, %639 : vector<2xf32>
    %642 = arith.subf %633, %641 : vector<2xf32>
    %643 = arith.addf %526, %642 : vector<2xf32>
    %644 = vector.extract_strided_slice %28 {offsets = [5, 0, 0], sizes = [1, 2, 1], strides = [1, 1, 1]} : vector<7x2x1xf32> to vector<1x2x1xf32>
    %645 = vector.shape_cast %644 : vector<1x2x1xf32> to vector<2x1xf32>
    %646 = vector.extract_strided_slice %601 {offsets = [0, 0], sizes = [2, 32], strides = [1, 1]} : vector<2x64xf32> to vector<2x32xf32>
    %647 = vector.broadcast %645 : vector<2x1xf32> to vector<2x32xf32>
    %648 = vector.broadcast %11 : vector<1x32xf32> to vector<2x32xf32>
    %649 = arith.mulf %647, %648 : vector<2x32xf32>
    %650 = arith.addf %646, %649 : vector<2x32xf32>
    %651 = vector.broadcast %12 : vector<1x32xf32> to vector<2x32xf32>
    %652 = arith.addf %650, %651 : vector<2x32xf32>
    %cst_171 = arith.constant 0.000000e+00 : f32
    %653 = vector.broadcast %cst_171 : f32 to vector<2x32xf32>
    %654 = arith.maximumf %652, %653 : vector<2x32xf32>
    %655 = tpu.concatenate %654, %567 in 1 : vector<2x32xf32>, vector<2x32xf32> -> vector<2x64xf32>
    %656 = arith.truncf %655 : vector<2x64xf32> to vector<2x64xbf16>
    %cst_172 = arith.constant dense<0.000000e+00> : vector<2x128xf32>
    %657 = tpu.matmul %656, %14, %cst_172 {dimension_numbers = #tpu.dot_dimension_numbers<[1], [0], [0], [1], [0, 0, 1, 1], [], []>} : vector<2x64xbf16>, vector<64x128xbf16>, vector<2x128xf32> -> vector<2x128xf32>
    %658 = vector.broadcast %15 : vector<1x128xf32> to vector<2x128xf32>
    %659 = arith.addf %657, %658 : vector<2x128xf32>
    %660 = vector.extract_strided_slice %659 {offsets = [0, 0], sizes = [2, 32], strides = [1, 1]} : vector<2x128xf32> to vector<2x32xf32>
    %661 = arith.negf %660 : vector<2x32xf32>
    %662 = math.exp %661 : vector<2x32xf32>
    %cst_173 = arith.constant 1.000000e+00 : f32
    %663 = vector.broadcast %cst_173 : f32 to vector<2x32xf32>
    %664 = arith.addf %663, %662 : vector<2x32xf32>
    %665 = arith.divf %663, %664 : vector<2x32xf32>
    %666 = vector.extract_strided_slice %659 {offsets = [0, 32], sizes = [2, 32], strides = [1, 1]} : vector<2x128xf32> to vector<2x32xf32>
    %667 = arith.negf %666 : vector<2x32xf32>
    %668 = math.exp %667 : vector<2x32xf32>
    %cst_174 = arith.constant 1.000000e+00 : f32
    %669 = vector.broadcast %cst_174 : f32 to vector<2x32xf32>
    %670 = arith.addf %669, %668 : vector<2x32xf32>
    %671 = arith.divf %669, %670 : vector<2x32xf32>
    %672 = vector.extract_strided_slice %659 {offsets = [0, 64], sizes = [2, 32], strides = [1, 1]} : vector<2x128xf32> to vector<2x32xf32>
    %673 = math.tanh %672 : vector<2x32xf32>
    %674 = vector.extract_strided_slice %659 {offsets = [0, 96], sizes = [2, 32], strides = [1, 1]} : vector<2x128xf32> to vector<2x32xf32>
    %675 = arith.negf %674 : vector<2x32xf32>
    %676 = math.exp %675 : vector<2x32xf32>
    %cst_175 = arith.constant 1.000000e+00 : f32
    %677 = vector.broadcast %cst_175 : f32 to vector<2x32xf32>
    %678 = arith.addf %677, %676 : vector<2x32xf32>
    %679 = arith.divf %677, %678 : vector<2x32xf32>
    %680 = arith.mulf %671, %565 : vector<2x32xf32>
    %681 = arith.mulf %665, %673 : vector<2x32xf32>
    %682 = arith.addf %680, %681 : vector<2x32xf32>
    %683 = math.tanh %682 : vector<2x32xf32>
    %684 = arith.mulf %679, %683 : vector<2x32xf32>
    %685 = arith.truncf %684 : vector<2x32xf32> to vector<2x32xbf16>
    %cst_176 = arith.constant dense<0.000000e+00> : vector<2x128xf32>
    %686 = tpu.matmul %685, %7, %cst_176 {dimension_numbers = #tpu.dot_dimension_numbers<[1], [0], [0], [1], [0, 0, 1, 1], [], []>} : vector<2x32xbf16>, vector<32x128xbf16>, vector<2x128xf32> -> vector<2x128xf32>
    %687 = vector.broadcast %8 : vector<1x128xf32> to vector<2x128xf32>
    %688 = arith.addf %686, %687 : vector<2x128xf32>
    %689 = vector.extract_strided_slice %688 {offsets = [0, 0], sizes = [2, 32], strides = [1, 1]} : vector<2x128xf32> to vector<2x32xf32>
    %690 = vector.extract_strided_slice %688 {offsets = [0, 32], sizes = [2, 32], strides = [1, 1]} : vector<2x128xf32> to vector<2x32xf32>
    %691 = vector.extract_strided_slice %688 {offsets = [0, 64], sizes = [2, 32], strides = [1, 1]} : vector<2x128xf32> to vector<2x32xf32>
    %692 = vector.extract_strided_slice %688 {offsets = [0, 96], sizes = [2, 32], strides = [1, 1]} : vector<2x128xf32> to vector<2x32xf32>
    %693 = vector.extract_strided_slice %27 {offsets = [6, 0, 0], sizes = [1, 2, 4], strides = [1, 1, 1]} : vector<8x2x4xf32> to vector<1x2x4xf32>
    %694 = vector.shape_cast %693 : vector<1x2x4xf32> to vector<2x4xf32>
    %695 = arith.truncf %694 : vector<2x4xf32> to vector<2x4xbf16>
    %cst_177 = arith.constant dense<0.000000e+00> : vector<2x32xf32>
    %696 = tpu.matmul %695, %17, %cst_177 {dimension_numbers = #tpu.dot_dimension_numbers<[1], [0], [0], [1], [0, 0, 1, 1], [], []>} : vector<2x4xbf16>, vector<4x32xbf16>, vector<2x32xf32> -> vector<2x32xf32>
    %697 = arith.addf %691, %696 : vector<2x32xf32>
    %cst_178 = arith.constant 0.000000e+00 : f32
    %698 = vector.broadcast %cst_178 : f32 to vector<2x32xf32>
    %699 = arith.maximumf %697, %698 : vector<2x32xf32>
    %700 = arith.truncf %699 : vector<2x32xf32> to vector<2x32xbf16>
    %cst_179 = arith.constant dense<0.000000e+00> : vector<2x32xf32>
    %701 = tpu.matmul %700, %19, %cst_179 {dimension_numbers = #tpu.dot_dimension_numbers<[1], [0], [0], [1], [0, 0, 1, 1], [], []>} : vector<2x32xbf16>, vector<32x32xbf16>, vector<2x32xf32> -> vector<2x32xf32>
    %702 = vector.broadcast %20 : vector<1x32xf32> to vector<2x32xf32>
    %703 = arith.addf %701, %702 : vector<2x32xf32>
    %cst_180 = arith.constant 0.000000e+00 : f32
    %704 = vector.broadcast %cst_180 : f32 to vector<2x32xf32>
    %705 = arith.maximumf %703, %704 : vector<2x32xf32>
    %706 = arith.truncf %705 : vector<2x32xf32> to vector<2x32xbf16>
    %cst_181 = arith.constant dense<0.000000e+00> : vector<2x64xf32>
    %707 = tpu.matmul %706, %22, %cst_181 {dimension_numbers = #tpu.dot_dimension_numbers<[1], [0], [0], [1], [0, 0, 1, 1], [], []>} : vector<2x32xbf16>, vector<32x64xbf16>, vector<2x64xf32> -> vector<2x64xf32>
    %708 = vector.broadcast %23 : vector<1x64xf32> to vector<2x64xf32>
    %709 = arith.addf %707, %708 : vector<2x64xf32>
    %710 = vector.extract_strided_slice %709 {offsets = [0, 0], sizes = [2, 32], strides = [1, 1]} : vector<2x64xf32> to vector<2x32xf32>
    %711 = vector.extract_strided_slice %709 {offsets = [0, 32], sizes = [2, 32], strides = [1, 1]} : vector<2x64xf32> to vector<2x32xf32>
    %712 = math.exp %711 : vector<2x32xf32>
    %713 = vector.extract_strided_slice %29 {offsets = [6, 0, 0], sizes = [1, 2, 32], strides = [1, 1, 1]} : vector<8x2x32xf32> to vector<1x2x32xf32>
    %714 = vector.shape_cast %713 : vector<1x2x32xf32> to vector<2x32xf32>
    %715 = arith.mulf %712, %714 : vector<2x32xf32>
    %716 = arith.addf %710, %715 : vector<2x32xf32>
    %717 = arith.truncf %716 : vector<2x32xf32> to vector<2x32xbf16>
    %cst_182 = arith.constant dense<0.000000e+00> : vector<2x64xf32>
    %718 = tpu.matmul %717, %10, %cst_182 {dimension_numbers = #tpu.dot_dimension_numbers<[1], [0], [0], [1], [0, 0, 1, 1], [], []>} : vector<2x32xbf16>, vector<32x64xbf16>, vector<2x64xf32> -> vector<2x64xf32>
    %719 = arith.subf %711, %690 : vector<2x32xf32>
    %720 = arith.subf %710, %689 : vector<2x32xf32>
    %721 = arith.mulf %720, %720 : vector<2x32xf32>
    %cst_183 = arith.constant -2.000000e+00 : f32
    %722 = vector.broadcast %cst_183 : f32 to vector<2x32xf32>
    %723 = arith.mulf %722, %690 : vector<2x32xf32>
    %724 = math.exp %723 : vector<2x32xf32>
    %725 = arith.mulf %721, %724 : vector<2x32xf32>
    %cst_184 = arith.constant 2.000000e+00 : f32
    %726 = vector.broadcast %cst_184 : f32 to vector<2x32xf32>
    %727 = arith.mulf %726, %719 : vector<2x32xf32>
    %728 = math.exp %727 : vector<2x32xf32>
    %729 = arith.addf %728, %725 : vector<2x32xf32>
    %cst_185 = arith.constant 1.000000e+00 : f32
    %730 = vector.broadcast %cst_185 : f32 to vector<2x32xf32>
    %731 = arith.subf %729, %730 : vector<2x32xf32>
    %cst_186 = arith.constant 5.000000e-01 : f32
    %732 = vector.broadcast %cst_186 : f32 to vector<2x32xf32>
    %733 = arith.mulf %732, %731 : vector<2x32xf32>
    %734 = arith.subf %733, %719 : vector<2x32xf32>
    %cst_187 = arith.constant dense<0.000000e+00> : vector<2xf32>
    %735 = vector.multi_reduction <add>, %734, %cst_187 [1] : vector<2x32xf32> to vector<2xf32>
    %736 = arith.addf %619, %735 : vector<2xf32>
    %737 = vector.extract_strided_slice %718 {offsets = [0, 32], sizes = [2, 32], strides = [1, 1]} : vector<2x64xf32> to vector<2x32xf32>
    %738 = arith.addf %737, %692 : vector<2x32xf32>
    %cst_188 = arith.constant 0.000000e+00 : f32
    %739 = vector.broadcast %cst_188 : f32 to vector<2x32xf32>
    %740 = arith.maximumf %738, %739 : vector<2x32xf32>
    %741 = arith.truncf %740 : vector<2x32xf32> to vector<2x32xbf16>
    %cst_189 = arith.constant dense<0.000000e+00> : vector<2x8xf32>
    %742 = tpu.matmul %741, %25, %cst_189 {dimension_numbers = #tpu.dot_dimension_numbers<[1], [0], [0], [1], [0, 0, 1, 1], [], []>} : vector<2x32xbf16>, vector<32x8xbf16>, vector<2x8xf32> -> vector<2x8xf32>
    %743 = vector.broadcast %26 : vector<1x8xf32> to vector<2x8xf32>
    %744 = arith.addf %742, %743 : vector<2x8xf32>
    %745 = vector.extract_strided_slice %744 {offsets = [0, 0], sizes = [2, 4], strides = [1, 1]} : vector<2x8xf32> to vector<2x4xf32>
    %746 = vector.extract_strided_slice %744 {offsets = [0, 4], sizes = [2, 4], strides = [1, 1]} : vector<2x8xf32> to vector<2x4xf32>
    %747 = arith.subf %694, %745 : vector<2x4xf32>
    %cst_190 = arith.constant dense<0.000000e+00> : vector<2xf32>
    %748 = vector.multi_reduction <add>, %746, %cst_190 [1] : vector<2x4xf32> to vector<2xf32>
    %cst_191 = arith.constant -3.67575407 : f32
    %749 = vector.broadcast %cst_191 : f32 to vector<2xf32>
    %750 = arith.subf %749, %748 : vector<2xf32>
    %751 = arith.mulf %747, %747 : vector<2x4xf32>
    %cst_192 = arith.constant -2.000000e+00 : f32
    %752 = vector.broadcast %cst_192 : f32 to vector<2x4xf32>
    %753 = arith.mulf %752, %746 : vector<2x4xf32>
    %754 = math.exp %753 : vector<2x4xf32>
    %755 = arith.mulf %751, %754 : vector<2x4xf32>
    %cst_193 = arith.constant dense<0.000000e+00> : vector<2xf32>
    %756 = vector.multi_reduction <add>, %755, %cst_193 [1] : vector<2x4xf32> to vector<2xf32>
    %cst_194 = arith.constant 5.000000e-01 : f32
    %757 = vector.broadcast %cst_194 : f32 to vector<2xf32>
    %758 = arith.mulf %757, %756 : vector<2xf32>
    %759 = arith.subf %750, %758 : vector<2xf32>
    %760 = arith.addf %643, %759 : vector<2xf32>
    %761 = vector.extract_strided_slice %28 {offsets = [6, 0, 0], sizes = [1, 2, 1], strides = [1, 1, 1]} : vector<7x2x1xf32> to vector<1x2x1xf32>
    %762 = vector.shape_cast %761 : vector<1x2x1xf32> to vector<2x1xf32>
    %763 = vector.extract_strided_slice %718 {offsets = [0, 0], sizes = [2, 32], strides = [1, 1]} : vector<2x64xf32> to vector<2x32xf32>
    %764 = vector.broadcast %762 : vector<2x1xf32> to vector<2x32xf32>
    %765 = vector.broadcast %11 : vector<1x32xf32> to vector<2x32xf32>
    %766 = arith.mulf %764, %765 : vector<2x32xf32>
    %767 = arith.addf %763, %766 : vector<2x32xf32>
    %768 = vector.broadcast %12 : vector<1x32xf32> to vector<2x32xf32>
    %769 = arith.addf %767, %768 : vector<2x32xf32>
    %cst_195 = arith.constant 0.000000e+00 : f32
    %770 = vector.broadcast %cst_195 : f32 to vector<2x32xf32>
    %771 = arith.maximumf %769, %770 : vector<2x32xf32>
    %772 = tpu.concatenate %771, %684 in 1 : vector<2x32xf32>, vector<2x32xf32> -> vector<2x64xf32>
    %773 = arith.truncf %772 : vector<2x64xf32> to vector<2x64xbf16>
    %cst_196 = arith.constant dense<0.000000e+00> : vector<2x128xf32>
    %774 = tpu.matmul %773, %14, %cst_196 {dimension_numbers = #tpu.dot_dimension_numbers<[1], [0], [0], [1], [0, 0, 1, 1], [], []>} : vector<2x64xbf16>, vector<64x128xbf16>, vector<2x128xf32> -> vector<2x128xf32>
    %775 = vector.broadcast %15 : vector<1x128xf32> to vector<2x128xf32>
    %776 = arith.addf %774, %775 : vector<2x128xf32>
    %777 = vector.extract_strided_slice %776 {offsets = [0, 0], sizes = [2, 32], strides = [1, 1]} : vector<2x128xf32> to vector<2x32xf32>
    %778 = arith.negf %777 : vector<2x32xf32>
    %779 = math.exp %778 : vector<2x32xf32>
    %cst_197 = arith.constant 1.000000e+00 : f32
    %780 = vector.broadcast %cst_197 : f32 to vector<2x32xf32>
    %781 = arith.addf %780, %779 : vector<2x32xf32>
    %782 = arith.divf %780, %781 : vector<2x32xf32>
    %783 = vector.extract_strided_slice %776 {offsets = [0, 32], sizes = [2, 32], strides = [1, 1]} : vector<2x128xf32> to vector<2x32xf32>
    %784 = arith.negf %783 : vector<2x32xf32>
    %785 = math.exp %784 : vector<2x32xf32>
    %cst_198 = arith.constant 1.000000e+00 : f32
    %786 = vector.broadcast %cst_198 : f32 to vector<2x32xf32>
    %787 = arith.addf %786, %785 : vector<2x32xf32>
    %788 = arith.divf %786, %787 : vector<2x32xf32>
    %789 = vector.extract_strided_slice %776 {offsets = [0, 64], sizes = [2, 32], strides = [1, 1]} : vector<2x128xf32> to vector<2x32xf32>
    %790 = math.tanh %789 : vector<2x32xf32>
    %791 = vector.extract_strided_slice %776 {offsets = [0, 96], sizes = [2, 32], strides = [1, 1]} : vector<2x128xf32> to vector<2x32xf32>
    %792 = arith.negf %791 : vector<2x32xf32>
    %793 = math.exp %792 : vector<2x32xf32>
    %cst_199 = arith.constant 1.000000e+00 : f32
    %794 = vector.broadcast %cst_199 : f32 to vector<2x32xf32>
    %795 = arith.addf %794, %793 : vector<2x32xf32>
    %796 = arith.divf %794, %795 : vector<2x32xf32>
    %797 = arith.mulf %788, %682 : vector<2x32xf32>
    %798 = arith.mulf %782, %790 : vector<2x32xf32>
    %799 = arith.addf %797, %798 : vector<2x32xf32>
    %800 = math.tanh %799 : vector<2x32xf32>
    %801 = arith.mulf %796, %800 : vector<2x32xf32>
    %802 = arith.truncf %801 : vector<2x32xf32> to vector<2x32xbf16>
    %cst_200 = arith.constant dense<0.000000e+00> : vector<2x128xf32>
    %803 = tpu.matmul %802, %7, %cst_200 {dimension_numbers = #tpu.dot_dimension_numbers<[1], [0], [0], [1], [0, 0, 1, 1], [], []>} : vector<2x32xbf16>, vector<32x128xbf16>, vector<2x128xf32> -> vector<2x128xf32>
    %804 = vector.broadcast %8 : vector<1x128xf32> to vector<2x128xf32>
    %805 = arith.addf %803, %804 : vector<2x128xf32>
    %806 = vector.extract_strided_slice %805 {offsets = [0, 0], sizes = [2, 32], strides = [1, 1]} : vector<2x128xf32> to vector<2x32xf32>
    %807 = vector.extract_strided_slice %805 {offsets = [0, 32], sizes = [2, 32], strides = [1, 1]} : vector<2x128xf32> to vector<2x32xf32>
    %808 = vector.extract_strided_slice %805 {offsets = [0, 64], sizes = [2, 32], strides = [1, 1]} : vector<2x128xf32> to vector<2x32xf32>
    %809 = vector.extract_strided_slice %805 {offsets = [0, 96], sizes = [2, 32], strides = [1, 1]} : vector<2x128xf32> to vector<2x32xf32>
    %810 = vector.extract_strided_slice %27 {offsets = [7, 0, 0], sizes = [1, 2, 4], strides = [1, 1, 1]} : vector<8x2x4xf32> to vector<1x2x4xf32>
    %811 = vector.shape_cast %810 : vector<1x2x4xf32> to vector<2x4xf32>
    %812 = arith.truncf %811 : vector<2x4xf32> to vector<2x4xbf16>
    %cst_201 = arith.constant dense<0.000000e+00> : vector<2x32xf32>
    %813 = tpu.matmul %812, %17, %cst_201 {dimension_numbers = #tpu.dot_dimension_numbers<[1], [0], [0], [1], [0, 0, 1, 1], [], []>} : vector<2x4xbf16>, vector<4x32xbf16>, vector<2x32xf32> -> vector<2x32xf32>
    %814 = arith.addf %808, %813 : vector<2x32xf32>
    %cst_202 = arith.constant 0.000000e+00 : f32
    %815 = vector.broadcast %cst_202 : f32 to vector<2x32xf32>
    %816 = arith.maximumf %814, %815 : vector<2x32xf32>
    %817 = arith.truncf %816 : vector<2x32xf32> to vector<2x32xbf16>
    %cst_203 = arith.constant dense<0.000000e+00> : vector<2x32xf32>
    %818 = tpu.matmul %817, %19, %cst_203 {dimension_numbers = #tpu.dot_dimension_numbers<[1], [0], [0], [1], [0, 0, 1, 1], [], []>} : vector<2x32xbf16>, vector<32x32xbf16>, vector<2x32xf32> -> vector<2x32xf32>
    %819 = vector.broadcast %20 : vector<1x32xf32> to vector<2x32xf32>
    %820 = arith.addf %818, %819 : vector<2x32xf32>
    %cst_204 = arith.constant 0.000000e+00 : f32
    %821 = vector.broadcast %cst_204 : f32 to vector<2x32xf32>
    %822 = arith.maximumf %820, %821 : vector<2x32xf32>
    %823 = arith.truncf %822 : vector<2x32xf32> to vector<2x32xbf16>
    %cst_205 = arith.constant dense<0.000000e+00> : vector<2x64xf32>
    %824 = tpu.matmul %823, %22, %cst_205 {dimension_numbers = #tpu.dot_dimension_numbers<[1], [0], [0], [1], [0, 0, 1, 1], [], []>} : vector<2x32xbf16>, vector<32x64xbf16>, vector<2x64xf32> -> vector<2x64xf32>
    %825 = vector.broadcast %23 : vector<1x64xf32> to vector<2x64xf32>
    %826 = arith.addf %824, %825 : vector<2x64xf32>
    %827 = vector.extract_strided_slice %826 {offsets = [0, 0], sizes = [2, 32], strides = [1, 1]} : vector<2x64xf32> to vector<2x32xf32>
    %828 = vector.extract_strided_slice %826 {offsets = [0, 32], sizes = [2, 32], strides = [1, 1]} : vector<2x64xf32> to vector<2x32xf32>
    %829 = math.exp %828 : vector<2x32xf32>
    %830 = vector.extract_strided_slice %29 {offsets = [7, 0, 0], sizes = [1, 2, 32], strides = [1, 1, 1]} : vector<8x2x32xf32> to vector<1x2x32xf32>
    %831 = vector.shape_cast %830 : vector<1x2x32xf32> to vector<2x32xf32>
    %832 = arith.mulf %829, %831 : vector<2x32xf32>
    %833 = arith.addf %827, %832 : vector<2x32xf32>
    %834 = arith.truncf %833 : vector<2x32xf32> to vector<2x32xbf16>
    %cst_206 = arith.constant dense<0.000000e+00> : vector<2x64xf32>
    %835 = tpu.matmul %834, %10, %cst_206 {dimension_numbers = #tpu.dot_dimension_numbers<[1], [0], [0], [1], [0, 0, 1, 1], [], []>} : vector<2x32xbf16>, vector<32x64xbf16>, vector<2x64xf32> -> vector<2x64xf32>
    %836 = arith.subf %828, %807 : vector<2x32xf32>
    %837 = arith.subf %827, %806 : vector<2x32xf32>
    %838 = arith.mulf %837, %837 : vector<2x32xf32>
    %cst_207 = arith.constant -2.000000e+00 : f32
    %839 = vector.broadcast %cst_207 : f32 to vector<2x32xf32>
    %840 = arith.mulf %839, %807 : vector<2x32xf32>
    %841 = math.exp %840 : vector<2x32xf32>
    %842 = arith.mulf %838, %841 : vector<2x32xf32>
    %cst_208 = arith.constant 2.000000e+00 : f32
    %843 = vector.broadcast %cst_208 : f32 to vector<2x32xf32>
    %844 = arith.mulf %843, %836 : vector<2x32xf32>
    %845 = math.exp %844 : vector<2x32xf32>
    %846 = arith.addf %845, %842 : vector<2x32xf32>
    %cst_209 = arith.constant 1.000000e+00 : f32
    %847 = vector.broadcast %cst_209 : f32 to vector<2x32xf32>
    %848 = arith.subf %846, %847 : vector<2x32xf32>
    %cst_210 = arith.constant 5.000000e-01 : f32
    %849 = vector.broadcast %cst_210 : f32 to vector<2x32xf32>
    %850 = arith.mulf %849, %848 : vector<2x32xf32>
    %851 = arith.subf %850, %836 : vector<2x32xf32>
    %cst_211 = arith.constant dense<0.000000e+00> : vector<2xf32>
    %852 = vector.multi_reduction <add>, %851, %cst_211 [1] : vector<2x32xf32> to vector<2xf32>
    %853 = arith.addf %736, %852 : vector<2xf32>
    %854 = vector.extract_strided_slice %835 {offsets = [0, 32], sizes = [2, 32], strides = [1, 1]} : vector<2x64xf32> to vector<2x32xf32>
    %855 = arith.addf %854, %809 : vector<2x32xf32>
    %cst_212 = arith.constant 0.000000e+00 : f32
    %856 = vector.broadcast %cst_212 : f32 to vector<2x32xf32>
    %857 = arith.maximumf %855, %856 : vector<2x32xf32>
    %858 = arith.truncf %857 : vector<2x32xf32> to vector<2x32xbf16>
    %cst_213 = arith.constant dense<0.000000e+00> : vector<2x8xf32>
    %859 = tpu.matmul %858, %25, %cst_213 {dimension_numbers = #tpu.dot_dimension_numbers<[1], [0], [0], [1], [0, 0, 1, 1], [], []>} : vector<2x32xbf16>, vector<32x8xbf16>, vector<2x8xf32> -> vector<2x8xf32>
    %860 = vector.broadcast %26 : vector<1x8xf32> to vector<2x8xf32>
    %861 = arith.addf %859, %860 : vector<2x8xf32>
    %862 = vector.extract_strided_slice %861 {offsets = [0, 0], sizes = [2, 4], strides = [1, 1]} : vector<2x8xf32> to vector<2x4xf32>
    %863 = vector.extract_strided_slice %861 {offsets = [0, 4], sizes = [2, 4], strides = [1, 1]} : vector<2x8xf32> to vector<2x4xf32>
    %864 = arith.subf %811, %862 : vector<2x4xf32>
    %cst_214 = arith.constant dense<0.000000e+00> : vector<2xf32>
    %865 = vector.multi_reduction <add>, %863, %cst_214 [1] : vector<2x4xf32> to vector<2xf32>
    %cst_215 = arith.constant -3.67575407 : f32
    %866 = vector.broadcast %cst_215 : f32 to vector<2xf32>
    %867 = arith.subf %866, %865 : vector<2xf32>
    %868 = arith.mulf %864, %864 : vector<2x4xf32>
    %cst_216 = arith.constant -2.000000e+00 : f32
    %869 = vector.broadcast %cst_216 : f32 to vector<2x4xf32>
    %870 = arith.mulf %869, %863 : vector<2x4xf32>
    %871 = math.exp %870 : vector<2x4xf32>
    %872 = arith.mulf %868, %871 : vector<2x4xf32>
    %cst_217 = arith.constant dense<0.000000e+00> : vector<2xf32>
    %873 = vector.multi_reduction <add>, %872, %cst_217 [1] : vector<2x4xf32> to vector<2xf32>
    %cst_218 = arith.constant 5.000000e-01 : f32
    %874 = vector.broadcast %cst_218 : f32 to vector<2xf32>
    %875 = arith.mulf %874, %873 : vector<2xf32>
    %876 = arith.subf %867, %875 : vector<2xf32>
    %877 = arith.addf %760, %876 : vector<2xf32>
    %c0_219 = arith.constant 0 : index
    %c0_220 = arith.constant 0 : index
    %878 = vector.load %arg21[%c0_219, %c0_220] : memref<2x2xf32, #tpu.memory_space<vmem>>, vector<1x2xf32>
    %879 = vector.shape_cast %878 : vector<1x2xf32> to vector<2xf32>
    %880 = vector.shape_cast %853 : vector<2xf32> to vector<1x2xf32>
    tpu.vector_store %arg21[%c0_219, %c0_220], %880 {strides = array<i32>} : memref<2x2xf32, #tpu.memory_space<vmem>>, vector<1x2xf32>,
    %c1 = arith.constant 1 : index
    %c0_221 = arith.constant 0 : index
    %881 = vector.load %arg21[%c1, %c0_221] : memref<2x2xf32, #tpu.memory_space<vmem>>, vector<1x2xf32>
    %882 = vector.shape_cast %881 : vector<1x2xf32> to vector<2xf32>
    %883 = vector.shape_cast %877 : vector<2xf32> to vector<1x2xf32>
    tpu.vector_store %arg21[%c1, %c0_221], %883 {strides = array<i32>} : memref<2x2xf32, #tpu.memory_space<vmem>>, vector<1x2xf32>,
    return
  }
}

</mosaic_0001>

<llo_original>
// kernel: rssm_forward.1
$region0: #{rssm_forward.1}
  #allocation0 [shape = 'u32[]', space=smem, size = 0x4, offset = 0x4, fixed_abs, tag = 'smem constant byte address 0x4 - core index']
  #allocation1 [shape = 'u32[72,128]{1,0:T(1,128)}', space=vmem, size = 0x9000, scoped, tag = 'internal scratch']
  %s0 = inlined_call_operand.vmem [shape: f32[8,2,4], index: 0, kind: input, shape index: {}]
  %s1 = inlined_call_operand.vmem [shape: f32[7,2,1], index: 1, kind: input, shape index: {}]
  %s2 = inlined_call_operand.vmem [shape: f32[8,2,32], index: 2, kind: input, shape index: {}]
  %s3 = inlined_call_operand.vmem [shape: f32[4,32], index: 3, kind: input, shape index: {}]
  %s4 = inlined_call_operand.vmem [shape: f32[1,32], index: 4, kind: input, shape index: {}]
  %s5 = inlined_call_operand.vmem [shape: f32[32,32], index: 5, kind: input, shape index: {}]
  %s6 = inlined_call_operand.vmem [shape: f32[1,32], index: 6, kind: input, shape index: {}]
  %s7 = inlined_call_operand.vmem [shape: f32[32,128], index: 7, kind: input, shape index: {}]
  %s8 = inlined_call_operand.vmem [shape: f32[1,128], index: 8, kind: input, shape index: {}]
  %s9 = inlined_call_operand.vmem [shape: f32[32,64], index: 9, kind: input, shape index: {}]
  %s10 = inlined_call_operand.vmem [shape: f32[1,32], index: 10, kind: input, shape index: {}]
  %s11 = inlined_call_operand.vmem [shape: f32[1,32], index: 11, kind: input, shape index: {}]
  %s12 = inlined_call_operand.vmem [shape: f32[64,128], index: 12, kind: input, shape index: {}]
  %s13 = inlined_call_operand.vmem [shape: f32[1,128], index: 13, kind: input, shape index: {}]
  %s14 = inlined_call_operand.vmem [shape: f32[4,32], index: 14, kind: input, shape index: {}]
  %s15 = inlined_call_operand.vmem [shape: f32[32,32], index: 15, kind: input, shape index: {}]
  %s16 = inlined_call_operand.vmem [shape: f32[1,32], index: 16, kind: input, shape index: {}]
  %s17 = inlined_call_operand.vmem [shape: f32[32,64], index: 17, kind: input, shape index: {}]
  %s18 = inlined_call_operand.vmem [shape: f32[1,64], index: 18, kind: input, shape index: {}]
  %s19 = inlined_call_operand.vmem [shape: f32[32,8], index: 19, kind: input, shape index: {}]
  %s20 = inlined_call_operand.vmem [shape: f32[1,8], index: 20, kind: input, shape index: {}]
  %s21 = inlined_call_operand.vmem [shape: f32[2,2], index: 21, kind: output, shape index: {}]
  %s22 = sld [smem:[#allocation0]]
  $region94: #{rssm_forward.1} parent=0
    _
  %s24 = ssub.s32 1, %s22
  %s25 = scalar_select 0, %s24, %s22
  // Predicated region
  $region2: #{rssm_forward.1} parent=0 // pred_check
    _
  $region3: #{rssm_forward.1} parent=0 // pred_check_branch
    %27 = sbr.rel (0) target = $region5
  $region4: #{rssm_forward.1} parent=0 // pred_region
    _
  $region5: #{rssm_forward.1} parent=0 // pred_fallthru
    _
  // Predicated region
  $region6: #{rssm_forward.1} parent=0 // pred_check
    _
  $region7: #{rssm_forward.1} parent=0 // pred_check_branch
    %29 = sbr.rel (0) target = $region9
  $region8: #{rssm_forward.1} parent=0 // pred_region
    _
  $region9: #{rssm_forward.1} parent=0 // pred_fallthru
    _
  // Predicated region
  $region10: #{rssm_forward.1} parent=0 // pred_check
    _
  $region11: #{rssm_forward.1} parent=0 // pred_check_branch
    %31 = sbr.rel (0) target = $region13
  $region12: #{rssm_forward.1} parent=0 // pred_region
    _
  $region13: #{rssm_forward.1} parent=0 // pred_fallthru
    _
  // Predicated region
  $region14: #{rssm_forward.1} parent=0 // pred_check
    _
  $region15: #{rssm_forward.1} parent=0 // pred_check_branch
    %33 = sbr.rel (0) target = $region17
  $region16: #{rssm_forward.1} parent=0 // pred_region
    _
  $region17: #{rssm_forward.1} parent=0 // pred_fallthru
    _
  // Predicated region
  $region18: #{rssm_forward.1} parent=0 // pred_check
    _
  $region19: #{rssm_forward.1} parent=0 // pred_check_branch
    %35 = sbr.rel (0) target = $region21
  $region20: #{rssm_forward.1} parent=0 // pred_region
    _
  $region21: #{rssm_forward.1} parent=0 // pred_fallthru
    _
  // Predicated region
  $region22: #{rssm_forward.1} parent=0 // pred_check
    _
  $region23: #{rssm_forward.1} parent=0 // pred_check_branch
    %37 = sbr.rel (0) target = $region25
  $region24: #{rssm_forward.1} parent=0 // pred_region
    _
  $region25: #{rssm_forward.1} parent=0 // pred_fallthru
    _
  // Predicated region
  $region26: #{rssm_forward.1} parent=0 // pred_check
    _
  $region27: #{rssm_forward.1} parent=0 // pred_check_branch
    %39 = sbr.rel (0) target = $region29
  $region28: #{rssm_forward.1} parent=0 // pred_region
    _
  $region29: #{rssm_forward.1} parent=0 // pred_fallthru
    _
  // Predicated region
  $region30: #{rssm_forward.1} parent=0 // pred_check
    _
  $region31: #{rssm_forward.1} parent=0 // pred_check_branch
    %41 = sbr.rel (0) target = $region33
  $region32: #{rssm_forward.1} parent=0 // pred_region
    _
  $region33: #{rssm_forward.1} parent=0 // pred_fallthru
    _
  // Predicated region
  $region34: #{rssm_forward.1} parent=0 // pred_check
    _
  $region35: #{rssm_forward.1} parent=0 // pred_check_branch
    %43 = sbr.rel (0) target = $region37
  $region36: #{rssm_forward.1} parent=0 // pred_region
    _
  $region37: #{rssm_forward.1} parent=0 // pred_fallthru
    _
  // Predicated region
  $region38: #{rssm_forward.1} parent=0 // pred_check
    _
  $region39: #{rssm_forward.1} parent=0 // pred_check_branch
    %45 = sbr.rel (0) target = $region41
  $region40: #{rssm_forward.1} parent=0 // pred_region
    _
  $region41: #{rssm_forward.1} parent=0 // pred_fallthru
    _
  // Predicated region
  $region42: #{rssm_forward.1} parent=0 // pred_check
    _
  $region43: #{rssm_forward.1} parent=0 // pred_check_branch
    %47 = sbr.rel (0) target = $region45
  $region44: #{rssm_forward.1} parent=0 // pred_region
    _
  $region45: #{rssm_forward.1} parent=0 // pred_fallthru
    _
  // Predicated region
  $region46: #{rssm_forward.1} parent=0 // pred_check
    _
  $region47: #{rssm_forward.1} parent=0 // pred_check_branch
    %49 = sbr.rel (0) target = $region49
  $region48: #{rssm_forward.1} parent=0 // pred_region
    _
  $region49: #{rssm_forward.1} parent=0 // pred_fallthru
    _
  // Predicated region
  $region50: #{rssm_forward.1} parent=0 // pred_check
    _
  $region51: #{rssm_forward.1} parent=0 // pred_check_branch
    %51 = sbr.rel (0) target = $region53
  $region52: #{rssm_forward.1} parent=0 // pred_region
    _
  $region53: #{rssm_forward.1} parent=0 // pred_fallthru
    _
  // Predicated region
  $region54: #{rssm_forward.1} parent=0 // pred_check
    _
  $region55: #{rssm_forward.1} parent=0 // pred_check_branch
    %53 = sbr.rel (0) target = $region57
  $region56: #{rssm_forward.1} parent=0 // pred_region
    _
  $region57: #{rssm_forward.1} parent=0 // pred_fallthru
    _
  // Predicated region
  $region58: #{rssm_forward.1} parent=0 // pred_check
    _
  $region59: #{rssm_forward.1} parent=0 // pred_check_branch
    %55 = sbr.rel (0) target = $region61
  $region60: #{rssm_forward.1} parent=0 // pred_region
    _
  $region61: #{rssm_forward.1} parent=0 // pred_fallthru
    _
  // Predicated region
  $region62: #{rssm_forward.1} parent=0 // pred_check
    _
  $region63: #{rssm_forward.1} parent=0 // pred_check_branch
    %57 = sbr.rel (0) target = $region65
  $region64: #{rssm_forward.1} parent=0 // pred_region
    _
  $region65: #{rssm_forward.1} parent=0 // pred_fallthru
    _
  // Predicated region
  $region66: #{rssm_forward.1} parent=0 // pred_check
    _
  $region67: #{rssm_forward.1} parent=0 // pred_check_branch
    %59 = sbr.rel (0) target = $region69
  $region68: #{rssm_forward.1} parent=0 // pred_region
    _
  $region69: #{rssm_forward.1} parent=0 // pred_fallthru
    _
  // Predicated region
  $region70: #{rssm_forward.1} parent=0 // pred_check
    _
  $region71: #{rssm_forward.1} parent=0 // pred_check_branch
    %61 = sbr.rel (0) target = $region73
  $region72: #{rssm_forward.1} parent=0 // pred_region
    _
  $region73: #{rssm_forward.1} parent=0 // pred_fallthru
    _
  // Predicated region
  $region74: #{rssm_forward.1} parent=0 // pred_check
    _
  $region75: #{rssm_forward.1} parent=0 // pred_check_branch
    %63 = sbr.rel (0) target = $region77
  $region76: #{rssm_forward.1} parent=0 // pred_region
    _
  $region77: #{rssm_forward.1} parent=0 // pred_fallthru
    _
  // Predicated region
  $region78: #{rssm_forward.1} parent=0 // pred_check
    _
  $region79: #{rssm_forward.1} parent=0 // pred_check_branch
    %65 = sbr.rel (0) target = $region81
  $region80: #{rssm_forward.1} parent=0 // pred_region
    _
  $region81: #{rssm_forward.1} parent=0 // pred_fallthru
    _
  // Predicated region
  $region82: #{rssm_forward.1} parent=0 // pred_check
    _
  $region83: #{rssm_forward.1} parent=0 // pred_check_branch
    %67 = sbr.rel (0) target = $region85
  $region84: #{rssm_forward.1} parent=0 // pred_region
    _
  $region85: #{rssm_forward.1} parent=0 // pred_fallthru
    _
  %v69 = vld [vmem:[%s3] sm:$0xf]
  %v70 = vpack.c.bf16 %v69, %v69
  %v71 = vld [vmem:[%s4] sm:$0x1]
  %v72 = vld [vmem:[%s5] sm:$0xff]
  %v73 = vld [vmem:[%s5 + $0x8] sm:$0xff]
  %v74 = vld [vmem:[%s5 + $0x10] sm:$0xff]
  %v75 = vld [vmem:[%s5 + $0x18] sm:$0xff]
  %v76 = vpack.c.bf16 %v73, %v72
  %v77 = vpack.c.bf16 %v75, %v74
  %v78 = vld [vmem:[%s6] sm:$0x1]
  %v79 = vld [vmem:[%s7] sm:$0xff]
  %v80 = vld [vmem:[%s7 + $0x8] sm:$0xff]
  %v81 = vld [vmem:[%s7 + $0x10] sm:$0xff]
  %v82 = vld [vmem:[%s7 + $0x18] sm:$0xff]
  %v83 = vpack.c.bf16 %v80, %v79
  %v84 = vpack.c.bf16 %v82, %v81
  %v85 = vld [vmem:[%s8] sm:$0x1]
  %v86 = vld [vmem:[%s9] sm:$0xff]
  %v87 = vld [vmem:[%s9 + $0x8] sm:$0xff]
  %v88 = vld [vmem:[%s9 + $0x10] sm:$0xff]
  %v89 = vld [vmem:[%s9 + $0x18] sm:$0xff]
  %v90 = vpack.c.bf16 %v87, %v86
  %v91 = vpack.c.bf16 %v89, %v88
  %v92 = vld [vmem:[%s10] sm:$0x1]
  %v93 = vld [vmem:[%s11] sm:$0x1]
  %v94 = vld [vmem:[%s12] sm:$0xff]
  %v95 = vld [vmem:[%s12 + $0x8] sm:$0xff]
  %v96 = vld [vmem:[%s12 + $0x10] sm:$0xff]
  %v97 = vld [vmem:[%s12 + $0x18] sm:$0xff]
  %v98 = vld [vmem:[%s12 + $0x20] sm:$0xff]
  %v99 = vld [vmem:[%s12 + $0x28] sm:$0xff]
  %v100 = vld [vmem:[%s12 + $0x30] sm:$0xff]
  %v101 = vld [vmem:[%s12 + $0x38] sm:$0xff]
  %v102 = vpack.c.bf16 %v95, %v94
  %v103 = vpack.c.bf16 %v97, %v96
  %v104 = vpack.c.bf16 %v99, %v98
  %v105 = vpack.c.bf16 %v101, %v100
  %v106 = vld [vmem:[%s13] sm:$0x1]
  %v107 = vld [vmem:[%s14] sm:$0xf]
  %v108 = vpack.c.bf16 %v107, %v107
  %v109 = vld [vmem:[%s15] sm:$0xff]
  %v110 = vld [vmem:[%s15 + $0x8] sm:$0xff]
  %v111 = vld [vmem:[%s15 + $0x10] sm:$0xff]
  %v112 = vld [vmem:[%s15 + $0x18] sm:$0xff]
  %v113 = vpack.c.bf16 %v110, %v109
  %v114 = vpack.c.bf16 %v112, %v111
  %v115 = vld [vmem:[%s16] sm:$0x1]
  %v116 = vld [vmem:[%s17] sm:$0xff]
  %v117 = vld [vmem:[%s17 + $0x8] sm:$0xff]
  %v118 = vld [vmem:[%s17 + $0x10] sm:$0xff]
  %v119 = vld [vmem:[%s17 + $0x18] sm:$0xff]
  %v120 = vpack.c.bf16 %v117, %v116
  %v121 = vpack.c.bf16 %v119, %v118
  %v122 = vld [vmem:[%s18] sm:$0x1]
  %v123 = vld [vmem:[%s19] sm:$0xff]
  %v124 = vld [vmem:[%s19 + $0x8] sm:$0xff]
  %v125 = vld [vmem:[%s19 + $0x10] sm:$0xff]
  %v126 = vld [vmem:[%s19 + $0x18] sm:$0xff]
  %v127 = vpack.c.bf16 %v124, %v123
  %v128 = vpack.c.bf16 %v126, %v125
  %v129 = vld [vmem:[%s20] sm:$0x1]
  %v130 = vld [vmem:[%s0] sm:$0x3]
  %v131 = vld [vmem:[%s0 + $0x2] sm:$0x3]
  %v132 = vld [vmem:[%s0 + $0x4] sm:$0x3]
  %v133 = vld [vmem:[%s0 + $0x6] sm:$0x3]
  %v134 = vld [vmem:[%s0 + $0x8] sm:$0x3]
  %v135 = vld [vmem:[%s0 + $0xa] sm:$0x3]
  %v136 = vld [vmem:[%s0 + $0xc] sm:$0x3]
  %v137 = vld [vmem:[%s0 + $0xe] sm:$0x3]
  %v138 = vld [vmem:[%s1] sm:$0x3]
  %v139 = vld [vmem:[%s1 + $0x2] sm:$0x3]
  %v140 = vld [vmem:[%s1 + $0x4] sm:$0x3]
  %v141 = vld [vmem:[%s1 + $0x6] sm:$0x3]
  %v142 = vld [vmem:[%s1 + $0x8] sm:$0x3]
  %v143 = vld [vmem:[%s1 + $0xa] sm:$0x3]
  %v144 = vld [vmem:[%s1 + $0xc] sm:$0x3]
  %v145 = vld [vmem:[%s2] sm:$0x3]
  %v146 = vld [vmem:[%s2 + $0x2] sm:$0x3]
  %v147 = vld [vmem:[%s2 + $0x4] sm:$0x3]
  %v148 = vld [vmem:[%s2 + $0x6] sm:$0x3]
  %v149 = vld [vmem:[%s2 + $0x8] sm:$0x3]
  %v150 = vld [vmem:[%s2 + $0xa] sm:$0x3]
  %v151 = vld [vmem:[%s2 + $0xc] sm:$0x3]
  %v152 = vld [vmem:[%s2 + $0xe] sm:$0x3]
  %v153 = vpack.c.bf16 %v130, %v130
  %v155 = vperm.slane %v71, 0
  %vm157 = vcmask 31744
  %v159 = vsel %vm157, %v153, 0
  %vm161 = vcmask 1041408
  %v163 = vsel %vm161, %v70, 0
  %165 = vmatpush.bf16.msra.mxu0 0
  %166 = vmatpush.bf16.msra.mxu0 0
  %167 = vmatpush.bf16.msra.mxu0 0
  %168 = vmatpush.bf16.msra.mxu0 0
  %169 = vmatpush.bf16.msra.mxu0 0
  %170 = vmatpush.bf16.msra.mxu0 0
  %171 = vmatpush.bf16.msra.mxu0 0
  %172 = vmatpush.bf16.msra.mxu0 %v163
  %173 = vmatmul.bf16.gmra.mxu0 %v159
  %v174 = vpop.f32.mrf.mxu0
  %v175 = vadd.f32 %v155, %v174
  %v176 = vpop.f32.mrf.mxu0
  %177 = vdwg.mxu0
  %v178 = vmax.f32 %v175, 0.0
  %v179 = vpack.c.bf16 %v178, %v178
  %v181 = vperm.slane %v78, 0
  %vm183 = vcmask 261120
  %v185 = vsel %vm183, %v179, 0
  %187 = vmatpush.bf16.msra.mxu0 0
  %188 = vmatpush.bf16.msra.mxu0 0
  %189 = vmatpush.bf16.msra.mxu0 0
  %190 = vmatpush.bf16.msra.mxu0 0
  %191 = vmatpush.bf16.msra.mxu0 0
  %192 = vmatpush.bf16.msra.mxu0 0
  %193 = vmatpush.bf16.msra.mxu0 %v77
  %194 = vmatpush.bf16.msra.mxu0 %v76
  %195 = vmatmul.bf16.gmra.mxu0 %v185
  %v196 = vpop.f32.mrf.mxu0
  %v197 = vadd.f32 %v181, %v196
  %v198 = vpop.f32.mrf.mxu0
  %199 = vdwg.mxu0
  %v200 = vtanh.pop %v197
  %v201 = vpack.c.bf16 %v200, %v200
  %v203 = vperm.slane %v85, 0
  %v206 = vsel %vm183, %v201, 0
  %208 = vmatpush.bf16.msra.mxu0 0
  %209 = vmatpush.bf16.msra.mxu0 0
  %210 = vmatpush.bf16.msra.mxu0 0
  %211 = vmatpush.bf16.msra.mxu0 0
  %212 = vmatpush.bf16.msra.mxu0 0
  %213 = vmatpush.bf16.msra.mxu0 0
  %214 = vmatpush.bf16.msra.mxu0 %v84
  %215 = vmatpush.bf16.msra.mxu0 %v83
  %216 = vmatmul.bf16.gmra.mxu0 %v206
  %v217 = vpop.f32.mrf.mxu0
  %v218 = vadd.f32 %v203, %v217
  %v219 = vpop.f32.mrf.mxu0
  %220 = vdwg.mxu0
  %v221 = vmul.f32 %v218, 1.442695
  %v222 = vpow.pop %v221
  %224 = vrot.lane.b32.xlu0 %v145, 32
  %v225 = vpop.permute.xlu0 %224
  %v227 = vmul.f32 %v222, %v225
  %229 = vrot.lane.b32.xlu0 %v227, 96
  %v230 = vpop.permute.xlu0 %229
  %v232 = vadd.f32 %v218, %v230
  %v233 = vpack.c.bf16 %v232, %v232
  %v235 = vsel %vm183, %v233, 0
  %237 = vmatpush.bf16.msra.mxu0 0
  %238 = vmatpush.bf16.msra.mxu0 0
  %239 = vmatpush.bf16.msra.mxu0 0
  %240 = vmatpush.bf16.msra.mxu0 0
  %241 = vmatpush.bf16.msra.mxu0 0
  %242 = vmatpush.bf16.msra.mxu0 0
  %243 = vmatpush.bf16.msra.mxu0 %v91
  %244 = vmatpush.bf16.msra.mxu0 %v90
  %245 = vmatmul.bf16.gmra.mxu0 %v235
  %v246 = vpop.f32.mrf.mxu0
  %v247 = vadd.f32 0.0, %v246
  %v248 = vpop.f32.mrf.mxu0
  %249 = vdwg.mxu0
  %251 = vset.pattern.permute.xlu0 0
  %252 = vperm.xlu0 %251, %v138
  %v253 = vpop.permute.xlu0 %252
  %v256 = vperm.slane %v92, 0
  %v258 = vmul.f32 %v253, %v256
  %v259 = vadd.f32 %v247, %v258
  %v261 = vperm.slane %v93, 0
  %v263 = vadd.f32 %v259, %v261
  %v264 = vmax.f32 %v263, 0.0
  %266 = vrot.lane.b32.xlu0 %v200, 32
  %v267 = vpop.permute.xlu0 %266
  %v269 = vsel %vm183, %v264, %v267
  %v270 = vpack.c.bf16 %v269, %v269
  %v272 = vperm.slane %v106, 0
  %vm274 = vcmask 523264
  %v276 = vsel %vm274, %v270, 0
  %278 = vmatpush.bf16.msra.mxu0 0
  %279 = vmatpush.bf16.msra.mxu0 0
  %280 = vmatpush.bf16.msra.mxu0 0
  %281 = vmatpush.bf16.msra.mxu0 0
  %282 = vmatpush.bf16.msra.mxu0 %v105
  %283 = vmatpush.bf16.msra.mxu0 %v104
  %284 = vmatpush.bf16.msra.mxu0 %v103
  %285 = vmatpush.bf16.msra.mxu0 %v102
  %286 = vmatmul.bf16.gmra.mxu0 %v276
  %v287 = vpop.f32.mrf.mxu0
  %v288 = vadd.f32 %v272, %v287
  %v289 = vpop.f32.mrf.mxu0
  %290 = vdwg.mxu0
  %v291 = vxor.u32 %v288, 2147483648
  %v292 = vmul.f32 %v291, 1.442695
  %v293 = vpow.pop %v292
  %v294 = vadd.f32 %v293, 1.0
  %v295 = vrcp.pop %v294
  %v296 = vmul.f32 %v294, %v295
  %v297 = vsub.f32 1.0, %v296
  %v298 = vmul.f32 %v295, %v297
  %v299 = vadd.f32 %v295, %v298
  %vm300 = vweird.f32 %v294
  %vm301 = vweird.f32 %v295
  %vm302 = vmor %vm300, %vm301
  %v303 = vsel %vm302, %v295, %v299
  %v304 = vand.u32 2147483647, %v294
  %vm305 = vcmp.eq.f32.partialorder %v304, 8.507059e+37
  %v306 = vand.u32 %v294, 2147483648
  %v307 = vor.u32 1.1754944e-38, %v306
  %v308 = vsel %vm305, %v307, %v303
  %v309 = vmul.f32 1.0, %v308
  %v310 = vtanh.pop %v288
  %v311 = vmul.f32 %v309, 0.0
  %313 = vrot.lane.b32.xlu0 %v310, 64
  %v314 = vpop.permute.xlu0 %313
  %v316 = vmul.f32 %v309, %v314
  %318 = vrot.lane.b32.xlu0 %v316, 32
  %v319 = vpop.permute.xlu0 %318
  %v321 = vadd.f32 %v311, %v319
  %v322 = vtanh.pop %v321
  %324 = vrot.lane.b32.xlu0 %v322, 64
  %v325 = vpop.permute.xlu0 %324
  %v327 = vmul.f32 %v309, %v325
  %v328 = vpack.c.bf16 %v327, %v327
  %330 = vrot.lane.b32.xlu0 %v328, 32
  %v331 = vpop.permute.xlu0 %330
  %v333 = vsel %vm183, %v331, 0
  %335 = vmatpush.bf16.msra.mxu0 0
  %336 = vmatpush.bf16.msra.mxu0 0
  %337 = vmatpush.bf16.msra.mxu0 0
  %338 = vmatpush.bf16.msra.mxu0 0
  %339 = vmatpush.bf16.msra.mxu0 0
  %340 = vmatpush.bf16.msra.mxu0 0
  %341 = vmatpush.bf16.msra.mxu0 %v84
  %342 = vmatpush.bf16.msra.mxu0 %v83
  %343 = vmatmul.bf16.gmra.mxu0 %v333
  %v344 = vpop.f32.mrf.mxu0
  %v345 = vadd.f32 %v203, %v344
  %v346 = vpop.f32.mrf.mxu0
  %347 = vdwg.mxu0
  %v348 = vpack.c.bf16 %v131, %v131
  %v350 = vsel %vm157, %v348, 0
  %v353 = vsel %vm161, %v108, 0
  %355 = vmatpush.bf16.msra.mxu0 0
  %356 = vmatpush.bf16.msra.mxu0 0
  %357 = vmatpush.bf16.msra.mxu0 0
  %358 = vmatpush.bf16.msra.mxu0 0
  %359 = vmatpush.bf16.msra.mxu0 0
  %360 = vmatpush.bf16.msra.mxu0 0
  %361 = vmatpush.bf16.msra.mxu0 0
  %362 = vmatpush.bf16.msra.mxu0 %v353
  %363 = vmatmul.bf16.gmra.mxu0 %v350
  %v364 = vpop.f32.mrf.mxu0
  %v365 = vadd.f32 0.0, %v364
  %v366 = vpop.f32.mrf.mxu0
  %367 = vdwg.mxu0
  %369 = vrot.lane.b32.xlu0 %v365, 64
  %v370 = vpop.permute.xlu0 %369
  %v372 = vadd.f32 %v345, %v370
  %v373 = vmax.f32 %v372, 0.0
  %v374 = vpack.c.bf16 %v373, %v373
  %v376 = vperm.slane %v115, 0
  %379 = vrot.lane.b32.xlu0 %v374, 64
  %v380 = vpop.permute.xlu0 %379
  %v382 = vsel %vm183, %v380, 0
  %384 = vmatpush.bf16.msra.mxu0 0
  %385 = vmatpush.bf16.msra.mxu0 0
  %386 = vmatpush.bf16.msra.mxu0 0
  %387 = vmatpush.bf16.msra.mxu0 0
  %388 = vmatpush.bf16.msra.mxu0 0
  %389 = vmatpush.bf16.msra.mxu0 0
  %390 = vmatpush.bf16.msra.mxu0 %v114
  %391 = vmatpush.bf16.msra.mxu0 %v113
  %392 = vmatmul.bf16.gmra.mxu0 %v382
  %v393 = vpop.f32.mrf.mxu0
  %v394 = vadd.f32 %v376, %v393
  %v395 = vpop.f32.mrf.mxu0
  %396 = vdwg.mxu0
  %v397 = vmax.f32 %v394, 0.0
  %v398 = vpack.c.bf16 %v397, %v397
  %v400 = vperm.slane %v122, 0
  %v403 = vsel %vm183, %v398, 0
  %405 = vmatpush.bf16.msra.mxu0 0
  %406 = vmatpush.bf16.msra.mxu0 0
  %407 = vmatpush.bf16.msra.mxu0 0
  %408 = vmatpush.bf16.msra.mxu0 0
  %409 = vmatpush.bf16.msra.mxu0 0
  %410 = vmatpush.bf16.msra.mxu0 0
  %411 = vmatpush.bf16.msra.mxu0 %v121
  %412 = vmatpush.bf16.msra.mxu0 %v120
  %413 = vmatmul.bf16.gmra.mxu0 %v403
  %v414 = vpop.f32.mrf.mxu0
  %v415 = vadd.f32 %v400, %v414
  %v416 = vpop.f32.mrf.mxu0
  %417 = vdwg.mxu0
  %v418 = vmul.f32 %v415, 1.442695
  %v419 = vpow.pop %v418
  %421 = vrot.lane.b32.xlu0 %v146, 32
  %v422 = vpop.permute.xlu0 %421
  %v424 = vmul.f32 %v419, %v422
  %426 = vrot.lane.b32.xlu0 %v424, 96
  %v427 = vpop.permute.xlu0 %426
  %v429 = vadd.f32 %v415, %v427
  %v430 = vpack.c.bf16 %v429, %v429
  %v432 = vsel %vm183, %v430, 0
  %434 = vmatpush.bf16.msra.mxu0 0
  %435 = vmatpush.bf16.msra.mxu0 0
  %436 = vmatpush.bf16.msra.mxu0 0
  %437 = vmatpush.bf16.msra.mxu0 0
  %438 = vmatpush.bf16.msra.mxu0 0
  %439 = vmatpush.bf16.msra.mxu0 0
  %440 = vmatpush.bf16.msra.mxu0 %v91
  %441 = vmatpush.bf16.msra.mxu0 %v90
  %442 = vmatmul.bf16.gmra.mxu0 %v432
  %v443 = vpop.f32.mrf.mxu0
  %v444 = vadd.f32 0.0, %v443
  %v445 = vpop.f32.mrf.mxu0
  %446 = vdwg.mxu0
  %v447 = vsub.f32 %v415, %v345
  %v448 = vmul.f32 %v447, %v447
  %v449 = vmul.f32 %v345, -2.0
  %v450 = vmul.f32 %v449, 1.442695
  %v451 = vpow.pop %v450
  %453 = vrot.lane.b32.xlu0 %v451, 96
  %v454 = vpop.permute.xlu0 %453
  %v456 = vmul.f32 %v448, %v454
  %v457 = vmul.f32 %v447, 2.0
  %v458 = vmul.f32 %v457, 1.442695
  %v459 = vpow.pop %v458
  %461 = vrot.lane.b32.xlu0 %v456, 32
  %v462 = vpop.permute.xlu0 %461
  %v464 = vadd.f32 %v459, %v462
  %v465 = vsub.f32 %v464, 1.0
  %v466 = vmul.f32 %v465, 0.5
  %v467 = vsub.f32 %v466, %v447
  %469 = vrot.lane.b32.xlu0 %v467, 96
  %v470 = vpop.permute.xlu0 %469
  %vm472 = vcmask 254976
  %v473 = vsel %vm472, %v470, 0.0
  %474 = vadd.xlane.f32.xlu0 %v473
  %v475 = vpop.xlane.xlu0 %474
  %v476 = vadd.f32 %v475, 0.0
  %478 = vrot.lane.b32.xlu0 %v345, 64
  %v479 = vpop.permute.xlu0 %478
  %v481 = vadd.f32 %v444, %v479
  %v482 = vmax.f32 %v481, 0.0
  %v483 = vpack.c.bf16 %v482, %v482
  %v485 = vperm.slane %v129, 0
  %488 = vrot.lane.b32.xlu0 %v483, 96
  %v489 = vpop.permute.xlu0 %488
  %v491 = vsel %vm183, %v489, 0
  %493 = vmatpush.bf16.msra.mxu0 0
  %494 = vmatpush.bf16.msra.mxu0 0
  %495 = vmatpush.bf16.msra.mxu0 0
  %496 = vmatpush.bf16.msra.mxu0 0
  %497 = vmatpush.bf16.msra.mxu0 0
  %498 = vmatpush.bf16.msra.mxu0 0
  %499 = vmatpush.bf16.msra.mxu0 %v128
  %500 = vmatpush.bf16.msra.mxu0 %v127
  %501 = vmatmul.bf16.gmra.mxu0 %v491
  %v502 = vpop.f32.mrf.mxu0
  %v503 = vadd.f32 %v485, %v502
  %v504 = vpop.f32.mrf.mxu0
  %505 = vdwg.mxu0
  %v506 = vsub.f32 %v131, %v503
  %508 = vrot.lane.b32.xlu0 %v503, 124
  %v509 = vpop.permute.xlu0 %508
  %vm511 = vcmask 25600
  %v512 = vsel %vm511, %v509, 0.0
  %513 = vadd.xlane.f32.xlu0 %v512
  %v514 = vpop.xlane.xlu0 %513
  %v515 = vsub.f32 -3.675754, %v514
  %v516 = vmul.f32 %v506, %v506
  %v517 = vmul.f32 %v503, -2.0
  %v518 = vmul.f32 %v517, 1.442695
  %v519 = vpow.pop %v518
  %521 = vrot.lane.b32.xlu0 %v519, 124
  %v522 = vpop.permute.xlu0 %521
  %v524 = vmul.f32 %v516, %v522
  %v525 = vsel %vm511, %v524, 0.0
  %526 = vadd.xlane.f32.xlu0 %v525
  %v527 = vpop.xlane.xlu0 %526
  %v528 = vmul.f32 %v527, 0.5
  %v529 = vsub.f32 %v515, %v528
  %v530 = vadd.f32 %v529, 0.0
  %532 = vset.pattern.permute.xlu0 0
  %533 = vperm.xlu0 %532, %v139
  %v534 = vpop.permute.xlu0 %533
  %v536 = vmul.f32 %v534, %v256
  %v537 = vadd.f32 %v444, %v536
  %v538 = vadd.f32 %v537, %v261
  %v539 = vmax.f32 %v538, 0.0
  %541 = vrot.lane.b32.xlu0 %v327, 64
  %v542 = vpop.permute.xlu0 %541
  %v544 = vsel %vm183, %v539, %v542
  %v545 = vpack.c.bf16 %v544, %v544
  %v547 = vsel %vm274, %v545, 0
  %549 = vmatpush.bf16.msra.mxu0 0
  %550 = vmatpush.bf16.msra.mxu0 0
  %551 = vmatpush.bf16.msra.mxu0 0
  %552 = vmatpush.bf16.msra.mxu0 0
  %553 = vmatpush.bf16.msra.mxu0 %v105
  %554 = vmatpush.bf16.msra.mxu0 %v104
  %555 = vmatpush.bf16.msra.mxu0 %v103
  %556 = vmatpush.bf16.msra.mxu0 %v102
  %557 = vmatmul.bf16.gmra.mxu0 %v547
  %v558 = vpop.f32.mrf.mxu0
  %v559 = vadd.f32 %v272, %v558
  %v560 = vpop.f32.mrf.mxu0
  %561 = vdwg.mxu0
  %v562 = vxor.u32 %v559, 2147483648
  %v563 = vmul.f32 %v562, 1.442695
  %v564 = vpow.pop %v563
  %v565 = vadd.f32 %v564, 1.0
  %v566 = vrcp.pop %v565
  %v567 = vmul.f32 %v565, %v566
  %v568 = vsub.f32 1.0, %v567
  %v569 = vmul.f32 %v566, %v568
  %v570 = vadd.f32 %v566, %v569
  %vm571 = vweird.f32 %v565
  %vm572 = vweird.f32 %v566
  %vm573 = vmor %vm571, %vm572
  %v574 = vsel %vm573, %v566, %v570
  %v575 = vand.u32 2147483647, %v565
  %vm576 = vcmp.eq.f32.partialorder %v575, 8.507059e+37
  %v577 = vand.u32 %v565, 2147483648
  %v578 = vor.u32 1.1754944e-38, %v577
  %v579 = vsel %vm576, %v578, %v574
  %v580 = vmul.f32 1.0, %v579
  %v581 = vtanh.pop %v559
  %v582 = vmul.f32 %v580, %v321
  %584 = vrot.lane.b32.xlu0 %v581, 64
  %v585 = vpop.permute.xlu0 %584
  %v587 = vmul.f32 %v580, %v585
  %589 = vrot.lane.b32.xlu0 %v587, 32
  %v590 = vpop.permute.xlu0 %589
  %v592 = vadd.f32 %v582, %v590
  %v593 = vtanh.pop %v592
  %595 = vrot.lane.b32.xlu0 %v593, 64
  %v596 = vpop.permute.xlu0 %595
  %v598 = vmul.f32 %v580, %v596
  %v599 = vpack.c.bf16 %v598, %v598
  %601 = vrot.lane.b32.xlu0 %v599, 32
  %v602 = vpop.permute.xlu0 %601
  %v604 = vsel %vm183, %v602, 0
  %606 = vmatpush.bf16.msra.mxu0 0
  %607 = vmatpush.bf16.msra.mxu0 0
  %608 = vmatpush.bf16.msra.mxu0 0
  %609 = vmatpush.bf16.msra.mxu0 0
  %610 = vmatpush.bf16.msra.mxu0 0
  %611 = vmatpush.bf16.msra.mxu0 0
  %612 = vmatpush.bf16.msra.mxu0 %v84
  %613 = vmatpush.bf16.msra.mxu0 %v83
  %614 = vmatmul.bf16.gmra.mxu0 %v604
  %v615 = vpop.f32.mrf.mxu0
  %v616 = vadd.f32 %v203, %v615
  %v617 = vpop.f32.mrf.mxu0
  %618 = vdwg.mxu0
  %v619 = vpack.c.bf16 %v132, %v132
  %v621 = vsel %vm157, %v619, 0
  %623 = vmatpush.bf16.msra.mxu0 0
  %624 = vmatpush.bf16.msra.mxu0 0
  %625 = vmatpush.bf16.msra.mxu0 0
  %626 = vmatpush.bf16.msra.mxu0 0
  %627 = vmatpush.bf16.msra.mxu0 0
  %628 = vmatpush.bf16.msra.mxu0 0
  %629 = vmatpush.bf16.msra.mxu0 0
  %630 = vmatpush.bf16.msra.mxu0 %v353
  %631 = vmatmul.bf16.gmra.mxu0 %v621
  %v632 = vpop.f32.mrf.mxu0
  %v633 = vadd.f32 0.0, %v632
  %v634 = vpop.f32.mrf.mxu0
  %635 = vdwg.mxu0
  %637 = vrot.lane.b32.xlu0 %v633, 64
  %v638 = vpop.permute.xlu0 %637
  %v640 = vadd.f32 %v616, %v638
  %v641 = vmax.f32 %v640, 0.0
  %v642 = vpack.c.bf16 %v641, %v641
  %644 = vrot.lane.b32.xlu0 %v642, 64
  %v645 = vpop.permute.xlu0 %644
  %v647 = vsel %vm183, %v645, 0
  %649 = vmatpush.bf16.msra.mxu0 0
  %650 = vmatpush.bf16.msra.mxu0 0
  %651 = vmatpush.bf16.msra.mxu0 0
  %652 = vmatpush.bf16.msra.mxu0 0
  %653 = vmatpush.bf16.msra.mxu0 0
  %654 = vmatpush.bf16.msra.mxu0 0
  %655 = vmatpush.bf16.msra.mxu0 %v114
  %656 = vmatpush.bf16.msra.mxu0 %v113
  %657 = vmatmul.bf16.gmra.mxu0 %v647
  %v658 = vpop.f32.mrf.mxu0
  %v659 = vadd.f32 %v376, %v658
  %v660 = vpop.f32.mrf.mxu0
  %661 = vdwg.mxu0
  %v662 = vmax.f32 %v659, 0.0
  %v663 = vpack.c.bf16 %v662, %v662
  %v665 = vsel %vm183, %v663, 0
  %667 = vmatpush.bf16.msra.mxu0 0
  %668 = vmatpush.bf16.msra.mxu0 0
  %669 = vmatpush.bf16.msra.mxu0 0
  %670 = vmatpush.bf16.msra.mxu0 0
  %671 = vmatpush.bf16.msra.mxu0 0
  %672 = vmatpush.bf16.msra.mxu0 0
  %673 = vmatpush.bf16.msra.mxu0 %v121
  %674 = vmatpush.bf16.msra.mxu0 %v120
  %675 = vmatmul.bf16.gmra.mxu0 %v665
  %v676 = vpop.f32.mrf.mxu0
  %v677 = vadd.f32 %v400, %v676
  %v678 = vpop.f32.mrf.mxu0
  %679 = vdwg.mxu0
  %v680 = vmul.f32 %v677, 1.442695
  %v681 = vpow.pop %v680
  %683 = vrot.lane.b32.xlu0 %v147, 32
  %v684 = vpop.permute.xlu0 %683
  %v686 = vmul.f32 %v681, %v684
  %688 = vrot.lane.b32.xlu0 %v686, 96
  %v689 = vpop.permute.xlu0 %688
  %v691 = vadd.f32 %v677, %v689
  %v692 = vpack.c.bf16 %v691, %v691
  %v694 = vsel %vm183, %v692, 0
  %696 = vmatpush.bf16.msra.mxu0 0
  %697 = vmatpush.bf16.msra.mxu0 0
  %698 = vmatpush.bf16.msra.mxu0 0
  %699 = vmatpush.bf16.msra.mxu0 0
  %700 = vmatpush.bf16.msra.mxu0 0
  %701 = vmatpush.bf16.msra.mxu0 0
  %702 = vmatpush.bf16.msra.mxu0 %v91
  %703 = vmatpush.bf16.msra.mxu0 %v90
  %704 = vmatmul.bf16.gmra.mxu0 %v694
  %v705 = vpop.f32.mrf.mxu0
  %v706 = vadd.f32 0.0, %v705
  %v707 = vpop.f32.mrf.mxu0
  %708 = vdwg.mxu0
  %v709 = vsub.f32 %v677, %v616
  %v710 = vmul.f32 %v709, %v709
  %v711 = vmul.f32 %v616, -2.0
  %v712 = vmul.f32 %v711, 1.442695
  %v713 = vpow.pop %v712
  %715 = vrot.lane.b32.xlu0 %v713, 96
  %v716 = vpop.permute.xlu0 %715
  %v718 = vmul.f32 %v710, %v716
  %v719 = vmul.f32 %v709, 2.0
  %v720 = vmul.f32 %v719, 1.442695
  %v721 = vpow.pop %v720
  %723 = vrot.lane.b32.xlu0 %v718, 32
  %v724 = vpop.permute.xlu0 %723
  %v726 = vadd.f32 %v721, %v724
  %v727 = vsub.f32 %v726, 1.0
  %v728 = vmul.f32 %v727, 0.5
  %v729 = vsub.f32 %v728, %v709
  %731 = vrot.lane.b32.xlu0 %v729, 96
  %v732 = vpop.permute.xlu0 %731
  %v734 = vsel %vm472, %v732, 0.0
  %735 = vadd.xlane.f32.xlu0 %v734
  %v736 = vpop.xlane.xlu0 %735
  %v737 = vadd.f32 %v476, %v736
  %739 = vrot.lane.b32.xlu0 %v616, 64
  %v740 = vpop.permute.xlu0 %739
  %v742 = vadd.f32 %v706, %v740
  %v743 = vmax.f32 %v742, 0.0
  %v744 = vpack.c.bf16 %v743, %v743
  %746 = vrot.lane.b32.xlu0 %v744, 96
  %v747 = vpop.permute.xlu0 %746
  %v749 = vsel %vm183, %v747, 0
  %751 = vmatpush.bf16.msra.mxu0 0
  %752 = vmatpush.bf16.msra.mxu0 0
  %753 = vmatpush.bf16.msra.mxu0 0
  %754 = vmatpush.bf16.msra.mxu0 0
  %755 = vmatpush.bf16.msra.mxu0 0
  %756 = vmatpush.bf16.msra.mxu0 0
  %757 = vmatpush.bf16.msra.mxu0 %v128
  %758 = vmatpush.bf16.msra.mxu0 %v127
  %759 = vmatmul.bf16.gmra.mxu0 %v749
  %v760 = vpop.f32.mrf.mxu0
  %v761 = vadd.f32 %v485, %v760
  %v762 = vpop.f32.mrf.mxu0
  %763 = vdwg.mxu0
  %v764 = vsub.f32 %v132, %v761
  %766 = vrot.lane.b32.xlu0 %v761, 124
  %v767 = vpop.permute.xlu0 %766
  %v769 = vsel %vm511, %v767, 0.0
  %770 = vadd.xlane.f32.xlu0 %v769
  %v771 = vpop.xlane.xlu0 %770
  %v772 = vsub.f32 -3.675754, %v771
  %v773 = vmul.f32 %v764, %v764
  %v774 = vmul.f32 %v761, -2.0
  %v775 = vmul.f32 %v774, 1.442695
  %v776 = vpow.pop %v775
  %778 = vrot.lane.b32.xlu0 %v776, 124
  %v779 = vpop.permute.xlu0 %778
  %v781 = vmul.f32 %v773, %v779
  %v782 = vsel %vm511, %v781, 0.0
  %783 = vadd.xlane.f32.xlu0 %v782
  %v784 = vpop.xlane.xlu0 %783
  %v785 = vmul.f32 %v784, 0.5
  %v786 = vsub.f32 %v772, %v785
  %v787 = vadd.f32 %v530, %v786
  %789 = vset.pattern.permute.xlu0 0
  %790 = vperm.xlu0 %789, %v140
  %v791 = vpop.permute.xlu0 %790
  %v793 = vmul.f32 %v791, %v256
  %v794 = vadd.f32 %v706, %v793
  %v795 = vadd.f32 %v794, %v261
  %v796 = vmax.f32 %v795, 0.0
  %798 = vrot.lane.b32.xlu0 %v598, 64
  %v799 = vpop.permute.xlu0 %798
  %v801 = vsel %vm183, %v796, %v799
  %v802 = vpack.c.bf16 %v801, %v801
  %v804 = vsel %vm274, %v802, 0
  %806 = vmatpush.bf16.msra.mxu0 0
  %807 = vmatpush.bf16.msra.mxu0 0
  %808 = vmatpush.bf16.msra.mxu0 0
  %809 = vmatpush.bf16.msra.mxu0 0
  %810 = vmatpush.bf16.msra.mxu0 %v105
  %811 = vmatpush.bf16.msra.mxu0 %v104
  %812 = vmatpush.bf16.msra.mxu0 %v103
  %813 = vmatpush.bf16.msra.mxu0 %v102
  %814 = vmatmul.bf16.gmra.mxu0 %v804
  %v815 = vpop.f32.mrf.mxu0
  %v816 = vadd.f32 %v272, %v815
  %v817 = vpop.f32.mrf.mxu0
  %818 = vdwg.mxu0
  %v819 = vxor.u32 %v816, 2147483648
  %v820 = vmul.f32 %v819, 1.442695
  %v821 = vpow.pop %v820
  %v822 = vadd.f32 %v821, 1.0
  %v823 = vrcp.pop %v822
  %v824 = vmul.f32 %v822, %v823
  %v825 = vsub.f32 1.0, %v824
  %v826 = vmul.f32 %v823, %v825
  %v827 = vadd.f32 %v823, %v826
  %vm828 = vweird.f32 %v822
  %vm829 = vweird.f32 %v823
  %vm830 = vmor %vm828, %vm829
  %v831 = vsel %vm830, %v823, %v827
  %v832 = vand.u32 2147483647, %v822
  %vm833 = vcmp.eq.f32.partialorder %v832, 8.507059e+37
  %v834 = vand.u32 %v822, 2147483648
  %v835 = vor.u32 1.1754944e-38, %v834
  %v836 = vsel %vm833, %v835, %v831
  %v837 = vmul.f32 1.0, %v836
  %v838 = vtanh.pop %v816
  %v839 = vmul.f32 %v837, %v592
  %841 = vrot.lane.b32.xlu0 %v838, 64
  %v842 = vpop.permute.xlu0 %841
  %v844 = vmul.f32 %v837, %v842
  %846 = vrot.lane.b32.xlu0 %v844, 32
  %v847 = vpop.permute.xlu0 %846
  %v849 = vadd.f32 %v839, %v847
  %v850 = vtanh.pop %v849
  %852 = vrot.lane.b32.xlu0 %v850, 64
  %v853 = vpop.permute.xlu0 %852
  %v855 = vmul.f32 %v837, %v853
  %v856 = vpack.c.bf16 %v855, %v855
  %858 = vrot.lane.b32.xlu0 %v856, 32
  %v859 = vpop.permute.xlu0 %858
  %v861 = vsel %vm183, %v859, 0
  %863 = vmatpush.bf16.msra.mxu0 0
  %864 = vmatpush.bf16.msra.mxu0 0
  %865 = vmatpush.bf16.msra.mxu0 0
  %866 = vmatpush.bf16.msra.mxu0 0
  %867 = vmatpush.bf16.msra.mxu0 0
  %868 = vmatpush.bf16.msra.mxu0 0
  %869 = vmatpush.bf16.msra.mxu0 %v84
  %870 = vmatpush.bf16.msra.mxu0 %v83
  %871 = vmatmul.bf16.gmra.mxu0 %v861
  %v872 = vpop.f32.mrf.mxu0
  %v873 = vadd.f32 %v203, %v872
  %v874 = vpop.f32.mrf.mxu0
  %875 = vdwg.mxu0
  %v876 = vpack.c.bf16 %v133, %v133
  %v878 = vsel %vm157, %v876, 0
  %880 = vmatpush.bf16.msra.mxu0 0
  %881 = vmatpush.bf16.msra.mxu0 0
  %882 = vmatpush.bf16.msra.mxu0 0
  %883 = vmatpush.bf16.msra.mxu0 0
  %884 = vmatpush.bf16.msra.mxu0 0
  %885 = vmatpush.bf16.msra.mxu0 0
  %886 = vmatpush.bf16.msra.mxu0 0
  %887 = vmatpush.bf16.msra.mxu0 %v353
  %888 = vmatmul.bf16.gmra.mxu0 %v878
  %v889 = vpop.f32.mrf.mxu0
  %v890 = vadd.f32 0.0, %v889
  %v891 = vpop.f32.mrf.mxu0
  %892 = vdwg.mxu0
  %894 = vrot.lane.b32.xlu0 %v890, 64
  %v895 = vpop.permute.xlu0 %894
  %v897 = vadd.f32 %v873, %v895
  %v898 = vmax.f32 %v897, 0.0
  %v899 = vpack.c.bf16 %v898, %v898
  %901 = vrot.lane.b32.xlu0 %v899, 64
  %v902 = vpop.permute.xlu0 %901
  %v904 = vsel %vm183, %v902, 0
  %906 = vmatpush.bf16.msra.mxu0 0
  %907 = vmatpush.bf16.msra.mxu0 0
  %908 = vmatpush.bf16.msra.mxu0 0
  %909 = vmatpush.bf16.msra.mxu0 0
  %910 = vmatpush.bf16.msra.mxu0 0
  %911 = vmatpush.bf16.msra.mxu0 0
  %912 = vmatpush.bf16.msra.mxu0 %v114
  %913 = vmatpush.bf16.msra.mxu0 %v113
  %914 = vmatmul.bf16.gmra.mxu0 %v904
  %v915 = vpop.f32.mrf.mxu0
  %v916 = vadd.f32 %v376, %v915
  %v917 = vpop.f32.mrf.mxu0
  %918 = vdwg.mxu0
  %v919 = vmax.f32 %v916, 0.0
  %v920 = vpack.c.bf16 %v919, %v919
  %v922 = vsel %vm183, %v920, 0
  %924 = vmatpush.bf16.msra.mxu0 0
  %925 = vmatpush.bf16.msra.mxu0 0
  %926 = vmatpush.bf16.msra.mxu0 0
  %927 = vmatpush.bf16.msra.mxu0 0
  %928 = vmatpush.bf16.msra.mxu0 0
  %929 = vmatpush.bf16.msra.mxu0 0
  %930 = vmatpush.bf16.msra.mxu0 %v121
  %931 = vmatpush.bf16.msra.mxu0 %v120
  %932 = vmatmul.bf16.gmra.mxu0 %v922
  %v933 = vpop.f32.mrf.mxu0
  %v934 = vadd.f32 %v400, %v933
  %v935 = vpop.f32.mrf.mxu0
  %936 = vdwg.mxu0
  %v937 = vmul.f32 %v934, 1.442695
  %v938 = vpow.pop %v937
  %940 = vrot.lane.b32.xlu0 %v148, 32
  %v941 = vpop.permute.xlu0 %940
  %v943 = vmul.f32 %v938, %v941
  %945 = vrot.lane.b32.xlu0 %v943, 96
  %v946 = vpop.permute.xlu0 %945
  %v948 = vadd.f32 %v934, %v946
  %v949 = vpack.c.bf16 %v948, %v948
  %v951 = vsel %vm183, %v949, 0
  %953 = vmatpush.bf16.msra.mxu0 0
  %954 = vmatpush.bf16.msra.mxu0 0
  %955 = vmatpush.bf16.msra.mxu0 0
  %956 = vmatpush.bf16.msra.mxu0 0
  %957 = vmatpush.bf16.msra.mxu0 0
  %958 = vmatpush.bf16.msra.mxu0 0
  %959 = vmatpush.bf16.msra.mxu0 %v91
  %960 = vmatpush.bf16.msra.mxu0 %v90
  %961 = vmatmul.bf16.gmra.mxu0 %v951
  %v962 = vpop.f32.mrf.mxu0
  %v963 = vadd.f32 0.0, %v962
  %v964 = vpop.f32.mrf.mxu0
  %965 = vdwg.mxu0
  %v966 = vsub.f32 %v934, %v873
  %v967 = vmul.f32 %v966, %v966
  %v968 = vmul.f32 %v873, -2.0
  %v969 = vmul.f32 %v968, 1.442695
  %v970 = vpow.pop %v969
  %972 = vrot.lane.b32.xlu0 %v970, 96
  %v973 = vpop.permute.xlu0 %972
  %v975 = vmul.f32 %v967, %v973
  %v976 = vmul.f32 %v966, 2.0
  %v977 = vmul.f32 %v976, 1.442695
  %v978 = vpow.pop %v977
  %980 = vrot.lane.b32.xlu0 %v975, 32
  %v981 = vpop.permute.xlu0 %980
  %v983 = vadd.f32 %v978, %v981
  %v984 = vsub.f32 %v983, 1.0
  %v985 = vmul.f32 %v984, 0.5
  %v986 = vsub.f32 %v985, %v966
  %988 = vrot.lane.b32.xlu0 %v986, 96
  %v989 = vpop.permute.xlu0 %988
  %v991 = vsel %vm472, %v989, 0.0
  %992 = vadd.xlane.f32.xlu0 %v991
  %v993 = vpop.xlane.xlu0 %992
  %v994 = vadd.f32 %v737, %v993
  %996 = vrot.lane.b32.xlu0 %v873, 64
  %v997 = vpop.permute.xlu0 %996
  %v999 = vadd.f32 %v963, %v997
  %v1000 = vmax.f32 %v999, 0.0
  %v1001 = vpack.c.bf16 %v1000, %v1000
  %1003 = vrot.lane.b32.xlu0 %v1001, 96
  %v1004 = vpop.permute.xlu0 %1003
  %v1006 = vsel %vm183, %v1004, 0
  %1008 = vmatpush.bf16.msra.mxu0 0
  %1009 = vmatpush.bf16.msra.mxu0 0
  %1010 = vmatpush.bf16.msra.mxu0 0
  %1011 = vmatpush.bf16.msra.mxu0 0
  %1012 = vmatpush.bf16.msra.mxu0 0
  %1013 = vmatpush.bf16.msra.mxu0 0
  %1014 = vmatpush.bf16.msra.mxu0 %v128
  %1015 = vmatpush.bf16.msra.mxu0 %v127
  %1016 = vmatmul.bf16.gmra.mxu0 %v1006
  %v1017 = vpop.f32.mrf.mxu0
  %v1018 = vadd.f32 %v485, %v1017
  %v1019 = vpop.f32.mrf.mxu0
  %1020 = vdwg.mxu0
  %v1021 = vsub.f32 %v133, %v1018
  %1023 = vrot.lane.b32.xlu0 %v1018, 124
  %v1024 = vpop.permute.xlu0 %1023
  %v1026 = vsel %vm511, %v1024, 0.0
  %1027 = vadd.xlane.f32.xlu0 %v1026
  %v1028 = vpop.xlane.xlu0 %1027
  %v1029 = vsub.f32 -3.675754, %v1028
  %v1030 = vmul.f32 %v1021, %v1021
  %v1031 = vmul.f32 %v1018, -2.0
  %v1032 = vmul.f32 %v1031, 1.442695
  %v1033 = vpow.pop %v1032
  %1035 = vrot.lane.b32.xlu0 %v1033, 124
  %v1036 = vpop.permute.xlu0 %1035
  %v1038 = vmul.f32 %v1030, %v1036
  %v1039 = vsel %vm511, %v1038, 0.0
  %1040 = vadd.xlane.f32.xlu0 %v1039
  %v1041 = vpop.xlane.xlu0 %1040
  %v1042 = vmul.f32 %v1041, 0.5
  %v1043 = vsub.f32 %v1029, %v1042
  %v1044 = vadd.f32 %v787, %v1043
  %1046 = vset.pattern.permute.xlu0 0
  %1047 = vperm.xlu0 %1046, %v141
  %v1048 = vpop.permute.xlu0 %1047
  %v1050 = vmul.f32 %v1048, %v256
  %v1051 = vadd.f32 %v963, %v1050
  %v1052 = vadd.f32 %v1051, %v261
  %v1053 = vmax.f32 %v1052, 0.0
  %1055 = vrot.lane.b32.xlu0 %v855, 64
  %v1056 = vpop.permute.xlu0 %1055
  %v1058 = vsel %vm183, %v1053, %v1056
  %v1059 = vpack.c.bf16 %v1058, %v1058
  %v1061 = vsel %vm274, %v1059, 0
  %1063 = vmatpush.bf16.msra.mxu0 0
  %1064 = vmatpush.bf16.msra.mxu0 0
  %1065 = vmatpush.bf16.msra.mxu0 0
  %1066 = vmatpush.bf16.msra.mxu0 0
  %1067 = vmatpush.bf16.msra.mxu0 %v105
  %1068 = vmatpush.bf16.msra.mxu0 %v104
  %1069 = vmatpush.bf16.msra.mxu0 %v103
  %1070 = vmatpush.bf16.msra.mxu0 %v102
  %1071 = vmatmul.bf16.gmra.mxu0 %v1061
  %v1072 = vpop.f32.mrf.mxu0
  %v1073 = vadd.f32 %v272, %v1072
  %v1074 = vpop.f32.mrf.mxu0
  %1075 = vdwg.mxu0
  %v1076 = vxor.u32 %v1073, 2147483648
  %v1077 = vmul.f32 %v1076, 1.442695
  %v1078 = vpow.pop %v1077
  %v1079 = vadd.f32 %v1078, 1.0
  %v1080 = vrcp.pop %v1079
  %v1081 = vmul.f32 %v1079, %v1080
  %v1082 = vsub.f32 1.0, %v1081
  %v1083 = vmul.f32 %v1080, %v1082
  %v1084 = vadd.f32 %v1080, %v1083
  %vm1085 = vweird.f32 %v1079
  %vm1086 = vweird.f32 %v1080
  %vm1087 = vmor %vm1085, %vm1086
  %v1088 = vsel %vm1087, %v1080, %v1084
  %v1089 = vand.u32 2147483647, %v1079
  %vm1090 = vcmp.eq.f32.partialorder %v1089, 8.507059e+37
  %v1091 = vand.u32 %v1079, 2147483648
  %v1092 = vor.u32 1.1754944e-38, %v1091
  %v1093 = vsel %vm1090, %v1092, %v1088
  %v1094 = vmul.f32 1.0, %v1093
  %v1095 = vtanh.pop %v1073
  %v1096 = vmul.f32 %v1094, %v849
  %1098 = vrot.lane.b32.xlu0 %v1095, 64
  %v1099 = vpop.permute.xlu0 %1098
  %v1101 = vmul.f32 %v1094, %v1099
  %1103 = vrot.lane.b32.xlu0 %v1101, 32
  %v1104 = vpop.permute.xlu0 %1103
  %v1106 = vadd.f32 %v1096, %v1104
  %v1107 = vtanh.pop %v1106
  %1109 = vrot.lane.b32.xlu0 %v1107, 64
  %v1110 = vpop.permute.xlu0 %1109
  %v1112 = vmul.f32 %v1094, %v1110
  %v1113 = vpack.c.bf16 %v1112, %v1112
  %1115 = vrot.lane.b32.xlu0 %v1113, 32
  %v1116 = vpop.permute.xlu0 %1115
  %v1118 = vsel %vm183, %v1116, 0
  %1120 = vmatpush.bf16.msra.mxu0 0
  %1121 = vmatpush.bf16.msra.mxu0 0
  %1122 = vmatpush.bf16.msra.mxu0 0
  %1123 = vmatpush.bf16.msra.mxu0 0
  %1124 = vmatpush.bf16.msra.mxu0 0
  %1125 = vmatpush.bf16.msra.mxu0 0
  %1126 = vmatpush.bf16.msra.mxu0 %v84
  %1127 = vmatpush.bf16.msra.mxu0 %v83
  %1128 = vmatmul.bf16.gmra.mxu0 %v1118
  %v1129 = vpop.f32.mrf.mxu0
  %v1130 = vadd.f32 %v203, %v1129
  %v1131 = vpop.f32.mrf.mxu0
  %1132 = vdwg.mxu0
  %v1133 = vpack.c.bf16 %v134, %v134
  %v1135 = vsel %vm157, %v1133, 0
  %1137 = vmatpush.bf16.msra.mxu0 0
  %1138 = vmatpush.bf16.msra.mxu0 0
  %1139 = vmatpush.bf16.msra.mxu0 0
  %1140 = vmatpush.bf16.msra.mxu0 0
  %1141 = vmatpush.bf16.msra.mxu0 0
  %1142 = vmatpush.bf16.msra.mxu0 0
  %1143 = vmatpush.bf16.msra.mxu0 0
  %1144 = vmatpush.bf16.msra.mxu0 %v353
  %1145 = vmatmul.bf16.gmra.mxu0 %v1135
  %v1146 = vpop.f32.mrf.mxu0
  %v1147 = vadd.f32 0.0, %v1146
  %v1148 = vpop.f32.mrf.mxu0
  %1149 = vdwg.mxu0
  %1151 = vrot.lane.b32.xlu0 %v1147, 64
  %v1152 = vpop.permute.xlu0 %1151
  %v1154 = vadd.f32 %v1130, %v1152
  %v1155 = vmax.f32 %v1154, 0.0
  %v1156 = vpack.c.bf16 %v1155, %v1155
  %1158 = vrot.lane.b32.xlu0 %v1156, 64
  %v1159 = vpop.permute.xlu0 %1158
  %v1161 = vsel %vm183, %v1159, 0
  %1163 = vmatpush.bf16.msra.mxu0 0
  %1164 = vmatpush.bf16.msra.mxu0 0
  %1165 = vmatpush.bf16.msra.mxu0 0
  %1166 = vmatpush.bf16.msra.mxu0 0
  %1167 = vmatpush.bf16.msra.mxu0 0
  %1168 = vmatpush.bf16.msra.mxu0 0
  %1169 = vmatpush.bf16.msra.mxu0 %v114
  %1170 = vmatpush.bf16.msra.mxu0 %v113
  %1171 = vmatmul.bf16.gmra.mxu0 %v1161
  %v1172 = vpop.f32.mrf.mxu0
  %v1173 = vadd.f32 %v376, %v1172
  %v1174 = vpop.f32.mrf.mxu0
  %1175 = vdwg.mxu0
  %v1176 = vmax.f32 %v1173, 0.0
  %v1177 = vpack.c.bf16 %v1176, %v1176
  %v1179 = vsel %vm183, %v1177, 0
  %1181 = vmatpush.bf16.msra.mxu0 0
  %1182 = vmatpush.bf16.msra.mxu0 0
  %1183 = vmatpush.bf16.msra.mxu0 0
  %1184 = vmatpush.bf16.msra.mxu0 0
  %1185 = vmatpush.bf16.msra.mxu0 0
  %1186 = vmatpush.bf16.msra.mxu0 0
  %1187 = vmatpush.bf16.msra.mxu0 %v121
  %1188 = vmatpush.bf16.msra.mxu0 %v120
  %1189 = vmatmul.bf16.gmra.mxu0 %v1179
  %v1190 = vpop.f32.mrf.mxu0
  %v1191 = vadd.f32 %v400, %v1190
  %v1192 = vpop.f32.mrf.mxu0
  %1193 = vdwg.mxu0
  %v1194 = vmul.f32 %v1191, 1.442695
  %v1195 = vpow.pop %v1194
  %1197 = vrot.lane.b32.xlu0 %v149, 32
  %v1198 = vpop.permute.xlu0 %1197
  %v1200 = vmul.f32 %v1195, %v1198
  %1202 = vrot.lane.b32.xlu0 %v1200, 96
  %v1203 = vpop.permute.xlu0 %1202
  %v1205 = vadd.f32 %v1191, %v1203
  %v1206 = vpack.c.bf16 %v1205, %v1205
  %v1208 = vsel %vm183, %v1206, 0
  %1210 = vmatpush.bf16.msra.mxu0 0
  %1211 = vmatpush.bf16.msra.mxu0 0
  %1212 = vmatpush.bf16.msra.mxu0 0
  %1213 = vmatpush.bf16.msra.mxu0 0
  %1214 = vmatpush.bf16.msra.mxu0 0
  %1215 = vmatpush.bf16.msra.mxu0 0
  %1216 = vmatpush.bf16.msra.mxu0 %v91
  %1217 = vmatpush.bf16.msra.mxu0 %v90
  %1218 = vmatmul.bf16.gmra.mxu0 %v1208
  %v1219 = vpop.f32.mrf.mxu0
  %v1220 = vadd.f32 0.0, %v1219
  %v1221 = vpop.f32.mrf.mxu0
  %1222 = vdwg.mxu0
  %v1223 = vsub.f32 %v1191, %v1130
  %v1224 = vmul.f32 %v1223, %v1223
  %v1225 = vmul.f32 %v1130, -2.0
  %v1226 = vmul.f32 %v1225, 1.442695
  %v1227 = vpow.pop %v1226
  %1229 = vrot.lane.b32.xlu0 %v1227, 96
  %v1230 = vpop.permute.xlu0 %1229
  %v1232 = vmul.f32 %v1224, %v1230
  %v1233 = vmul.f32 %v1223, 2.0
  %v1234 = vmul.f32 %v1233, 1.442695
  %v1235 = vpow.pop %v1234
  %1237 = vrot.lane.b32.xlu0 %v1232, 32
  %v1238 = vpop.permute.xlu0 %1237
  %v1240 = vadd.f32 %v1235, %v1238
  %v1241 = vsub.f32 %v1240, 1.0
  %v1242 = vmul.f32 %v1241, 0.5
  %v1243 = vsub.f32 %v1242, %v1223
  %1245 = vrot.lane.b32.xlu0 %v1243, 96
  %v1246 = vpop.permute.xlu0 %1245
  %v1248 = vsel %vm472, %v1246, 0.0
  %1249 = vadd.xlane.f32.xlu0 %v1248
  %v1250 = vpop.xlane.xlu0 %1249
  %v1251 = vadd.f32 %v994, %v1250
  %1253 = vrot.lane.b32.xlu0 %v1130, 64
  %v1254 = vpop.permute.xlu0 %1253
  %v1256 = vadd.f32 %v1220, %v1254
  %v1257 = vmax.f32 %v1256, 0.0
  %v1258 = vpack.c.bf16 %v1257, %v1257
  %1260 = vrot.lane.b32.xlu0 %v1258, 96
  %v1261 = vpop.permute.xlu0 %1260
  %v1263 = vsel %vm183, %v1261, 0
  %1265 = vmatpush.bf16.msra.mxu0 0
  %1266 = vmatpush.bf16.msra.mxu0 0
  %1267 = vmatpush.bf16.msra.mxu0 0
  %1268 = vmatpush.bf16.msra.mxu0 0
  %1269 = vmatpush.bf16.msra.mxu0 0
  %1270 = vmatpush.bf16.msra.mxu0 0
  %1271 = vmatpush.bf16.msra.mxu0 %v128
  %1272 = vmatpush.bf16.msra.mxu0 %v127
  %1273 = vmatmul.bf16.gmra.mxu0 %v1263
  %v1274 = vpop.f32.mrf.mxu0
  %v1275 = vadd.f32 %v485, %v1274
  %v1276 = vpop.f32.mrf.mxu0
  %1277 = vdwg.mxu0
  %v1278 = vsub.f32 %v134, %v1275
  %1280 = vrot.lane.b32.xlu0 %v1275, 124
  %v1281 = vpop.permute.xlu0 %1280
  %v1283 = vsel %vm511, %v1281, 0.0
  %1284 = vadd.xlane.f32.xlu0 %v1283
  %v1285 = vpop.xlane.xlu0 %1284
  %v1286 = vsub.f32 -3.675754, %v1285
  %v1287 = vmul.f32 %v1278, %v1278
  %v1288 = vmul.f32 %v1275, -2.0
  %v1289 = vmul.f32 %v1288, 1.442695
  %v1290 = vpow.pop %v1289
  %1292 = vrot.lane.b32.xlu0 %v1290, 124
  %v1293 = vpop.permute.xlu0 %1292
  %v1295 = vmul.f32 %v1287, %v1293
  %v1296 = vsel %vm511, %v1295, 0.0
  %1297 = vadd.xlane.f32.xlu0 %v1296
  %v1298 = vpop.xlane.xlu0 %1297
  %v1299 = vmul.f32 %v1298, 0.5
  %v1300 = vsub.f32 %v1286, %v1299
  %v1301 = vadd.f32 %v1044, %v1300
  %1303 = vset.pattern.permute.xlu0 0
  %1304 = vperm.xlu0 %1303, %v142
  %v1305 = vpop.permute.xlu0 %1304
  %v1307 = vmul.f32 %v1305, %v256
  %v1308 = vadd.f32 %v1220, %v1307
  %v1309 = vadd.f32 %v1308, %v261
  %v1310 = vmax.f32 %v1309, 0.0
  %1312 = vrot.lane.b32.xlu0 %v1112, 64
  %v1313 = vpop.permute.xlu0 %1312
  %v1315 = vsel %vm183, %v1310, %v1313
  %v1316 = vpack.c.bf16 %v1315, %v1315
  %v1318 = vsel %vm274, %v1316, 0
  %1320 = vmatpush.bf16.msra.mxu0 0
  %1321 = vmatpush.bf16.msra.mxu0 0
  %1322 = vmatpush.bf16.msra.mxu0 0
  %1323 = vmatpush.bf16.msra.mxu0 0
  %1324 = vmatpush.bf16.msra.mxu0 %v105
  %1325 = vmatpush.bf16.msra.mxu0 %v104
  %1326 = vmatpush.bf16.msra.mxu0 %v103
  %1327 = vmatpush.bf16.msra.mxu0 %v102
  %1328 = vmatmul.bf16.gmra.mxu0 %v1318
  %v1329 = vpop.f32.mrf.mxu0
  %v1330 = vadd.f32 %v272, %v1329
  %v1331 = vpop.f32.mrf.mxu0
  %1332 = vdwg.mxu0
  %v1333 = vxor.u32 %v1330, 2147483648
  %v1334 = vmul.f32 %v1333, 1.442695
  %v1335 = vpow.pop %v1334
  %v1336 = vadd.f32 %v1335, 1.0
  %v1337 = vrcp.pop %v1336
  %v1338 = vmul.f32 %v1336, %v1337
  %v1339 = vsub.f32 1.0, %v1338
  %v1340 = vmul.f32 %v1337, %v1339
  %v1341 = vadd.f32 %v1337, %v1340
  %vm1342 = vweird.f32 %v1336
  %vm1343 = vweird.f32 %v1337
  %vm1344 = vmor %vm1342, %vm1343
  %v1345 = vsel %vm1344, %v1337, %v1341
  %v1346 = vand.u32 2147483647, %v1336
  %vm1347 = vcmp.eq.f32.partialorder %v1346, 8.507059e+37
  %v1348 = vand.u32 %v1336, 2147483648
  %v1349 = vor.u32 1.1754944e-38, %v1348
  %v1350 = vsel %vm1347, %v1349, %v1345
  %v1351 = vmul.f32 1.0, %v1350
  %v1352 = vtanh.pop %v1330
  %v1353 = vmul.f32 %v1351, %v1106
  %1355 = vrot.lane.b32.xlu0 %v1352, 64
  %v1356 = vpop.permute.xlu0 %1355
  %v1358 = vmul.f32 %v1351, %v1356
  %1360 = vrot.lane.b32.xlu0 %v1358, 32
  %v1361 = vpop.permute.xlu0 %1360
  %v1363 = vadd.f32 %v1353, %v1361
  %v1364 = vtanh.pop %v1363
  %1366 = vrot.lane.b32.xlu0 %v1364, 64
  %v1367 = vpop.permute.xlu0 %1366
  %v1369 = vmul.f32 %v1351, %v1367
  %v1370 = vpack.c.bf16 %v1369, %v1369
  %1372 = vrot.lane.b32.xlu0 %v1370, 32
  %v1373 = vpop.permute.xlu0 %1372
  %v1375 = vsel %vm183, %v1373, 0
  %1377 = vmatpush.bf16.msra.mxu0 0
  %1378 = vmatpush.bf16.msra.mxu0 0
  %1379 = vmatpush.bf16.msra.mxu0 0
  %1380 = vmatpush.bf16.msra.mxu0 0
  %1381 = vmatpush.bf16.msra.mxu0 0
  %1382 = vmatpush.bf16.msra.mxu0 0
  %1383 = vmatpush.bf16.msra.mxu0 %v84
  %1384 = vmatpush.bf16.msra.mxu0 %v83
  %1385 = vmatmul.bf16.gmra.mxu0 %v1375
  %v1386 = vpop.f32.mrf.mxu0
  %v1387 = vadd.f32 %v203, %v1386
  %v1388 = vpop.f32.mrf.mxu0
  %1389 = vdwg.mxu0
  %v1390 = vpack.c.bf16 %v135, %v135
  %v1392 = vsel %vm157, %v1390, 0
  %1394 = vmatpush.bf16.msra.mxu0 0
  %1395 = vmatpush.bf16.msra.mxu0 0
  %1396 = vmatpush.bf16.msra.mxu0 0
  %1397 = vmatpush.bf16.msra.mxu0 0
  %1398 = vmatpush.bf16.msra.mxu0 0
  %1399 = vmatpush.bf16.msra.mxu0 0
  %1400 = vmatpush.bf16.msra.mxu0 0
  %1401 = vmatpush.bf16.msra.mxu0 %v353
  %1402 = vmatmul.bf16.gmra.mxu0 %v1392
  %v1403 = vpop.f32.mrf.mxu0
  %v1404 = vadd.f32 0.0, %v1403
  %v1405 = vpop.f32.mrf.mxu0
  %1406 = vdwg.mxu0
  %1408 = vrot.lane.b32.xlu0 %v1404, 64
  %v1409 = vpop.permute.xlu0 %1408
  %v1411 = vadd.f32 %v1387, %v1409
  %v1412 = vmax.f32 %v1411, 0.0
  %v1413 = vpack.c.bf16 %v1412, %v1412
  %1415 = vrot.lane.b32.xlu0 %v1413, 64
  %v1416 = vpop.permute.xlu0 %1415
  %v1418 = vsel %vm183, %v1416, 0
  %1420 = vmatpush.bf16.msra.mxu0 0
  %1421 = vmatpush.bf16.msra.mxu0 0
  %1422 = vmatpush.bf16.msra.mxu0 0
  %1423 = vmatpush.bf16.msra.mxu0 0
  %1424 = vmatpush.bf16.msra.mxu0 0
  %1425 = vmatpush.bf16.msra.mxu0 0
  %1426 = vmatpush.bf16.msra.mxu0 %v114
  %1427 = vmatpush.bf16.msra.mxu0 %v113
  %1428 = vmatmul.bf16.gmra.mxu0 %v1418
  %v1429 = vpop.f32.mrf.mxu0
  %v1430 = vadd.f32 %v376, %v1429
  %v1431 = vpop.f32.mrf.mxu0
  %1432 = vdwg.mxu0
  %v1433 = vmax.f32 %v1430, 0.0
  %v1434 = vpack.c.bf16 %v1433, %v1433
  %v1436 = vsel %vm183, %v1434, 0
  %1438 = vmatpush.bf16.msra.mxu0 0
  %1439 = vmatpush.bf16.msra.mxu0 0
  %1440 = vmatpush.bf16.msra.mxu0 0
  %1441 = vmatpush.bf16.msra.mxu0 0
  %1442 = vmatpush.bf16.msra.mxu0 0
  %1443 = vmatpush.bf16.msra.mxu0 0
  %1444 = vmatpush.bf16.msra.mxu0 %v121
  %1445 = vmatpush.bf16.msra.mxu0 %v120
  %1446 = vmatmul.bf16.gmra.mxu0 %v1436
  %v1447 = vpop.f32.mrf.mxu0
  %v1448 = vadd.f32 %v400, %v1447
  %v1449 = vpop.f32.mrf.mxu0
  %1450 = vdwg.mxu0
  %v1451 = vmul.f32 %v1448, 1.442695
  %v1452 = vpow.pop %v1451
  %1454 = vrot.lane.b32.xlu0 %v150, 32
  %v1455 = vpop.permute.xlu0 %1454
  %v1457 = vmul.f32 %v1452, %v1455
  %1459 = vrot.lane.b32.xlu0 %v1457, 96
  %v1460 = vpop.permute.xlu0 %1459
  %v1462 = vadd.f32 %v1448, %v1460
  %v1463 = vpack.c.bf16 %v1462, %v1462
  %v1465 = vsel %vm183, %v1463, 0
  %1467 = vmatpush.bf16.msra.mxu0 0
  %1468 = vmatpush.bf16.msra.mxu0 0
  %1469 = vmatpush.bf16.msra.mxu0 0
  %1470 = vmatpush.bf16.msra.mxu0 0
  %1471 = vmatpush.bf16.msra.mxu0 0
  %1472 = vmatpush.bf16.msra.mxu0 0
  %1473 = vmatpush.bf16.msra.mxu0 %v91
  %1474 = vmatpush.bf16.msra.mxu0 %v90
  %1475 = vmatmul.bf16.gmra.mxu0 %v1465
  %v1476 = vpop.f32.mrf.mxu0
  %v1477 = vadd.f32 0.0, %v1476
  %v1478 = vpop.f32.mrf.mxu0
  %1479 = vdwg.mxu0
  %v1480 = vsub.f32 %v1448, %v1387
  %v1481 = vmul.f32 %v1480, %v1480
  %v1482 = vmul.f32 %v1387, -2.0
  %v1483 = vmul.f32 %v1482, 1.442695
  %v1484 = vpow.pop %v1483
  %1486 = vrot.lane.b32.xlu0 %v1484, 96
  %v1487 = vpop.permute.xlu0 %1486
  %v1489 = vmul.f32 %v1481, %v1487
  %v1490 = vmul.f32 %v1480, 2.0
  %v1491 = vmul.f32 %v1490, 1.442695
  %v1492 = vpow.pop %v1491
  %1494 = vrot.lane.b32.xlu0 %v1489, 32
  %v1495 = vpop.permute.xlu0 %1494
  %v1497 = vadd.f32 %v1492, %v1495
  %v1498 = vsub.f32 %v1497, 1.0
  %v1499 = vmul.f32 %v1498, 0.5
  %v1500 = vsub.f32 %v1499, %v1480
  %1502 = vrot.lane.b32.xlu0 %v1500, 96
  %v1503 = vpop.permute.xlu0 %1502
  %v1505 = vsel %vm472, %v1503, 0.0
  %1506 = vadd.xlane.f32.xlu0 %v1505
  %v1507 = vpop.xlane.xlu0 %1506
  %v1508 = vadd.f32 %v1251, %v1507
  %1510 = vrot.lane.b32.xlu0 %v1387, 64
  %v1511 = vpop.permute.xlu0 %1510
  %v1513 = vadd.f32 %v1477, %v1511
  %v1514 = vmax.f32 %v1513, 0.0
  %v1515 = vpack.c.bf16 %v1514, %v1514
  %1517 = vrot.lane.b32.xlu0 %v1515, 96
  %v1518 = vpop.permute.xlu0 %1517
  %v1520 = vsel %vm183, %v1518, 0
  %1522 = vmatpush.bf16.msra.mxu0 0
  %1523 = vmatpush.bf16.msra.mxu0 0
  %1524 = vmatpush.bf16.msra.mxu0 0
  %1525 = vmatpush.bf16.msra.mxu0 0
  %1526 = vmatpush.bf16.msra.mxu0 0
  %1527 = vmatpush.bf16.msra.mxu0 0
  %1528 = vmatpush.bf16.msra.mxu0 %v128
  %1529 = vmatpush.bf16.msra.mxu0 %v127
  %1530 = vmatmul.bf16.gmra.mxu0 %v1520
  %v1531 = vpop.f32.mrf.mxu0
  %v1532 = vadd.f32 %v485, %v1531
  %v1533 = vpop.f32.mrf.mxu0
  %1534 = vdwg.mxu0
  %v1535 = vsub.f32 %v135, %v1532
  %1537 = vrot.lane.b32.xlu0 %v1532, 124
  %v1538 = vpop.permute.xlu0 %1537
  %v1540 = vsel %vm511, %v1538, 0.0
  %1541 = vadd.xlane.f32.xlu0 %v1540
  %v1542 = vpop.xlane.xlu0 %1541
  %v1543 = vsub.f32 -3.675754, %v1542
  %v1544 = vmul.f32 %v1535, %v1535
  %v1545 = vmul.f32 %v1532, -2.0
  %v1546 = vmul.f32 %v1545, 1.442695
  %v1547 = vpow.pop %v1546
  %1549 = vrot.lane.b32.xlu0 %v1547, 124
  %v1550 = vpop.permute.xlu0 %1549
  %v1552 = vmul.f32 %v1544, %v1550
  %v1553 = vsel %vm511, %v1552, 0.0
  %1554 = vadd.xlane.f32.xlu0 %v1553
  %v1555 = vpop.xlane.xlu0 %1554
  %v1556 = vmul.f32 %v1555, 0.5
  %v1557 = vsub.f32 %v1543, %v1556
  %v1558 = vadd.f32 %v1301, %v1557
  %1560 = vset.pattern.permute.xlu0 0
  %1561 = vperm.xlu0 %1560, %v143
  %v1562 = vpop.permute.xlu0 %1561
  %v1564 = vmul.f32 %v1562, %v256
  %v1565 = vadd.f32 %v1477, %v1564
  %v1566 = vadd.f32 %v1565, %v261
  %v1567 = vmax.f32 %v1566, 0.0
  %1569 = vrot.lane.b32.xlu0 %v1369, 64
  %v1570 = vpop.permute.xlu0 %1569
  %v1572 = vsel %vm183, %v1567, %v1570
  %v1573 = vpack.c.bf16 %v1572, %v1572
  %v1575 = vsel %vm274, %v1573, 0
  %1577 = vmatpush.bf16.msra.mxu0 0
  %1578 = vmatpush.bf16.msra.mxu0 0
  %1579 = vmatpush.bf16.msra.mxu0 0
  %1580 = vmatpush.bf16.msra.mxu0 0
  %1581 = vmatpush.bf16.msra.mxu0 %v105
  %1582 = vmatpush.bf16.msra.mxu0 %v104
  %1583 = vmatpush.bf16.msra.mxu0 %v103
  %1584 = vmatpush.bf16.msra.mxu0 %v102
  %1585 = vmatmul.bf16.gmra.mxu0 %v1575
  %v1586 = vpop.f32.mrf.mxu0
  %v1587 = vadd.f32 %v272, %v1586
  %v1588 = vpop.f32.mrf.mxu0
  %1589 = vdwg.mxu0
  %v1590 = vxor.u32 %v1587, 2147483648
  %v1591 = vmul.f32 %v1590, 1.442695
  %v1592 = vpow.pop %v1591
  %v1593 = vadd.f32 %v1592, 1.0
  %v1594 = vrcp.pop %v1593
  %v1595 = vmul.f32 %v1593, %v1594
  %v1596 = vsub.f32 1.0, %v1595
  %v1597 = vmul.f32 %v1594, %v1596
  %v1598 = vadd.f32 %v1594, %v1597
  %vm1599 = vweird.f32 %v1593
  %vm1600 = vweird.f32 %v1594
  %vm1601 = vmor %vm1599, %vm1600
  %v1602 = vsel %vm1601, %v1594, %v1598
  %v1603 = vand.u32 2147483647, %v1593
  %vm1604 = vcmp.eq.f32.partialorder %v1603, 8.507059e+37
  %v1605 = vand.u32 %v1593, 2147483648
  %v1606 = vor.u32 1.1754944e-38, %v1605
  %v1607 = vsel %vm1604, %v1606, %v1602
  %v1608 = vmul.f32 1.0, %v1607
  %v1609 = vtanh.pop %v1587
  %v1610 = vmul.f32 %v1608, %v1363
  %1612 = vrot.lane.b32.xlu0 %v1609, 64
  %v1613 = vpop.permute.xlu0 %1612
  %v1615 = vmul.f32 %v1608, %v1613
  %1617 = vrot.lane.b32.xlu0 %v1615, 32
  %v1618 = vpop.permute.xlu0 %1617
  %v1620 = vadd.f32 %v1610, %v1618
  %v1621 = vtanh.pop %v1620
  %1623 = vrot.lane.b32.xlu0 %v1621, 64
  %v1624 = vpop.permute.xlu0 %1623
  %v1626 = vmul.f32 %v1608, %v1624
  %v1627 = vpack.c.bf16 %v1626, %v1626
  %1629 = vrot.lane.b32.xlu0 %v1627, 32
  %v1630 = vpop.permute.xlu0 %1629
  %v1632 = vsel %vm183, %v1630, 0
  %1634 = vmatpush.bf16.msra.mxu0 0
  %1635 = vmatpush.bf16.msra.mxu0 0
  %1636 = vmatpush.bf16.msra.mxu0 0
  %1637 = vmatpush.bf16.msra.mxu0 0
  %1638 = vmatpush.bf16.msra.mxu0 0
  %1639 = vmatpush.bf16.msra.mxu0 0
  %1640 = vmatpush.bf16.msra.mxu0 %v84
  %1641 = vmatpush.bf16.msra.mxu0 %v83
  %1642 = vmatmul.bf16.gmra.mxu0 %v1632
  %v1643 = vpop.f32.mrf.mxu0
  %v1644 = vadd.f32 %v203, %v1643
  %v1645 = vpop.f32.mrf.mxu0
  %1646 = vdwg.mxu0
  %v1647 = vpack.c.bf16 %v136, %v136
  %v1649 = vsel %vm157, %v1647, 0
  %1651 = vmatpush.bf16.msra.mxu0 0
  %1652 = vmatpush.bf16.msra.mxu0 0
  %1653 = vmatpush.bf16.msra.mxu0 0
  %1654 = vmatpush.bf16.msra.mxu0 0
  %1655 = vmatpush.bf16.msra.mxu0 0
  %1656 = vmatpush.bf16.msra.mxu0 0
  %1657 = vmatpush.bf16.msra.mxu0 0
  %1658 = vmatpush.bf16.msra.mxu0 %v353
  %1659 = vmatmul.bf16.gmra.mxu0 %v1649
  %v1660 = vpop.f32.mrf.mxu0
  %v1661 = vadd.f32 0.0, %v1660
  %v1662 = vpop.f32.mrf.mxu0
  %1663 = vdwg.mxu0
  %1665 = vrot.lane.b32.xlu0 %v1661, 64
  %v1666 = vpop.permute.xlu0 %1665
  %v1668 = vadd.f32 %v1644, %v1666
  %v1669 = vmax.f32 %v1668, 0.0
  %v1670 = vpack.c.bf16 %v1669, %v1669
  %1672 = vrot.lane.b32.xlu0 %v1670, 64
  %v1673 = vpop.permute.xlu0 %1672
  %v1675 = vsel %vm183, %v1673, 0
  %1677 = vmatpush.bf16.msra.mxu0 0
  %1678 = vmatpush.bf16.msra.mxu0 0
  %1679 = vmatpush.bf16.msra.mxu0 0
  %1680 = vmatpush.bf16.msra.mxu0 0
  %1681 = vmatpush.bf16.msra.mxu0 0
  %1682 = vmatpush.bf16.msra.mxu0 0
  %1683 = vmatpush.bf16.msra.mxu0 %v114
  %1684 = vmatpush.bf16.msra.mxu0 %v113
  %1685 = vmatmul.bf16.gmra.mxu0 %v1675
  %v1686 = vpop.f32.mrf.mxu0
  %v1687 = vadd.f32 %v376, %v1686
  %v1688 = vpop.f32.mrf.mxu0
  %1689 = vdwg.mxu0
  %v1690 = vmax.f32 %v1687, 0.0
  %v1691 = vpack.c.bf16 %v1690, %v1690
  %v1693 = vsel %vm183, %v1691, 0
  %1695 = vmatpush.bf16.msra.mxu0 0
  %1696 = vmatpush.bf16.msra.mxu0 0
  %1697 = vmatpush.bf16.msra.mxu0 0
  %1698 = vmatpush.bf16.msra.mxu0 0
  %1699 = vmatpush.bf16.msra.mxu0 0
  %1700 = vmatpush.bf16.msra.mxu0 0
  %1701 = vmatpush.bf16.msra.mxu0 %v121
  %1702 = vmatpush.bf16.msra.mxu0 %v120
  %1703 = vmatmul.bf16.gmra.mxu0 %v1693
  %v1704 = vpop.f32.mrf.mxu0
  %v1705 = vadd.f32 %v400, %v1704
  %v1706 = vpop.f32.mrf.mxu0
  %1707 = vdwg.mxu0
  %v1708 = vmul.f32 %v1705, 1.442695
  %v1709 = vpow.pop %v1708
  %1711 = vrot.lane.b32.xlu0 %v151, 32
  %v1712 = vpop.permute.xlu0 %1711
  %v1714 = vmul.f32 %v1709, %v1712
  %1716 = vrot.lane.b32.xlu0 %v1714, 96
  %v1717 = vpop.permute.xlu0 %1716
  %v1719 = vadd.f32 %v1705, %v1717
  %v1720 = vpack.c.bf16 %v1719, %v1719
  %v1722 = vsel %vm183, %v1720, 0
  %1724 = vmatpush.bf16.msra.mxu0 0
  %1725 = vmatpush.bf16.msra.mxu0 0
  %1726 = vmatpush.bf16.msra.mxu0 0
  %1727 = vmatpush.bf16.msra.mxu0 0
  %1728 = vmatpush.bf16.msra.mxu0 0
  %1729 = vmatpush.bf16.msra.mxu0 0
  %1730 = vmatpush.bf16.msra.mxu0 %v91
  %1731 = vmatpush.bf16.msra.mxu0 %v90
  %1732 = vmatmul.bf16.gmra.mxu0 %v1722
  %v1733 = vpop.f32.mrf.mxu0
  %v1734 = vadd.f32 0.0, %v1733
  %v1735 = vpop.f32.mrf.mxu0
  %1736 = vdwg.mxu0
  %v1737 = vsub.f32 %v1705, %v1644
  %v1738 = vmul.f32 %v1737, %v1737
  %v1739 = vmul.f32 %v1644, -2.0
  %v1740 = vmul.f32 %v1739, 1.442695
  %v1741 = vpow.pop %v1740
  %1743 = vrot.lane.b32.xlu0 %v1741, 96
  %v1744 = vpop.permute.xlu0 %1743
  %v1746 = vmul.f32 %v1738, %v1744
  %v1747 = vmul.f32 %v1737, 2.0
  %v1748 = vmul.f32 %v1747, 1.442695
  %v1749 = vpow.pop %v1748
  %1751 = vrot.lane.b32.xlu0 %v1746, 32
  %v1752 = vpop.permute.xlu0 %1751
  %v1754 = vadd.f32 %v1749, %v1752
  %v1755 = vsub.f32 %v1754, 1.0
  %v1756 = vmul.f32 %v1755, 0.5
  %v1757 = vsub.f32 %v1756, %v1737
  %1759 = vrot.lane.b32.xlu0 %v1757, 96
  %v1760 = vpop.permute.xlu0 %1759
  %v1762 = vsel %vm472, %v1760, 0.0
  %1763 = vadd.xlane.f32.xlu0 %v1762
  %v1764 = vpop.xlane.xlu0 %1763
  %v1765 = vadd.f32 %v1508, %v1764
  %1767 = vrot.lane.b32.xlu0 %v1644, 64
  %v1768 = vpop.permute.xlu0 %1767
  %v1770 = vadd.f32 %v1734, %v1768
  %v1771 = vmax.f32 %v1770, 0.0
  %v1772 = vpack.c.bf16 %v1771, %v1771
  %1774 = vrot.lane.b32.xlu0 %v1772, 96
  %v1775 = vpop.permute.xlu0 %1774
  %v1777 = vsel %vm183, %v1775, 0
  %1779 = vmatpush.bf16.msra.mxu0 0
  %1780 = vmatpush.bf16.msra.mxu0 0
  %1781 = vmatpush.bf16.msra.mxu0 0
  %1782 = vmatpush.bf16.msra.mxu0 0
  %1783 = vmatpush.bf16.msra.mxu0 0
  %1784 = vmatpush.bf16.msra.mxu0 0
  %1785 = vmatpush.bf16.msra.mxu0 %v128
  %1786 = vmatpush.bf16.msra.mxu0 %v127
  %1787 = vmatmul.bf16.gmra.mxu0 %v1777
  %v1788 = vpop.f32.mrf.mxu0
  %v1789 = vadd.f32 %v485, %v1788
  %v1790 = vpop.f32.mrf.mxu0
  %1791 = vdwg.mxu0
  %v1792 = vsub.f32 %v136, %v1789
  %1794 = vrot.lane.b32.xlu0 %v1789, 124
  %v1795 = vpop.permute.xlu0 %1794
  %v1797 = vsel %vm511, %v1795, 0.0
  %1798 = vadd.xlane.f32.xlu0 %v1797
  %v1799 = vpop.xlane.xlu0 %1798
  %v1800 = vsub.f32 -3.675754, %v1799
  %v1801 = vmul.f32 %v1792, %v1792
  %v1802 = vmul.f32 %v1789, -2.0
  %v1803 = vmul.f32 %v1802, 1.442695
  %v1804 = vpow.pop %v1803
  %1806 = vrot.lane.b32.xlu0 %v1804, 124
  %v1807 = vpop.permute.xlu0 %1806
  %v1809 = vmul.f32 %v1801, %v1807
  %v1810 = vsel %vm511, %v1809, 0.0
  %1811 = vadd.xlane.f32.xlu0 %v1810
  %v1812 = vpop.xlane.xlu0 %1811
  %v1813 = vmul.f32 %v1812, 0.5
  %v1814 = vsub.f32 %v1800, %v1813
  %v1815 = vadd.f32 %v1558, %v1814
  %1817 = vset.pattern.permute.xlu0 0
  %1818 = vperm.xlu0 %1817, %v144
  %v1819 = vpop.permute.xlu0 %1818
  %v1821 = vmul.f32 %v1819, %v256
  %v1822 = vadd.f32 %v1734, %v1821
  %v1823 = vadd.f32 %v1822, %v261
  %v1824 = vmax.f32 %v1823, 0.0
  %1826 = vrot.lane.b32.xlu0 %v1626, 64
  %v1827 = vpop.permute.xlu0 %1826
  %v1829 = vsel %vm183, %v1824, %v1827
  %v1830 = vpack.c.bf16 %v1829, %v1829
  %v1832 = vsel %vm274, %v1830, 0
  %1834 = vmatpush.bf16.msra.mxu0 0
  %1835 = vmatpush.bf16.msra.mxu0 0
  %1836 = vmatpush.bf16.msra.mxu0 0
  %1837 = vmatpush.bf16.msra.mxu0 0
  %1838 = vmatpush.bf16.msra.mxu0 %v105
  %1839 = vmatpush.bf16.msra.mxu0 %v104
  %1840 = vmatpush.bf16.msra.mxu0 %v103
  %1841 = vmatpush.bf16.msra.mxu0 %v102
  %1842 = vmatmul.bf16.gmra.mxu0 %v1832
  %v1843 = vpop.f32.mrf.mxu0
  %v1844 = vadd.f32 %v272, %v1843
  %v1845 = vpop.f32.mrf.mxu0
  %1846 = vdwg.mxu0
  %v1847 = vxor.u32 %v1844, 2147483648
  %v1848 = vmul.f32 %v1847, 1.442695
  %v1849 = vpow.pop %v1848
  %v1850 = vadd.f32 %v1849, 1.0
  %v1851 = vrcp.pop %v1850
  %v1852 = vmul.f32 %v1850, %v1851
  %v1853 = vsub.f32 1.0, %v1852
  %v1854 = vmul.f32 %v1851, %v1853
  %v1855 = vadd.f32 %v1851, %v1854
  %vm1856 = vweird.f32 %v1850
  %vm1857 = vweird.f32 %v1851
  %vm1858 = vmor %vm1856, %vm1857
  %v1859 = vsel %vm1858, %v1851, %v1855
  %v1860 = vand.u32 2147483647, %v1850
  %vm1861 = vcmp.eq.f32.partialorder %v1860, 8.507059e+37
  %v1862 = vand.u32 %v1850, 2147483648
  %v1863 = vor.u32 1.1754944e-38, %v1862
  %v1864 = vsel %vm1861, %v1863, %v1859
  %v1865 = vmul.f32 1.0, %v1864
  %v1866 = vtanh.pop %v1844
  %v1867 = vmul.f32 %v1865, %v1620
  %1869 = vrot.lane.b32.xlu0 %v1866, 64
  %v1870 = vpop.permute.xlu0 %1869
  %v1872 = vmul.f32 %v1865, %v1870
  %1874 = vrot.lane.b32.xlu0 %v1872, 32
  %v1875 = vpop.permute.xlu0 %1874
  %v1877 = vadd.f32 %v1867, %v1875
  %v1878 = vtanh.pop %v1877
  %1880 = vrot.lane.b32.xlu0 %v1878, 64
  %v1881 = vpop.permute.xlu0 %1880
  %v1883 = vmul.f32 %v1865, %v1881
  %v1884 = vpack.c.bf16 %v1883, %v1883
  %1886 = vrot.lane.b32.xlu0 %v1884, 32
  %v1887 = vpop.permute.xlu0 %1886
  %v1889 = vsel %vm183, %v1887, 0
  %1891 = vmatpush.bf16.msra.mxu0 0
  %1892 = vmatpush.bf16.msra.mxu0 0
  %1893 = vmatpush.bf16.msra.mxu0 0
  %1894 = vmatpush.bf16.msra.mxu0 0
  %1895 = vmatpush.bf16.msra.mxu0 0
  %1896 = vmatpush.bf16.msra.mxu0 0
  %1897 = vmatpush.bf16.msra.mxu0 %v84
  %1898 = vmatpush.bf16.msra.mxu0 %v83
  %1899 = vmatmul.bf16.gmra.mxu0 %v1889
  %v1900 = vpop.f32.mrf.mxu0
  %v1901 = vadd.f32 %v203, %v1900
  %v1902 = vpop.f32.mrf.mxu0
  %1903 = vdwg.mxu0
  %v1904 = vpack.c.bf16 %v137, %v137
  %v1906 = vsel %vm157, %v1904, 0
  %1908 = vmatpush.bf16.msra.mxu0 0
  %1909 = vmatpush.bf16.msra.mxu0 0
  %1910 = vmatpush.bf16.msra.mxu0 0
  %1911 = vmatpush.bf16.msra.mxu0 0
  %1912 = vmatpush.bf16.msra.mxu0 0
  %1913 = vmatpush.bf16.msra.mxu0 0
  %1914 = vmatpush.bf16.msra.mxu0 0
  %1915 = vmatpush.bf16.msra.mxu0 %v353
  %1916 = vmatmul.bf16.gmra.mxu0 %v1906
  %v1917 = vpop.f32.mrf.mxu0
  %v1918 = vadd.f32 0.0, %v1917
  %v1919 = vpop.f32.mrf.mxu0
  %1920 = vdwg.mxu0
  %1922 = vrot.lane.b32.xlu0 %v1918, 64
  %v1923 = vpop.permute.xlu0 %1922
  %v1925 = vadd.f32 %v1901, %v1923
  %v1926 = vmax.f32 %v1925, 0.0
  %v1927 = vpack.c.bf16 %v1926, %v1926
  %1929 = vrot.lane.b32.xlu0 %v1927, 64
  %v1930 = vpop.permute.xlu0 %1929
  %v1932 = vsel %vm183, %v1930, 0
  %1934 = vmatpush.bf16.msra.mxu0 0
  %1935 = vmatpush.bf16.msra.mxu0 0
  %1936 = vmatpush.bf16.msra.mxu0 0
  %1937 = vmatpush.bf16.msra.mxu0 0
  %1938 = vmatpush.bf16.msra.mxu0 0
  %1939 = vmatpush.bf16.msra.mxu0 0
  %1940 = vmatpush.bf16.msra.mxu0 %v114
  %1941 = vmatpush.bf16.msra.mxu0 %v113
  %1942 = vmatmul.bf16.gmra.mxu0 %v1932
  %v1943 = vpop.f32.mrf.mxu0
  %v1944 = vadd.f32 %v376, %v1943
  %v1945 = vpop.f32.mrf.mxu0
  %1946 = vdwg.mxu0
  %v1947 = vmax.f32 %v1944, 0.0
  %v1948 = vpack.c.bf16 %v1947, %v1947
  %v1950 = vsel %vm183, %v1948, 0
  %1952 = vmatpush.bf16.msra.mxu0 0
  %1953 = vmatpush.bf16.msra.mxu0 0
  %1954 = vmatpush.bf16.msra.mxu0 0
  %1955 = vmatpush.bf16.msra.mxu0 0
  %1956 = vmatpush.bf16.msra.mxu0 0
  %1957 = vmatpush.bf16.msra.mxu0 0
  %1958 = vmatpush.bf16.msra.mxu0 %v121
  %1959 = vmatpush.bf16.msra.mxu0 %v120
  %1960 = vmatmul.bf16.gmra.mxu0 %v1950
  %v1961 = vpop.f32.mrf.mxu0
  %v1962 = vadd.f32 %v400, %v1961
  %v1963 = vpop.f32.mrf.mxu0
  %1964 = vdwg.mxu0
  %v1965 = vmul.f32 %v1962, 1.442695
  %v1966 = vpow.pop %v1965
  %1968 = vrot.lane.b32.xlu0 %v152, 32
  %v1969 = vpop.permute.xlu0 %1968
  %v1971 = vmul.f32 %v1966, %v1969
  %1973 = vrot.lane.b32.xlu0 %v1971, 96
  %v1974 = vpop.permute.xlu0 %1973
  %v1976 = vadd.f32 %v1962, %v1974
  %v1977 = vpack.c.bf16 %v1976, %v1976
  %v1979 = vsel %vm183, %v1977, 0
  %1981 = vmatpush.bf16.msra.mxu0 0
  %1982 = vmatpush.bf16.msra.mxu0 0
  %1983 = vmatpush.bf16.msra.mxu0 0
  %1984 = vmatpush.bf16.msra.mxu0 0
  %1985 = vmatpush.bf16.msra.mxu0 0
  %1986 = vmatpush.bf16.msra.mxu0 0
  %1987 = vmatpush.bf16.msra.mxu0 %v91
  %1988 = vmatpush.bf16.msra.mxu0 %v90
  %1989 = vmatmul.bf16.gmra.mxu0 %v1979
  %v1990 = vpop.f32.mrf.mxu0
  %v1991 = vadd.f32 0.0, %v1990
  %v1992 = vpop.f32.mrf.mxu0
  %1993 = vdwg.mxu0
  %v1994 = vsub.f32 %v1962, %v1901
  %v1995 = vmul.f32 %v1994, %v1994
  %v1996 = vmul.f32 %v1901, -2.0
  %v1997 = vmul.f32 %v1996, 1.442695
  %v1998 = vpow.pop %v1997
  %2000 = vrot.lane.b32.xlu0 %v1998, 96
  %v2001 = vpop.permute.xlu0 %2000
  %v2003 = vmul.f32 %v1995, %v2001
  %v2004 = vmul.f32 %v1994, 2.0
  %v2005 = vmul.f32 %v2004, 1.442695
  %v2006 = vpow.pop %v2005
  %2008 = vrot.lane.b32.xlu0 %v2003, 32
  %v2009 = vpop.permute.xlu0 %2008
  %v2011 = vadd.f32 %v2006, %v2009
  %v2012 = vsub.f32 %v2011, 1.0
  %v2013 = vmul.f32 %v2012, 0.5
  %v2014 = vsub.f32 %v2013, %v1994
  %2016 = vrot.lane.b32.xlu0 %v2014, 96
  %v2017 = vpop.permute.xlu0 %2016
  %v2019 = vsel %vm472, %v2017, 0.0
  %2020 = vadd.xlane.f32.xlu0 %v2019
  %v2021 = vpop.xlane.xlu0 %2020
  %v2022 = vadd.f32 %v1765, %v2021
  %2024 = vrot.lane.b32.xlu0 %v1901, 64
  %v2025 = vpop.permute.xlu0 %2024
  %v2027 = vadd.f32 %v1991, %v2025
  %v2028 = vmax.f32 %v2027, 0.0
  %v2029 = vpack.c.bf16 %v2028, %v2028
  %2031 = vrot.lane.b32.xlu0 %v2029, 96
  %v2032 = vpop.permute.xlu0 %2031
  %v2034 = vsel %vm183, %v2032, 0
  %2036 = vmatpush.bf16.msra.mxu0 0
  %2037 = vmatpush.bf16.msra.mxu0 0
  %2038 = vmatpush.bf16.msra.mxu0 0
  %2039 = vmatpush.bf16.msra.mxu0 0
  %2040 = vmatpush.bf16.msra.mxu0 0
  %2041 = vmatpush.bf16.msra.mxu0 0
  %2042 = vmatpush.bf16.msra.mxu0 %v128
  %2043 = vmatpush.bf16.msra.mxu0 %v127
  %2044 = vmatmul.bf16.gmra.mxu0 %v2034
  %v2045 = vpop.f32.mrf.mxu0
  %v2046 = vadd.f32 %v485, %v2045
  %v2047 = vpop.f32.mrf.mxu0
  %2048 = vdwg.mxu0
  %v2049 = vsub.f32 %v137, %v2046
  %2051 = vrot.lane.b32.xlu0 %v2046, 124
  %v2052 = vpop.permute.xlu0 %2051
  %v2054 = vsel %vm511, %v2052, 0.0
  %2055 = vadd.xlane.f32.xlu0 %v2054
  %v2056 = vpop.xlane.xlu0 %2055
  %v2057 = vsub.f32 -3.675754, %v2056
  %v2058 = vmul.f32 %v2049, %v2049
  %v2059 = vmul.f32 %v2046, -2.0
  %v2060 = vmul.f32 %v2059, 1.442695
  %v2061 = vpow.pop %v2060
  %2063 = vrot.lane.b32.xlu0 %v2061, 124
  %v2064 = vpop.permute.xlu0 %2063
  %v2066 = vmul.f32 %v2058, %v2064
  %v2067 = vsel %vm511, %v2066, 0.0
  %2068 = vadd.xlane.f32.xlu0 %v2067
  %v2069 = vpop.xlane.xlu0 %2068
  %v2070 = vmul.f32 %v2069, 0.5
  %v2071 = vsub.f32 %v2057, %v2070
  %v2072 = vadd.f32 %v1815, %v2071
  %v2074 = vlaneseq
  %v2075 = vand.u32 %v2074, 127
  %v2076 = vperm.slane %v2022, %v2075
  %vm2078 = vcmask 8192
  %2079 = vst.msk [vmem:[%s21] sm:$0x1] %vm2078, %v2076
  %v2081 = vperm.slane %v2072, %v2075
  %2083 = vst.msk [vmem:[%s21 + $0x1] sm:$0x1] %vm2078, %v2081
  // Predicated region
  $region86: #{rssm_forward.1} parent=0 // pred_check
    _
  $region87: #{rssm_forward.1} parent=0 // pred_check_branch
    %2085 = sbr.rel (0) target = $region89
  $region88: #{rssm_forward.1} parent=0 // pred_region
    _
  $region89: #{rssm_forward.1} parent=0 // pred_fallthru
    _
  // Predicated region
  $region90: #{rssm_forward.1} parent=0 // pred_check
    _
  $region91: #{rssm_forward.1} parent=0 // pred_check_branch
    %2087 = sbr.rel (0) target = $region93
  $region92: #{rssm_forward.1} parent=0 // pred_region
    _
  $region93: #{rssm_forward.1} parent=0 // pred_fallthru
    _

</llo_original>
